<compile_context>
chip_gen: v5e
topology: v5e:2x2
jax: 0.10.0
libtpu: 0.0.40
codegen_flags: <defaults>
</compile_context>

<pallas_src>
import functools

import jax
import jax.numpy as jnp
import numpy as np
from jax.experimental import pallas as pl
from jax.experimental.pallas import tpu as pltpu

LEAKY_SLOPE = 0.01
BN_EPS = 1e-5


def _round_up(v, m):
    return (v + m - 1) // m * m


def _bn_lrelu(y, gamma, beta, inv_m):
    """Training-mode BatchNorm (single-pass, zero-pad-safe stats) + LeakyReLU(0.01).

    y is the bias-free conv output, so zero-padded M columns contribute 0 to both
    sum and sum-of-squares and the statistics stay exact with the true inv_m.
    """
    s = jnp.sum(y, axis=1, keepdims=True)
    ss = jnp.sum(y * y, axis=1, keepdims=True)
    mean = s * inv_m
    var = ss * inv_m - mean * mean                       # E[y^2] - E[y]^2
    scale = gamma * jax.lax.rsqrt(var + BN_EPS)          # EUP rsqrt
    z = (y - mean) * scale + beta
    return jnp.where(z >= 0.0, z, LEAKY_SLOPE * z)


# ----------------------------------------------------------------------------
# Fused Bottom forward: one Pallas call for conv/BN/LeakyReLU x 3
# ----------------------------------------------------------------------------
def bottom_forward(params, x_nchw, *, compute_dtype=jnp.float32):
    """Bottom.forward (NCHW in / NCHW out) as a single fused Pallas kernel."""
    x = x_nchw.astype(jnp.float32)
    N, Cin, H, W = x.shape
    w1, w2, w3 = params["w1"], params["w2"], params["w3"]
    C1, C2, C3 = w1.shape[0], w2.shape[0], w3.shape[0]

    # ---- static geometry (compile-time constants) ----
    kh1, kw1, ph1, pw1 = 5, 3, 1, 1
    kh2, kw2, sh2, sw2, ph2, pw2 = 20, 3, 20, 1, 3, 1
    kh3, kw3, ph3, pw3 = 3, 3, 1, 1
    Ho1, Wo1 = H + 2 * ph1 - kh1 + 1, W + 2 * pw1 - kw1 + 1
    Ho2, Wo2 = (Ho1 + 2 * ph2 - kh2) // sh2 + 1, (Wo1 + 2 * pw2 - kw2) // sw2 + 1
    Ho3, Wo3 = Ho2 + 2 * ph3 - kh3 + 1, Wo2 + 2 * pw3 - kw3 + 1
    # a1 / a2 live on the NEXT layer's zero-padded spatial grid (flattened on lanes)
    Hp2, Wp2 = Ho1 + 2 * ph2, Wo1 + 2 * pw2
    Hp3, Wp3 = Ho2 + 2 * ph3, Wo2 + 2 * pw3
    Mg1, Mg2, Mg3 = N * Hp2 * Wp2, N * Hp3 * Wp3, N * Ho3 * Wo3
    M1, M2, M3 = _round_up(Mg1, 128), _round_up(Mg2, 128), _round_up(Mg3, 128)
    Mm = max(M1, M2)
    K1, K2, K3 = Cin * kh1 * kw1, C1 * kh2 * kw2, C2 * kh3 * kw3
    K1p = _round_up(K1, 8)
    Cm = max(C1, C2, C3)
    inv_m1 = 1.0 / float(N * Ho1 * Wo1)
    inv_m2 = 1.0 / float(N * Ho2 * Wo2)
    inv_m3 = 1.0 / float(N * Ho3 * Wo3)

    # ---- layer-1 im2col in the wrapper (layout plumbing only), lane-dense (K, M)
    #      with M on lanes and already embedded in layer-2's zero-padded grid ----
    a0 = jnp.transpose(x, (1, 0, 2, 3))                                   # (Cin, N, H, W)
    a0 = jnp.pad(a0, ((0, 0), (0, 0), (ph1, ph1), (pw1, pw1)))
    taps = [a0[:, :, ki:ki + Ho1, kj:kj + Wo1]
            for ki in range(kh1) for kj in range(kw1)]
    p1 = jnp.stack(taps, axis=1).reshape(K1, N, Ho1, Wo1)                 # K = (cin, ki, kj)
    p1 = jnp.pad(p1, ((0, 0), (0, 0), (ph2, ph2), (pw2, pw2)))            # conv-2 padding grid
    p1 = p1.reshape(K1, Mg1)
    p1 = jnp.pad(p1, ((0, K1p - K1), (0, M1 - Mg1))).astype(compute_dtype)

    # ---- weight matrices (conv bias dropped: cancelled by BN mean subtraction) ----
    w1m = jnp.pad(w1.reshape(C1, K1), ((0, 0), (0, K1p - K1))).astype(compute_dtype)
    w2m = jnp.transpose(w2, (0, 2, 3, 1)).reshape(C2, K2).astype(compute_dtype)  # K=(ki,kj,cin)
    w3m = jnp.transpose(w3, (0, 2, 3, 1)).reshape(C3, K3).astype(compute_dtype)

    # ---- all BN params packed into ONE tiny operand: cols [g1 be1 g2 be2 g3 be3] ----
    def _col(v, c):
        return jnp.pad(v.reshape(c, 1).astype(jnp.float32), ((0, Cm - c), (0, 0)))
    bn = jnp.concatenate(
        [_col(params["g1"], C1), _col(params["be1"], C1),
         _col(params["g2"], C2), _col(params["be2"], C2),
         _col(params["g3"], C3), _col(params["be3"], C3)], axis=1)        # (Cm, 6)

    # ---- compile-time validity masks: force true zeros at next-layer padding /
    #      lane-padding columns after BN+LeakyReLU (so in-kernel im2col reads zeros) ----
    m_np = np.zeros((2, Mm), np.float32)
    v1 = np.zeros((N, Hp2, Wp2), np.float32)
    v1[:, ph2:ph2 + Ho1, pw2:pw2 + Wo1] = 1.0
    m_np[0, :Mg1] = v1.reshape(-1)
    v2 = np.zeros((N, Hp3, Wp3), np.float32)
    v2[:, ph3:ph3 + Ho2, pw3:pw3 + Wo2] = 1.0
    m_np[1, :Mg2] = v2.reshape(-1)
    masks = jnp.asarray(m_np)

    def kernel(p1_ref, w1_ref, w2_ref, w3_ref, bn_ref, m_ref, o_ref,
               a1_ref, a2_ref, p2_ref, p3_ref):
        bn_v = bn_ref[...]

        # ---- layer 1: one deep-K MXU matmul + fused BN(batch stats) + LeakyReLU ----
        y1 = jnp.dot(w1_ref[...], p1_ref[...], preferred_element_type=jnp.float32)
        z1 = _bn_lrelu(y1, bn_v[:C1, 0:1], bn_v[:C1, 1:2], inv_m1)
        a1_ref[...] = z1 * m_ref[0:1, 0:M1]            # zero the conv-2 padding columns

        # ---- layer 2: build im2col patches in VMEM from the resident activation ----
        p2_ref[...] = jnp.zeros_like(p2_ref)
        for n in range(N):
            for ho in range(Ho2):
                dst = n * Hp3 * Wp3 + (ho + ph3) * Wp3 + pw3
                for ki in range(kh2):
                    src = n * Hp2 * Wp2 + (ho * sh2 + ki) * Wp2
                    for kj in range(kw2):
                        r = (ki * kw2 + kj) * C1
                        p2_ref[r:r + C1, dst:dst + Wo2] = \
                            a1_ref[:, src + kj:src + kj + Wo2]
        y2 = jnp.dot(w2_ref[...], p2_ref[...].astype(w2_ref.dtype),
                     preferred_element_type=jnp.float32)
        z2 = _bn_lrelu(y2, bn_v[:C2, 2:3], bn_v[:C2, 3:4], inv_m2)
        a2_ref[...] = z2 * m_ref[1:2, 0:M2]            # zero the conv-3 padding columns

        # ---- layer 3: same in-kernel im2col + matmul + BN + LeakyReLU ----
        p3_ref[...] = jnp.zeros_like(p3_ref)
        for n in range(N):
            for ho in range(Ho3):
                dst = (n * Ho3 + ho) * Wo3
                for ki in range(kh3):
                    src = n * Hp3 * Wp3 + (ho + ki) * Wp3
                    for kj in range(kw3):
                        r = (ki * kw3 + kj) * C2
                        p3_ref[r:r + C2, dst:dst + Wo3] = \
                            a2_ref[:, src + kj:src + kj + Wo3]
        y3 = jnp.dot(w3_ref[...], p3_ref[...].astype(w3_ref.dtype),
                     preferred_element_type=jnp.float32)
        z3 = _bn_lrelu(y3, bn_v[:C3, 4:5], bn_v[:C3, 5:6], inv_m3)
        o_ref[...] = z3.astype(o_ref.dtype)

    out = pl.pallas_call(
        kernel,
        out_shape=jax.ShapeDtypeStruct((C3, M3), jnp.float32),
        grid=(1,),
        in_specs=[
            pl.BlockSpec((K1p, M1), lambda i: (0, 0)),   # layer-1 patches
            pl.BlockSpec((C1, K1p), lambda i: (0, 0)),   # w1
            pl.BlockSpec((C2, K2), lambda i: (0, 0)),    # w2
            pl.BlockSpec((C3, K3), lambda i: (0, 0)),    # w3
            pl.BlockSpec((Cm, 6), lambda i: (0, 0)),     # packed BN gamma/beta
            pl.BlockSpec((2, Mm), lambda i: (0, 0)),     # validity masks
        ],
        out_specs=pl.BlockSpec((C3, M3), lambda i: (0, 0)),
        scratch_shapes=[
            pltpu.VMEM((C1, M1), jnp.float32),   # a1 on layer-2 padded grid
            pltpu.VMEM((C2, M2), jnp.float32),   # a2 on layer-3 padded grid
            pltpu.VMEM((K2, M2), jnp.float32),   # layer-2 im2col patches
            pltpu.VMEM((K3, M3), jnp.float32),   # layer-3 im2col patches
        ],
        compiler_params=pltpu.CompilerParams(
            dimension_semantics=("arbitrary",),
            vmem_limit_bytes=32 * 1024 * 1024,
        ),
    )(p1, w1m, w2m, w3m, bn, masks)

    out = out[:, :Mg3].reshape(C3, N, Ho3, Wo3)
    return jnp.transpose(out, (1, 0, 2, 3))              # -> (N, C, Ho, Wo)


# ----------------------------------------------------------------------------
# Pure-JAX reference (spec-faithful: conv WITH bias + BN batch stats + LeakyReLU)
# ----------------------------------------------------------------------------
def _ref_conv(x, w, b, stride, padding):
    y = jax.lax.conv_general_dilated(
        x, w, window_strides=stride,
        padding=[(padding[0], padding[0]), (padding[1], padding[1])],
        dimension_numbers=("NCHW", "OIHW", "NCHW"))
    return y + b[None, :, None, None]


def _ref_bn_lrelu(y, gamma, beta):
    mean = jnp.mean(y, axis=(0, 2, 3), keepdims=True)
    var = jnp.mean(jnp.square(y - mean), axis=(0, 2, 3), keepdims=True)
    z = (y - mean) / jnp.sqrt(var + BN_EPS) * gamma[None, :, None, None] \
        + beta[None, :, None, None]
    return jnp.where(z >= 0.0, z, LEAKY_SLOPE * z)


def ref_forward(params, x):
    x = x.astype(jnp.float32)
    x = _ref_bn_lrelu(_ref_conv(x, params["w1"], params["b1"], (1, 1), (1, 1)),
                      params["g1"], params["be1"])
    x = _ref_bn_lrelu(_ref_conv(x, params["w2"], params["b2"], (20, 1), (3, 1)),
                      params["g2"], params["be2"])
    x = _ref_bn_lrelu(_ref_conv(x, params["w3"], params["b3"], (1, 1), (1, 1)),
                      params["g3"], params["be3"])
    return x


# ----------------------------------------------------------------------------
# Main
# ----------------------------------------------------------------------------
def init_params(key, in_channels, out_channels):
    ks = jax.random.split(key, 12)
    return {
        # conv1: Conv2d(in, out, kernel=(5,3), padding=1) — bias only used by the reference
        "w1": 0.1 * jax.random.normal(ks[0], (out_channels, in_channels, 5, 3), jnp.float32),
        "b1": 0.1 * jax.random.normal(ks[1], (out_channels,), jnp.float32),
        "g1": 1.0 + 0.1 * jax.random.normal(ks[2], (out_channels,), jnp.float32),
        "be1": 0.1 * jax.random.normal(ks[3], (out_channels,), jnp.float32),
        # conv2: Conv2d(out, out, kernel=(20,3), stride=(20,1), padding=(3,1))
        "w2": 0.1 * jax.random.normal(ks[4], (out_channels, out_channels, 20, 3), jnp.float32),
        "b2": 0.1 * jax.random.normal(ks[5], (out_channels,), jnp.float32),
        "g2": 1.0 + 0.1 * jax.random.normal(ks[6], (out_channels,), jnp.float32),
        "be2": 0.1 * jax.random.normal(ks[7], (out_channels,), jnp.float32),
        # conv3: Conv2d(out, in, kernel=3, padding=1)
        "w3": 0.1 * jax.random.normal(ks[8], (in_channels, out_channels, 3, 3), jnp.float32),
        "b3": 0.1 * jax.random.normal(ks[9], (in_channels,), jnp.float32),
        "g3": 1.0 + 0.1 * jax.random.normal(ks[10], (in_channels,), jnp.float32),
        "be3": 0.1 * jax.random.normal(ks[11], (in_channels,), jnp.float32),
    }


if __name__ == "__main__":
    in_channels, out_channels = 4, 8
    N, H, W = 2, 16, 16

    key = jax.random.PRNGKey(0)
    kx, kp = jax.random.split(key)
    x = jax.random.normal(kx, (N, in_channels, H, W), jnp.float32)
    params = init_params(kp, in_channels, out_channels)

    # f32 operands: exact parity with the f32 reference.
    fwd = jax.jit(functools.partial(bottom_forward, params))
    out = jax.block_until_ready(fwd(x))

    # conv1: (H-2, W); conv2: ((H-2)+6-20)//20 + 1; conv3: same spatial, in_channels
    Ho_final = ((H - 2) + 6 - 20) // 20 + 1
    assert out.shape == (N, in_channels, Ho_final, W), out.shape

    ref = jax.block_until_ready(ref_forward(params, x))
    np.testing.assert_allclose(np.asarray(out), np.asarray(ref), rtol=1e-4, atol=1e-4)

    # bf16 MXU operands (v6e/v7x feedback): f32 accumulation + f32 BN/LeakyReLU epilogue.
    fwd_bf16 = jax.jit(functools.partial(bottom_forward, params,
                                         compute_dtype=jnp.bfloat16))
    out_bf16 = jax.block_until_ready(fwd_bf16(x))
    np.testing.assert_allclose(np.asarray(out_bf16), np.asarray(ref), rtol=1e-1, atol=5e-2)

    print("KERNEL_OK")
</pallas_src>

<mosaic_0001>
module attributes {stable_mosaic.version = 11 : i64} {
  func.func @kernel(%arg0: i32, %arg1: memref<64x768xf32, #tpu.memory_space<vmem>>, %arg2: memref<8x64xf32, #tpu.memory_space<vmem>>, %arg3: memref<8x480xf32, #tpu.memory_space<vmem>>, %arg4: memref<4x72xf32, #tpu.memory_space<vmem>>, %arg5: memref<8x6xf32, #tpu.memory_space<vmem>>, %arg6: memref<2x768xf32, #tpu.memory_space<vmem>>, %arg7: memref<4x128xf32, #tpu.memory_space<vmem>>, %arg8: memref<8x768xf32, #tpu.memory_space<vmem>>, %arg9: memref<8x128xf32, #tpu.memory_space<vmem>>, %arg10: memref<480x128xf32, #tpu.memory_space<vmem>>, %arg11: memref<72x128xf32, #tpu.memory_space<vmem>>) attributes {dimension_semantics = [#tpu.dimension_semantics<arbitrary>], iteration_bounds = array<i64: 1>, scalar_prefetch = 0 : i64, scratch_operands = 4 : i64, tpu.core_type = #tpu.core_type<tc>, window_params = [{pipeline_mode = #tpu.pipeline_mode<synchronous>, transform_indices = @transform_0, window_bounds = array<i64: 64, 768>}, {pipeline_mode = #tpu.pipeline_mode<synchronous>, transform_indices = @transform_1, window_bounds = array<i64: 8, 64>}, {pipeline_mode = #tpu.pipeline_mode<synchronous>, transform_indices = @transform_2, window_bounds = array<i64: 8, 480>}, {pipeline_mode = #tpu.pipeline_mode<synchronous>, transform_indices = @transform_3, window_bounds = array<i64: 4, 72>}, {pipeline_mode = #tpu.pipeline_mode<synchronous>, transform_indices = @transform_4, window_bounds = array<i64: 8, 6>}, {pipeline_mode = #tpu.pipeline_mode<synchronous>, transform_indices = @transform_5, window_bounds = array<i64: 2, 768>}, {pipeline_mode = #tpu.pipeline_mode<synchronous>, transform_indices = @transform_6, window_bounds = array<i64: 4, 128>}]} {
    %c0 = arith.constant 0 : index
    %c0_0 = arith.constant 0 : index
    %0 = vector.load %arg5[%c0, %c0_0] : memref<8x6xf32, #tpu.memory_space<vmem>>, vector<8x6xf32>
    %c0_1 = arith.constant 0 : index
    %c0_2 = arith.constant 0 : index
    %1 = vector.load %arg2[%c0_1, %c0_2] : memref<8x64xf32, #tpu.memory_space<vmem>>, vector<8x64xf32>
    %c0_3 = arith.constant 0 : index
    %c0_4 = arith.constant 0 : index
    %2 = vector.load %arg1[%c0_3, %c0_4] : memref<64x768xf32, #tpu.memory_space<vmem>>, vector<64x768xf32>
    %cst = arith.constant dense<0.000000e+00> : vector<8x768xf32>
    %3 = tpu.matmul %1, %2, %cst {dimension_numbers = #tpu.dot_dimension_numbers<[1], [0], [0], [1], [0, 0, 1, 1], [], []>} : vector<8x64xf32>, vector<64x768xf32>, vector<8x768xf32> -> vector<8x768xf32>
    %4 = vector.extract_strided_slice %0 {offsets = [0, 0], sizes = [8, 1], strides = [1, 1]} : vector<8x6xf32> to vector<8x1xf32>
    %5 = vector.extract_strided_slice %0 {offsets = [0, 1], sizes = [8, 1], strides = [1, 1]} : vector<8x6xf32> to vector<8x1xf32>
    %cst_5 = arith.constant dense<0.000000e+00> : vector<8xf32>
    %6 = vector.multi_reduction <add>, %3, %cst_5 [1] : vector<8x768xf32> to vector<8xf32>
    %7 = vector.shape_cast %6 : vector<8xf32> to vector<8x1xf32>
    %8 = arith.mulf %3, %3 : vector<8x768xf32>
    %cst_6 = arith.constant dense<0.000000e+00> : vector<8xf32>
    %9 = vector.multi_reduction <add>, %8, %cst_6 [1] : vector<8x768xf32> to vector<8xf32>
    %10 = vector.shape_cast %9 : vector<8xf32> to vector<8x1xf32>
    %cst_7 = arith.constant 0.00223214296 : f32
    %11 = vector.broadcast %cst_7 : f32 to vector<8x1xf32>
    %12 = arith.mulf %7, %11 : vector<8x1xf32>
    %cst_8 = arith.constant 0.00223214296 : f32
    %13 = vector.broadcast %cst_8 : f32 to vector<8x1xf32>
    %14 = arith.mulf %10, %13 : vector<8x1xf32>
    %15 = arith.mulf %12, %12 : vector<8x1xf32>
    %16 = arith.subf %14, %15 : vector<8x1xf32>
    %cst_9 = arith.constant 9.99999974E-6 : f32
    %17 = vector.broadcast %cst_9 : f32 to vector<8x1xf32>
    %18 = arith.addf %16, %17 : vector<8x1xf32>
    %19 = math.rsqrt %18 : vector<8x1xf32>
    %20 = arith.mulf %4, %19 : vector<8x1xf32>
    %21 = vector.broadcast %12 : vector<8x1xf32> to vector<8x768xf32>
    %22 = arith.subf %3, %21 : vector<8x768xf32>
    %23 = vector.broadcast %20 : vector<8x1xf32> to vector<8x768xf32>
    %24 = arith.mulf %22, %23 : vector<8x768xf32>
    %25 = vector.broadcast %5 : vector<8x1xf32> to vector<8x768xf32>
    %26 = arith.addf %24, %25 : vector<8x768xf32>
    %cst_10 = arith.constant 0.000000e+00 : f32
    %27 = vector.broadcast %cst_10 : f32 to vector<8x768xf32>
    %28 = arith.cmpf oge, %26, %27 : vector<8x768xf32>
    %cst_11 = arith.constant 0.00999999977 : f32
    %29 = vector.broadcast %cst_11 : f32 to vector<8x768xf32>
    %30 = arith.mulf %29, %26 : vector<8x768xf32>
    %31 = arith.select %28, %26, %30 : vector<8x768xi1>, vector<8x768xf32>
    %c0_12 = arith.constant 0 : index
    %c0_13 = arith.constant 0 : index
    %32 = vector.load %arg6[%c0_12, %c0_13] : memref<2x768xf32, #tpu.memory_space<vmem>>, vector<1x768xf32>
    %33 = vector.broadcast %32 : vector<1x768xf32> to vector<8x768xf32>
    %34 = arith.mulf %31, %33 : vector<8x768xf32>
    %c0_14 = arith.constant 0 : index
    %c0_15 = arith.constant 0 : index
    %35 = vector.load %arg8[%c0_14, %c0_15] : memref<8x768xf32, #tpu.memory_space<vmem>>, vector<8x768xf32>
    tpu.vector_store %arg8[%c0_14, %c0_15], %34 {strides = array<i32>} : memref<8x768xf32, #tpu.memory_space<vmem>>, vector<8x768xf32>,
    %cst_16 = arith.constant 0.000000e+00 : f32
    %36 = vector.broadcast %cst_16 : f32 to vector<480x128xf32>
    %c0_17 = arith.constant 0 : index
    %c0_18 = arith.constant 0 : index
    %37 = vector.load %arg10[%c0_17, %c0_18] : memref<480x128xf32, #tpu.memory_space<vmem>>, vector<480x128xf32>
    tpu.vector_store %arg10[%c0_17, %c0_18], %36 {strides = array<i32>} : memref<480x128xf32, #tpu.memory_space<vmem>>, vector<480x128xf32>,
    %c0_19 = arith.constant 0 : index
    %c0_20 = arith.constant 0 : index
    %38 = vector.load %arg8[%c0_19, %c0_20] : memref<8x768xf32, #tpu.memory_space<vmem>>, vector<8x16xf32>
    %c0_21 = arith.constant 0 : index
    %c19 = arith.constant 19 : index
    %39 = vector.load %arg10[%c0_21, %c19] : memref<480x128xf32, #tpu.memory_space<vmem>>, vector<8x16xf32>
    tpu.vector_store %arg10[%c0_21, %c19], %38 {strides = array<i32>} : memref<480x128xf32, #tpu.memory_space<vmem>>, vector<8x16xf32>,
    %c0_22 = arith.constant 0 : index
    %c1 = arith.constant 1 : index
    %40 = vector.load %arg8[%c0_22, %c1] : memref<8x768xf32, #tpu.memory_space<vmem>>, vector<8x16xf32>
    %c8 = arith.constant 8 : index
    %c19_23 = arith.constant 19 : index
    %41 = vector.load %arg10[%c8, %c19_23] : memref<480x128xf32, #tpu.memory_space<vmem>>, vector<8x16xf32>
    tpu.vector_store %arg10[%c8, %c19_23], %40 {strides = array<i32>} : memref<480x128xf32, #tpu.memory_space<vmem>>, vector<8x16xf32>,
    %c0_24 = arith.constant 0 : index
    %c2 = arith.constant 2 : index
    %42 = vector.load %arg8[%c0_24, %c2] : memref<8x768xf32, #tpu.memory_space<vmem>>, vector<8x16xf32>
    %c16 = arith.constant 16 : index
    %c19_25 = arith.constant 19 : index
    %43 = vector.load %arg10[%c16, %c19_25] : memref<480x128xf32, #tpu.memory_space<vmem>>, vector<8x16xf32>
    tpu.vector_store %arg10[%c16, %c19_25], %42 {strides = array<i32>} : memref<480x128xf32, #tpu.memory_space<vmem>>, vector<8x16xf32>,
    %c0_26 = arith.constant 0 : index
    %c18 = arith.constant 18 : index
    %44 = vector.load %arg8[%c0_26, %c18] : memref<8x768xf32, #tpu.memory_space<vmem>>, vector<8x16xf32>
    %c24 = arith.constant 24 : index
    %c19_27 = arith.constant 19 : index
    %45 = vector.load %arg10[%c24, %c19_27] : memref<480x128xf32, #tpu.memory_space<vmem>>, vector<8x16xf32>
    tpu.vector_store %arg10[%c24, %c19_27], %44 {strides = array<i32>} : memref<480x128xf32, #tpu.memory_space<vmem>>, vector<8x16xf32>,
    %c0_28 = arith.constant 0 : index
    %c19_29 = arith.constant 19 : index
    %46 = vector.load %arg8[%c0_28, %c19_29] : memref<8x768xf32, #tpu.memory_space<vmem>>, vector<8x16xf32>
    %c32 = arith.constant 32 : index
    %c19_30 = arith.constant 19 : index
    %47 = vector.load %arg10[%c32, %c19_30] : memref<480x128xf32, #tpu.memory_space<vmem>>, vector<8x16xf32>
    tpu.vector_store %arg10[%c32, %c19_30], %46 {strides = array<i32>} : memref<480x128xf32, #tpu.memory_space<vmem>>, vector<8x16xf32>,
    %c0_31 = arith.constant 0 : index
    %c20 = arith.constant 20 : index
    %48 = vector.load %arg8[%c0_31, %c20] : memref<8x768xf32, #tpu.memory_space<vmem>>, vector<8x16xf32>
    %c40 = arith.constant 40 : index
    %c19_32 = arith.constant 19 : index
    %49 = vector.load %arg10[%c40, %c19_32] : memref<480x128xf32, #tpu.memory_space<vmem>>, vector<8x16xf32>
    tpu.vector_store %arg10[%c40, %c19_32], %48 {strides = array<i32>} : memref<480x128xf32, #tpu.memory_space<vmem>>, vector<8x16xf32>,
    %c0_33 = arith.constant 0 : index
    %c36 = arith.constant 36 : index
    %50 = vector.load %arg8[%c0_33, %c36] : memref<8x768xf32, #tpu.memory_space<vmem>>, vector<8x16xf32>
    %c48 = arith.constant 48 : index
    %c19_34 = arith.constant 19 : index
    %51 = vector.load %arg10[%c48, %c19_34] : memref<480x128xf32, #tpu.memory_space<vmem>>, vector<8x16xf32>
    tpu.vector_store %arg10[%c48, %c19_34], %50 {strides = array<i32>} : memref<480x128xf32, #tpu.memory_space<vmem>>, vector<8x16xf32>,
    %c0_35 = arith.constant 0 : index
    %c37 = arith.constant 37 : index
    %52 = vector.load %arg8[%c0_35, %c37] : memref<8x768xf32, #tpu.memory_space<vmem>>, vector<8x16xf32>
    %c56 = arith.constant 56 : index
    %c19_36 = arith.constant 19 : index
    %53 = vector.load %arg10[%c56, %c19_36] : memref<480x128xf32, #tpu.memory_space<vmem>>, vector<8x16xf32>
    tpu.vector_store %arg10[%c56, %c19_36], %52 {strides = array<i32>} : memref<480x128xf32, #tpu.memory_space<vmem>>, vector<8x16xf32>,
    %c0_37 = arith.constant 0 : index
    %c38 = arith.constant 38 : index
    %54 = vector.load %arg8[%c0_37, %c38] : memref<8x768xf32, #tpu.memory_space<vmem>>, vector<8x16xf32>
    %c64 = arith.constant 64 : index
    %c19_38 = arith.constant 19 : index
    %55 = vector.load %arg10[%c64, %c19_38] : memref<480x128xf32, #tpu.memory_space<vmem>>, vector<8x16xf32>
    tpu.vector_store %arg10[%c64, %c19_38], %54 {strides = array<i32>} : memref<480x128xf32, #tpu.memory_space<vmem>>, vector<8x16xf32>,
    %c0_39 = arith.constant 0 : index
    %c54 = arith.constant 54 : index
    %56 = vector.load %arg8[%c0_39, %c54] : memref<8x768xf32, #tpu.memory_space<vmem>>, vector<8x16xf32>
    %c72 = arith.constant 72 : index
    %c19_40 = arith.constant 19 : index
    %57 = vector.load %arg10[%c72, %c19_40] : memref<480x128xf32, #tpu.memory_space<vmem>>, vector<8x16xf32>
    tpu.vector_store %arg10[%c72, %c19_40], %56 {strides = array<i32>} : memref<480x128xf32, #tpu.memory_space<vmem>>, vector<8x16xf32>,
    %c0_41 = arith.constant 0 : index
    %c55 = arith.constant 55 : index
    %58 = vector.load %arg8[%c0_41, %c55] : memref<8x768xf32, #tpu.memory_space<vmem>>, vector<8x16xf32>
    %c80 = arith.constant 80 : index
    %c19_42 = arith.constant 19 : index
    %59 = vector.load %arg10[%c80, %c19_42] : memref<480x128xf32, #tpu.memory_space<vmem>>, vector<8x16xf32>
    tpu.vector_store %arg10[%c80, %c19_42], %58 {strides = array<i32>} : memref<480x128xf32, #tpu.memory_space<vmem>>, vector<8x16xf32>,
    %c0_43 = arith.constant 0 : index
    %c56_44 = arith.constant 56 : index
    %60 = vector.load %arg8[%c0_43, %c56_44] : memref<8x768xf32, #tpu.memory_space<vmem>>, vector<8x16xf32>
    %c88 = arith.constant 88 : index
    %c19_45 = arith.constant 19 : index
    %61 = vector.load %arg10[%c88, %c19_45] : memref<480x128xf32, #tpu.memory_space<vmem>>, vector<8x16xf32>
    tpu.vector_store %arg10[%c88, %c19_45], %60 {strides = array<i32>} : memref<480x128xf32, #tpu.memory_space<vmem>>, vector<8x16xf32>,
    %c0_46 = arith.constant 0 : index
    %c72_47 = arith.constant 72 : index
    %62 = vector.load %arg8[%c0_46, %c72_47] : memref<8x768xf32, #tpu.memory_space<vmem>>, vector<8x16xf32>
    %c96 = arith.constant 96 : index
    %c19_48 = arith.constant 19 : index
    %63 = vector.load %arg10[%c96, %c19_48] : memref<480x128xf32, #tpu.memory_space<vmem>>, vector<8x16xf32>
    tpu.vector_store %arg10[%c96, %c19_48], %62 {strides = array<i32>} : memref<480x128xf32, #tpu.memory_space<vmem>>, vector<8x16xf32>,
    %c0_49 = arith.constant 0 : index
    %c73 = arith.constant 73 : index
    %64 = vector.load %arg8[%c0_49, %c73] : memref<8x768xf32, #tpu.memory_space<vmem>>, vector<8x16xf32>
    %c104 = arith.constant 104 : index
    %c19_50 = arith.constant 19 : index
    %65 = vector.load %arg10[%c104, %c19_50] : memref<480x128xf32, #tpu.memory_space<vmem>>, vector<8x16xf32>
    tpu.vector_store %arg10[%c104, %c19_50], %64 {strides = array<i32>} : memref<480x128xf32, #tpu.memory_space<vmem>>, vector<8x16xf32>,
    %c0_51 = arith.constant 0 : index
    %c74 = arith.constant 74 : index
    %66 = vector.load %arg8[%c0_51, %c74] : memref<8x768xf32, #tpu.memory_space<vmem>>, vector<8x16xf32>
    %c112 = arith.constant 112 : index
    %c19_52 = arith.constant 19 : index
    %67 = vector.load %arg10[%c112, %c19_52] : memref<480x128xf32, #tpu.memory_space<vmem>>, vector<8x16xf32>
    tpu.vector_store %arg10[%c112, %c19_52], %66 {strides = array<i32>} : memref<480x128xf32, #tpu.memory_space<vmem>>, vector<8x16xf32>,
    %c0_53 = arith.constant 0 : index
    %c90 = arith.constant 90 : index
    %68 = vector.load %arg8[%c0_53, %c90] : memref<8x768xf32, #tpu.memory_space<vmem>>, vector<8x16xf32>
    %c120 = arith.constant 120 : index
    %c19_54 = arith.constant 19 : index
    %69 = vector.load %arg10[%c120, %c19_54] : memref<480x128xf32, #tpu.memory_space<vmem>>, vector<8x16xf32>
    tpu.vector_store %arg10[%c120, %c19_54], %68 {strides = array<i32>} : memref<480x128xf32, #tpu.memory_space<vmem>>, vector<8x16xf32>,
    %c0_55 = arith.constant 0 : index
    %c91 = arith.constant 91 : index
    %70 = vector.load %arg8[%c0_55, %c91] : memref<8x768xf32, #tpu.memory_space<vmem>>, vector<8x16xf32>
    %c128 = arith.constant 128 : index
    %c19_56 = arith.constant 19 : index
    %71 = vector.load %arg10[%c128, %c19_56] : memref<480x128xf32, #tpu.memory_space<vmem>>, vector<8x16xf32>
    tpu.vector_store %arg10[%c128, %c19_56], %70 {strides = array<i32>} : memref<480x128xf32, #tpu.memory_space<vmem>>, vector<8x16xf32>,
    %c0_57 = arith.constant 0 : index
    %c92 = arith.constant 92 : index
    %72 = vector.load %arg8[%c0_57, %c92] : memref<8x768xf32, #tpu.memory_space<vmem>>, vector<8x16xf32>
    %c136 = arith.constant 136 : index
    %c19_58 = arith.constant 19 : index
    %73 = vector.load %arg10[%c136, %c19_58] : memref<480x128xf32, #tpu.memory_space<vmem>>, vector<8x16xf32>
    tpu.vector_store %arg10[%c136, %c19_58], %72 {strides = array<i32>} : memref<480x128xf32, #tpu.memory_space<vmem>>, vector<8x16xf32>,
    %c0_59 = arith.constant 0 : index
    %c108 = arith.constant 108 : index
    %74 = vector.load %arg8[%c0_59, %c108] : memref<8x768xf32, #tpu.memory_space<vmem>>, vector<8x16xf32>
    %c144 = arith.constant 144 : index
    %c19_60 = arith.constant 19 : index
    %75 = vector.load %arg10[%c144, %c19_60] : memref<480x128xf32, #tpu.memory_space<vmem>>, vector<8x16xf32>
    tpu.vector_store %arg10[%c144, %c19_60], %74 {strides = array<i32>} : memref<480x128xf32, #tpu.memory_space<vmem>>, vector<8x16xf32>,
    %c0_61 = arith.constant 0 : index
    %c109 = arith.constant 109 : index
    %76 = vector.load %arg8[%c0_61, %c109] : memref<8x768xf32, #tpu.memory_space<vmem>>, vector<8x16xf32>
    %c152 = arith.constant 152 : index
    %c19_62 = arith.constant 19 : index
    %77 = vector.load %arg10[%c152, %c19_62] : memref<480x128xf32, #tpu.memory_space<vmem>>, vector<8x16xf32>
    tpu.vector_store %arg10[%c152, %c19_62], %76 {strides = array<i32>} : memref<480x128xf32, #tpu.memory_space<vmem>>, vector<8x16xf32>,
    %c0_63 = arith.constant 0 : index
    %c110 = arith.constant 110 : index
    %78 = vector.load %arg8[%c0_63, %c110] : memref<8x768xf32, #tpu.memory_space<vmem>>, vector<8x16xf32>
    %c160 = arith.constant 160 : index
    %c19_64 = arith.constant 19 : index
    %79 = vector.load %arg10[%c160, %c19_64] : memref<480x128xf32, #tpu.memory_space<vmem>>, vector<8x16xf32>
    tpu.vector_store %arg10[%c160, %c19_64], %78 {strides = array<i32>} : memref<480x128xf32, #tpu.memory_space<vmem>>, vector<8x16xf32>,
    %c0_65 = arith.constant 0 : index
    %c126 = arith.constant 126 : index
    %80 = vector.load %arg8[%c0_65, %c126] : memref<8x768xf32, #tpu.memory_space<vmem>>, vector<8x16xf32>
    %c168 = arith.constant 168 : index
    %c19_66 = arith.constant 19 : index
    %81 = vector.load %arg10[%c168, %c19_66] : memref<480x128xf32, #tpu.memory_space<vmem>>, vector<8x16xf32>
    tpu.vector_store %arg10[%c168, %c19_66], %80 {strides = array<i32>} : memref<480x128xf32, #tpu.memory_space<vmem>>, vector<8x16xf32>,
    %c0_67 = arith.constant 0 : index
    %c127 = arith.constant 127 : index
    %82 = vector.load %arg8[%c0_67, %c127] : memref<8x768xf32, #tpu.memory_space<vmem>>, vector<8x16xf32>
    %c176 = arith.constant 176 : index
    %c19_68 = arith.constant 19 : index
    %83 = vector.load %arg10[%c176, %c19_68] : memref<480x128xf32, #tpu.memory_space<vmem>>, vector<8x16xf32>
    tpu.vector_store %arg10[%c176, %c19_68], %82 {strides = array<i32>} : memref<480x128xf32, #tpu.memory_space<vmem>>, vector<8x16xf32>,
    %c0_69 = arith.constant 0 : index
    %c128_70 = arith.constant 128 : index
    %84 = vector.load %arg8[%c0_69, %c128_70] : memref<8x768xf32, #tpu.memory_space<vmem>>, vector<8x16xf32>
    %c184 = arith.constant 184 : index
    %c19_71 = arith.constant 19 : index
    %85 = vector.load %arg10[%c184, %c19_71] : memref<480x128xf32, #tpu.memory_space<vmem>>, vector<8x16xf32>
    tpu.vector_store %arg10[%c184, %c19_71], %84 {strides = array<i32>} : memref<480x128xf32, #tpu.memory_space<vmem>>, vector<8x16xf32>,
    %c0_72 = arith.constant 0 : index
    %c144_73 = arith.constant 144 : index
    %86 = vector.load %arg8[%c0_72, %c144_73] : memref<8x768xf32, #tpu.memory_space<vmem>>, vector<8x16xf32>
    %c192 = arith.constant 192 : index
    %c19_74 = arith.constant 19 : index
    %87 = vector.load %arg10[%c192, %c19_74] : memref<480x128xf32, #tpu.memory_space<vmem>>, vector<8x16xf32>
    tpu.vector_store %arg10[%c192, %c19_74], %86 {strides = array<i32>} : memref<480x128xf32, #tpu.memory_space<vmem>>, vector<8x16xf32>,
    %c0_75 = arith.constant 0 : index
    %c145 = arith.constant 145 : index
    %88 = vector.load %arg8[%c0_75, %c145] : memref<8x768xf32, #tpu.memory_space<vmem>>, vector<8x16xf32>
    %c200 = arith.constant 200 : index
    %c19_76 = arith.constant 19 : index
    %89 = vector.load %arg10[%c200, %c19_76] : memref<480x128xf32, #tpu.memory_space<vmem>>, vector<8x16xf32>
    tpu.vector_store %arg10[%c200, %c19_76], %88 {strides = array<i32>} : memref<480x128xf32, #tpu.memory_space<vmem>>, vector<8x16xf32>,
    %c0_77 = arith.constant 0 : index
    %c146 = arith.constant 146 : index
    %90 = vector.load %arg8[%c0_77, %c146] : memref<8x768xf32, #tpu.memory_space<vmem>>, vector<8x16xf32>
    %c208 = arith.constant 208 : index
    %c19_78 = arith.constant 19 : index
    %91 = vector.load %arg10[%c208, %c19_78] : memref<480x128xf32, #tpu.memory_space<vmem>>, vector<8x16xf32>
    tpu.vector_store %arg10[%c208, %c19_78], %90 {strides = array<i32>} : memref<480x128xf32, #tpu.memory_space<vmem>>, vector<8x16xf32>,
    %c0_79 = arith.constant 0 : index
    %c162 = arith.constant 162 : index
    %92 = vector.load %arg8[%c0_79, %c162] : memref<8x768xf32, #tpu.memory_space<vmem>>, vector<8x16xf32>
    %c216 = arith.constant 216 : index
    %c19_80 = arith.constant 19 : index
    %93 = vector.load %arg10[%c216, %c19_80] : memref<480x128xf32, #tpu.memory_space<vmem>>, vector<8x16xf32>
    tpu.vector_store %arg10[%c216, %c19_80], %92 {strides = array<i32>} : memref<480x128xf32, #tpu.memory_space<vmem>>, vector<8x16xf32>,
    %c0_81 = arith.constant 0 : index
    %c163 = arith.constant 163 : index
    %94 = vector.load %arg8[%c0_81, %c163] : memref<8x768xf32, #tpu.memory_space<vmem>>, vector<8x16xf32>
    %c224 = arith.constant 224 : index
    %c19_82 = arith.constant 19 : index
    %95 = vector.load %arg10[%c224, %c19_82] : memref<480x128xf32, #tpu.memory_space<vmem>>, vector<8x16xf32>
    tpu.vector_store %arg10[%c224, %c19_82], %94 {strides = array<i32>} : memref<480x128xf32, #tpu.memory_space<vmem>>, vector<8x16xf32>,
    %c0_83 = arith.constant 0 : index
    %c164 = arith.constant 164 : index
    %96 = vector.load %arg8[%c0_83, %c164] : memref<8x768xf32, #tpu.memory_space<vmem>>, vector<8x16xf32>
    %c232 = arith.constant 232 : index
    %c19_84 = arith.constant 19 : index
    %97 = vector.load %arg10[%c232, %c19_84] : memref<480x128xf32, #tpu.memory_space<vmem>>, vector<8x16xf32>
    tpu.vector_store %arg10[%c232, %c19_84], %96 {strides = array<i32>} : memref<480x128xf32, #tpu.memory_space<vmem>>, vector<8x16xf32>,
    %c0_85 = arith.constant 0 : index
    %c180 = arith.constant 180 : index
    %98 = vector.load %arg8[%c0_85, %c180] : memref<8x768xf32, #tpu.memory_space<vmem>>, vector<8x16xf32>
    %c240 = arith.constant 240 : index
    %c19_86 = arith.constant 19 : index
    %99 = vector.load %arg10[%c240, %c19_86] : memref<480x128xf32, #tpu.memory_space<vmem>>, vector<8x16xf32>
    tpu.vector_store %arg10[%c240, %c19_86], %98 {strides = array<i32>} : memref<480x128xf32, #tpu.memory_space<vmem>>, vector<8x16xf32>,
    %c0_87 = arith.constant 0 : index
    %c181 = arith.constant 181 : index
    %100 = vector.load %arg8[%c0_87, %c181] : memref<8x768xf32, #tpu.memory_space<vmem>>, vector<8x16xf32>
    %c248 = arith.constant 248 : index
    %c19_88 = arith.constant 19 : index
    %101 = vector.load %arg10[%c248, %c19_88] : memref<480x128xf32, #tpu.memory_space<vmem>>, vector<8x16xf32>
    tpu.vector_store %arg10[%c248, %c19_88], %100 {strides = array<i32>} : memref<480x128xf32, #tpu.memory_space<vmem>>, vector<8x16xf32>,
    %c0_89 = arith.constant 0 : index
    %c182 = arith.constant 182 : index
    %102 = vector.load %arg8[%c0_89, %c182] : memref<8x768xf32, #tpu.memory_space<vmem>>, vector<8x16xf32>
    %c256 = arith.constant 256 : index
    %c19_90 = arith.constant 19 : index
    %103 = vector.load %arg10[%c256, %c19_90] : memref<480x128xf32, #tpu.memory_space<vmem>>, vector<8x16xf32>
    tpu.vector_store %arg10[%c256, %c19_90], %102 {strides = array<i32>} : memref<480x128xf32, #tpu.memory_space<vmem>>, vector<8x16xf32>,
    %c0_91 = arith.constant 0 : index
    %c198 = arith.constant 198 : index
    %104 = vector.load %arg8[%c0_91, %c198] : memref<8x768xf32, #tpu.memory_space<vmem>>, vector<8x16xf32>
    %c264 = arith.constant 264 : index
    %c19_92 = arith.constant 19 : index
    %105 = vector.load %arg10[%c264, %c19_92] : memref<480x128xf32, #tpu.memory_space<vmem>>, vector<8x16xf32>
    tpu.vector_store %arg10[%c264, %c19_92], %104 {strides = array<i32>} : memref<480x128xf32, #tpu.memory_space<vmem>>, vector<8x16xf32>,
    %c0_93 = arith.constant 0 : index
    %c199 = arith.constant 199 : index
    %106 = vector.load %arg8[%c0_93, %c199] : memref<8x768xf32, #tpu.memory_space<vmem>>, vector<8x16xf32>
    %c272 = arith.constant 272 : index
    %c19_94 = arith.constant 19 : index
    %107 = vector.load %arg10[%c272, %c19_94] : memref<480x128xf32, #tpu.memory_space<vmem>>, vector<8x16xf32>
    tpu.vector_store %arg10[%c272, %c19_94], %106 {strides = array<i32>} : memref<480x128xf32, #tpu.memory_space<vmem>>, vector<8x16xf32>,
    %c0_95 = arith.constant 0 : index
    %c200_96 = arith.constant 200 : index
    %108 = vector.load %arg8[%c0_95, %c200_96] : memref<8x768xf32, #tpu.memory_space<vmem>>, vector<8x16xf32>
    %c280 = arith.constant 280 : index
    %c19_97 = arith.constant 19 : index
    %109 = vector.load %arg10[%c280, %c19_97] : memref<480x128xf32, #tpu.memory_space<vmem>>, vector<8x16xf32>
    tpu.vector_store %arg10[%c280, %c19_97], %108 {strides = array<i32>} : memref<480x128xf32, #tpu.memory_space<vmem>>, vector<8x16xf32>,
    %c0_98 = arith.constant 0 : index
    %c216_99 = arith.constant 216 : index
    %110 = vector.load %arg8[%c0_98, %c216_99] : memref<8x768xf32, #tpu.memory_space<vmem>>, vector<8x16xf32>
    %c288 = arith.constant 288 : index
    %c19_100 = arith.constant 19 : index
    %111 = vector.load %arg10[%c288, %c19_100] : memref<480x128xf32, #tpu.memory_space<vmem>>, vector<8x16xf32>
    tpu.vector_store %arg10[%c288, %c19_100], %110 {strides = array<i32>} : memref<480x128xf32, #tpu.memory_space<vmem>>, vector<8x16xf32>,
    %c0_101 = arith.constant 0 : index
    %c217 = arith.constant 217 : index
    %112 = vector.load %arg8[%c0_101, %c217] : memref<8x768xf32, #tpu.memory_space<vmem>>, vector<8x16xf32>
    %c296 = arith.constant 296 : index
    %c19_102 = arith.constant 19 : index
    %113 = vector.load %arg10[%c296, %c19_102] : memref<480x128xf32, #tpu.memory_space<vmem>>, vector<8x16xf32>
    tpu.vector_store %arg10[%c296, %c19_102], %112 {strides = array<i32>} : memref<480x128xf32, #tpu.memory_space<vmem>>, vector<8x16xf32>,
    %c0_103 = arith.constant 0 : index
    %c218 = arith.constant 218 : index
    %114 = vector.load %arg8[%c0_103, %c218] : memref<8x768xf32, #tpu.memory_space<vmem>>, vector<8x16xf32>
    %c304 = arith.constant 304 : index
    %c19_104 = arith.constant 19 : index
    %115 = vector.load %arg10[%c304, %c19_104] : memref<480x128xf32, #tpu.memory_space<vmem>>, vector<8x16xf32>
    tpu.vector_store %arg10[%c304, %c19_104], %114 {strides = array<i32>} : memref<480x128xf32, #tpu.memory_space<vmem>>, vector<8x16xf32>,
    %c0_105 = arith.constant 0 : index
    %c234 = arith.constant 234 : index
    %116 = vector.load %arg8[%c0_105, %c234] : memref<8x768xf32, #tpu.memory_space<vmem>>, vector<8x16xf32>
    %c312 = arith.constant 312 : index
    %c19_106 = arith.constant 19 : index
    %117 = vector.load %arg10[%c312, %c19_106] : memref<480x128xf32, #tpu.memory_space<vmem>>, vector<8x16xf32>
    tpu.vector_store %arg10[%c312, %c19_106], %116 {strides = array<i32>} : memref<480x128xf32, #tpu.memory_space<vmem>>, vector<8x16xf32>,
    %c0_107 = arith.constant 0 : index
    %c235 = arith.constant 235 : index
    %118 = vector.load %arg8[%c0_107, %c235] : memref<8x768xf32, #tpu.memory_space<vmem>>, vector<8x16xf32>
    %c320 = arith.constant 320 : index
    %c19_108 = arith.constant 19 : index
    %119 = vector.load %arg10[%c320, %c19_108] : memref<480x128xf32, #tpu.memory_space<vmem>>, vector<8x16xf32>
    tpu.vector_store %arg10[%c320, %c19_108], %118 {strides = array<i32>} : memref<480x128xf32, #tpu.memory_space<vmem>>, vector<8x16xf32>,
    %c0_109 = arith.constant 0 : index
    %c236 = arith.constant 236 : index
    %120 = vector.load %arg8[%c0_109, %c236] : memref<8x768xf32, #tpu.memory_space<vmem>>, vector<8x16xf32>
    %c328 = arith.constant 328 : index
    %c19_110 = arith.constant 19 : index
    %121 = vector.load %arg10[%c328, %c19_110] : memref<480x128xf32, #tpu.memory_space<vmem>>, vector<8x16xf32>
    tpu.vector_store %arg10[%c328, %c19_110], %120 {strides = array<i32>} : memref<480x128xf32, #tpu.memory_space<vmem>>, vector<8x16xf32>,
    %c0_111 = arith.constant 0 : index
    %c252 = arith.constant 252 : index
    %122 = vector.load %arg8[%c0_111, %c252] : memref<8x768xf32, #tpu.memory_space<vmem>>, vector<8x16xf32>
    %c336 = arith.constant 336 : index
    %c19_112 = arith.constant 19 : index
    %123 = vector.load %arg10[%c336, %c19_112] : memref<480x128xf32, #tpu.memory_space<vmem>>, vector<8x16xf32>
    tpu.vector_store %arg10[%c336, %c19_112], %122 {strides = array<i32>} : memref<480x128xf32, #tpu.memory_space<vmem>>, vector<8x16xf32>,
    %c0_113 = arith.constant 0 : index
    %c253 = arith.constant 253 : index
    %124 = vector.load %arg8[%c0_113, %c253] : memref<8x768xf32, #tpu.memory_space<vmem>>, vector<8x16xf32>
    %c344 = arith.constant 344 : index
    %c19_114 = arith.constant 19 : index
    %125 = vector.load %arg10[%c344, %c19_114] : memref<480x128xf32, #tpu.memory_space<vmem>>, vector<8x16xf32>
    tpu.vector_store %arg10[%c344, %c19_114], %124 {strides = array<i32>} : memref<480x128xf32, #tpu.memory_space<vmem>>, vector<8x16xf32>,
    %c0_115 = arith.constant 0 : index
    %c254 = arith.constant 254 : index
    %126 = vector.load %arg8[%c0_115, %c254] : memref<8x768xf32, #tpu.memory_space<vmem>>, vector<8x16xf32>
    %c352 = arith.constant 352 : index
    %c19_116 = arith.constant 19 : index
    %127 = vector.load %arg10[%c352, %c19_116] : memref<480x128xf32, #tpu.memory_space<vmem>>, vector<8x16xf32>
    tpu.vector_store %arg10[%c352, %c19_116], %126 {strides = array<i32>} : memref<480x128xf32, #tpu.memory_space<vmem>>, vector<8x16xf32>,
    %c0_117 = arith.constant 0 : index
    %c270 = arith.constant 270 : index
    %128 = vector.load %arg8[%c0_117, %c270] : memref<8x768xf32, #tpu.memory_space<vmem>>, vector<8x16xf32>
    %c360 = arith.constant 360 : index
    %c19_118 = arith.constant 19 : index
    %129 = vector.load %arg10[%c360, %c19_118] : memref<480x128xf32, #tpu.memory_space<vmem>>, vector<8x16xf32>
    tpu.vector_store %arg10[%c360, %c19_118], %128 {strides = array<i32>} : memref<480x128xf32, #tpu.memory_space<vmem>>, vector<8x16xf32>,
    %c0_119 = arith.constant 0 : index
    %c271 = arith.constant 271 : index
    %130 = vector.load %arg8[%c0_119, %c271] : memref<8x768xf32, #tpu.memory_space<vmem>>, vector<8x16xf32>
    %c368 = arith.constant 368 : index
    %c19_120 = arith.constant 19 : index
    %131 = vector.load %arg10[%c368, %c19_120] : memref<480x128xf32, #tpu.memory_space<vmem>>, vector<8x16xf32>
    tpu.vector_store %arg10[%c368, %c19_120], %130 {strides = array<i32>} : memref<480x128xf32, #tpu.memory_space<vmem>>, vector<8x16xf32>,
    %c0_121 = arith.constant 0 : index
    %c272_122 = arith.constant 272 : index
    %132 = vector.load %arg8[%c0_121, %c272_122] : memref<8x768xf32, #tpu.memory_space<vmem>>, vector<8x16xf32>
    %c376 = arith.constant 376 : index
    %c19_123 = arith.constant 19 : index
    %133 = vector.load %arg10[%c376, %c19_123] : memref<480x128xf32, #tpu.memory_space<vmem>>, vector<8x16xf32>
    tpu.vector_store %arg10[%c376, %c19_123], %132 {strides = array<i32>} : memref<480x128xf32, #tpu.memory_space<vmem>>, vector<8x16xf32>,
    %c0_124 = arith.constant 0 : index
    %c288_125 = arith.constant 288 : index
    %134 = vector.load %arg8[%c0_124, %c288_125] : memref<8x768xf32, #tpu.memory_space<vmem>>, vector<8x16xf32>
    %c384 = arith.constant 384 : index
    %c19_126 = arith.constant 19 : index
    %135 = vector.load %arg10[%c384, %c19_126] : memref<480x128xf32, #tpu.memory_space<vmem>>, vector<8x16xf32>
    tpu.vector_store %arg10[%c384, %c19_126], %134 {strides = array<i32>} : memref<480x128xf32, #tpu.memory_space<vmem>>, vector<8x16xf32>,
    %c0_127 = arith.constant 0 : index
    %c289 = arith.constant 289 : index
    %136 = vector.load %arg8[%c0_127, %c289] : memref<8x768xf32, #tpu.memory_space<vmem>>, vector<8x16xf32>
    %c392 = arith.constant 392 : index
    %c19_128 = arith.constant 19 : index
    %137 = vector.load %arg10[%c392, %c19_128] : memref<480x128xf32, #tpu.memory_space<vmem>>, vector<8x16xf32>
    tpu.vector_store %arg10[%c392, %c19_128], %136 {strides = array<i32>} : memref<480x128xf32, #tpu.memory_space<vmem>>, vector<8x16xf32>,
    %c0_129 = arith.constant 0 : index
    %c290 = arith.constant 290 : index
    %138 = vector.load %arg8[%c0_129, %c290] : memref<8x768xf32, #tpu.memory_space<vmem>>, vector<8x16xf32>
    %c400 = arith.constant 400 : index
    %c19_130 = arith.constant 19 : index
    %139 = vector.load %arg10[%c400, %c19_130] : memref<480x128xf32, #tpu.memory_space<vmem>>, vector<8x16xf32>
    tpu.vector_store %arg10[%c400, %c19_130], %138 {strides = array<i32>} : memref<480x128xf32, #tpu.memory_space<vmem>>, vector<8x16xf32>,
    %c0_131 = arith.constant 0 : index
    %c306 = arith.constant 306 : index
    %140 = vector.load %arg8[%c0_131, %c306] : memref<8x768xf32, #tpu.memory_space<vmem>>, vector<8x16xf32>
    %c408 = arith.constant 408 : index
    %c19_132 = arith.constant 19 : index
    %141 = vector.load %arg10[%c408, %c19_132] : memref<480x128xf32, #tpu.memory_space<vmem>>, vector<8x16xf32>
    tpu.vector_store %arg10[%c408, %c19_132], %140 {strides = array<i32>} : memref<480x128xf32, #tpu.memory_space<vmem>>, vector<8x16xf32>,
    %c0_133 = arith.constant 0 : index
    %c307 = arith.constant 307 : index
    %142 = vector.load %arg8[%c0_133, %c307] : memref<8x768xf32, #tpu.memory_space<vmem>>, vector<8x16xf32>
    %c416 = arith.constant 416 : index
    %c19_134 = arith.constant 19 : index
    %143 = vector.load %arg10[%c416, %c19_134] : memref<480x128xf32, #tpu.memory_space<vmem>>, vector<8x16xf32>
    tpu.vector_store %arg10[%c416, %c19_134], %142 {strides = array<i32>} : memref<480x128xf32, #tpu.memory_space<vmem>>, vector<8x16xf32>,
    %c0_135 = arith.constant 0 : index
    %c308 = arith.constant 308 : index
    %144 = vector.load %arg8[%c0_135, %c308] : memref<8x768xf32, #tpu.memory_space<vmem>>, vector<8x16xf32>
    %c424 = arith.constant 424 : index
    %c19_136 = arith.constant 19 : index
    %145 = vector.load %arg10[%c424, %c19_136] : memref<480x128xf32, #tpu.memory_space<vmem>>, vector<8x16xf32>
    tpu.vector_store %arg10[%c424, %c19_136], %144 {strides = array<i32>} : memref<480x128xf32, #tpu.memory_space<vmem>>, vector<8x16xf32>,
    %c0_137 = arith.constant 0 : index
    %c324 = arith.constant 324 : index
    %146 = vector.load %arg8[%c0_137, %c324] : memref<8x768xf32, #tpu.memory_space<vmem>>, vector<8x16xf32>
    %c432 = arith.constant 432 : index
    %c19_138 = arith.constant 19 : index
    %147 = vector.load %arg10[%c432, %c19_138] : memref<480x128xf32, #tpu.memory_space<vmem>>, vector<8x16xf32>
    tpu.vector_store %arg10[%c432, %c19_138], %146 {strides = array<i32>} : memref<480x128xf32, #tpu.memory_space<vmem>>, vector<8x16xf32>,
    %c0_139 = arith.constant 0 : index
    %c325 = arith.constant 325 : index
    %148 = vector.load %arg8[%c0_139, %c325] : memref<8x768xf32, #tpu.memory_space<vmem>>, vector<8x16xf32>
    %c440 = arith.constant 440 : index
    %c19_140 = arith.constant 19 : index
    %149 = vector.load %arg10[%c440, %c19_140] : memref<480x128xf32, #tpu.memory_space<vmem>>, vector<8x16xf32>
    tpu.vector_store %arg10[%c440, %c19_140], %148 {strides = array<i32>} : memref<480x128xf32, #tpu.memory_space<vmem>>, vector<8x16xf32>,
    %c0_141 = arith.constant 0 : index
    %c326 = arith.constant 326 : index
    %150 = vector.load %arg8[%c0_141, %c326] : memref<8x768xf32, #tpu.memory_space<vmem>>, vector<8x16xf32>
    %c448 = arith.constant 448 : index
    %c19_142 = arith.constant 19 : index
    %151 = vector.load %arg10[%c448, %c19_142] : memref<480x128xf32, #tpu.memory_space<vmem>>, vector<8x16xf32>
    tpu.vector_store %arg10[%c448, %c19_142], %150 {strides = array<i32>} : memref<480x128xf32, #tpu.memory_space<vmem>>, vector<8x16xf32>,
    %c0_143 = arith.constant 0 : index
    %c342 = arith.constant 342 : index
    %152 = vector.load %arg8[%c0_143, %c342] : memref<8x768xf32, #tpu.memory_space<vmem>>, vector<8x16xf32>
    %c456 = arith.constant 456 : index
    %c19_144 = arith.constant 19 : index
    %153 = vector.load %arg10[%c456, %c19_144] : memref<480x128xf32, #tpu.memory_space<vmem>>, vector<8x16xf32>
    tpu.vector_store %arg10[%c456, %c19_144], %152 {strides = array<i32>} : memref<480x128xf32, #tpu.memory_space<vmem>>, vector<8x16xf32>,
    %c0_145 = arith.constant 0 : index
    %c343 = arith.constant 343 : index
    %154 = vector.load %arg8[%c0_145, %c343] : memref<8x768xf32, #tpu.memory_space<vmem>>, vector<8x16xf32>
    %c464 = arith.constant 464 : index
    %c19_146 = arith.constant 19 : index
    %155 = vector.load %arg10[%c464, %c19_146] : memref<480x128xf32, #tpu.memory_space<vmem>>, vector<8x16xf32>
    tpu.vector_store %arg10[%c464, %c19_146], %154 {strides = array<i32>} : memref<480x128xf32, #tpu.memory_space<vmem>>, vector<8x16xf32>,
    %c0_147 = arith.constant 0 : index
    %c344_148 = arith.constant 344 : index
    %156 = vector.load %arg8[%c0_147, %c344_148] : memref<8x768xf32, #tpu.memory_space<vmem>>, vector<8x16xf32>
    %c472 = arith.constant 472 : index
    %c19_149 = arith.constant 19 : index
    %157 = vector.load %arg10[%c472, %c19_149] : memref<480x128xf32, #tpu.memory_space<vmem>>, vector<8x16xf32>
    tpu.vector_store %arg10[%c472, %c19_149], %156 {strides = array<i32>} : memref<480x128xf32, #tpu.memory_space<vmem>>, vector<8x16xf32>,
    %c0_150 = arith.constant 0 : index
    %c360_151 = arith.constant 360 : index
    %158 = vector.load %arg8[%c0_150, %c360_151] : memref<8x768xf32, #tpu.memory_space<vmem>>, vector<8x16xf32>
    %c0_152 = arith.constant 0 : index
    %c73_153 = arith.constant 73 : index
    %159 = vector.load %arg10[%c0_152, %c73_153] : memref<480x128xf32, #tpu.memory_space<vmem>>, vector<8x16xf32>
    tpu.vector_store %arg10[%c0_152, %c73_153], %158 {strides = array<i32>} : memref<480x128xf32, #tpu.memory_space<vmem>>, vector<8x16xf32>,
    %c0_154 = arith.constant 0 : index
    %c361 = arith.constant 361 : index
    %160 = vector.load %arg8[%c0_154, %c361] : memref<8x768xf32, #tpu.memory_space<vmem>>, vector<8x16xf32>
    %c8_155 = arith.constant 8 : index
    %c73_156 = arith.constant 73 : index
    %161 = vector.load %arg10[%c8_155, %c73_156] : memref<480x128xf32, #tpu.memory_space<vmem>>, vector<8x16xf32>
    tpu.vector_store %arg10[%c8_155, %c73_156], %160 {strides = array<i32>} : memref<480x128xf32, #tpu.memory_space<vmem>>, vector<8x16xf32>,
    %c0_157 = arith.constant 0 : index
    %c362 = arith.constant 362 : index
    %162 = vector.load %arg8[%c0_157, %c362] : memref<8x768xf32, #tpu.memory_space<vmem>>, vector<8x16xf32>
    %c16_158 = arith.constant 16 : index
    %c73_159 = arith.constant 73 : index
    %163 = vector.load %arg10[%c16_158, %c73_159] : memref<480x128xf32, #tpu.memory_space<vmem>>, vector<8x16xf32>
    tpu.vector_store %arg10[%c16_158, %c73_159], %162 {strides = array<i32>} : memref<480x128xf32, #tpu.memory_space<vmem>>, vector<8x16xf32>,
    %c0_160 = arith.constant 0 : index
    %c378 = arith.constant 378 : index
    %164 = vector.load %arg8[%c0_160, %c378] : memref<8x768xf32, #tpu.memory_space<vmem>>, vector<8x16xf32>
    %c24_161 = arith.constant 24 : index
    %c73_162 = arith.constant 73 : index
    %165 = vector.load %arg10[%c24_161, %c73_162] : memref<480x128xf32, #tpu.memory_space<vmem>>, vector<8x16xf32>
    tpu.vector_store %arg10[%c24_161, %c73_162], %164 {strides = array<i32>} : memref<480x128xf32, #tpu.memory_space<vmem>>, vector<8x16xf32>,
    %c0_163 = arith.constant 0 : index
    %c379 = arith.constant 379 : index
    %166 = vector.load %arg8[%c0_163, %c379] : memref<8x768xf32, #tpu.memory_space<vmem>>, vector<8x16xf32>
    %c32_164 = arith.constant 32 : index
    %c73_165 = arith.constant 73 : index
    %167 = vector.load %arg10[%c32_164, %c73_165] : memref<480x128xf32, #tpu.memory_space<vmem>>, vector<8x16xf32>
    tpu.vector_store %arg10[%c32_164, %c73_165], %166 {strides = array<i32>} : memref<480x128xf32, #tpu.memory_space<vmem>>, vector<8x16xf32>,
    %c0_166 = arith.constant 0 : index
    %c380 = arith.constant 380 : index
    %168 = vector.load %arg8[%c0_166, %c380] : memref<8x768xf32, #tpu.memory_space<vmem>>, vector<8x16xf32>
    %c40_167 = arith.constant 40 : index
    %c73_168 = arith.constant 73 : index
    %169 = vector.load %arg10[%c40_167, %c73_168] : memref<480x128xf32, #tpu.memory_space<vmem>>, vector<8x16xf32>
    tpu.vector_store %arg10[%c40_167, %c73_168], %168 {strides = array<i32>} : memref<480x128xf32, #tpu.memory_space<vmem>>, vector<8x16xf32>,
    %c0_169 = arith.constant 0 : index
    %c396 = arith.constant 396 : index
    %170 = vector.load %arg8[%c0_169, %c396] : memref<8x768xf32, #tpu.memory_space<vmem>>, vector<8x16xf32>
    %c48_170 = arith.constant 48 : index
    %c73_171 = arith.constant 73 : index
    %171 = vector.load %arg10[%c48_170, %c73_171] : memref<480x128xf32, #tpu.memory_space<vmem>>, vector<8x16xf32>
    tpu.vector_store %arg10[%c48_170, %c73_171], %170 {strides = array<i32>} : memref<480x128xf32, #tpu.memory_space<vmem>>, vector<8x16xf32>,
    %c0_172 = arith.constant 0 : index
    %c397 = arith.constant 397 : index
    %172 = vector.load %arg8[%c0_172, %c397] : memref<8x768xf32, #tpu.memory_space<vmem>>, vector<8x16xf32>
    %c56_173 = arith.constant 56 : index
    %c73_174 = arith.constant 73 : index
    %173 = vector.load %arg10[%c56_173, %c73_174] : memref<480x128xf32, #tpu.memory_space<vmem>>, vector<8x16xf32>
    tpu.vector_store %arg10[%c56_173, %c73_174], %172 {strides = array<i32>} : memref<480x128xf32, #tpu.memory_space<vmem>>, vector<8x16xf32>,
    %c0_175 = arith.constant 0 : index
    %c398 = arith.constant 398 : index
    %174 = vector.load %arg8[%c0_175, %c398] : memref<8x768xf32, #tpu.memory_space<vmem>>, vector<8x16xf32>
    %c64_176 = arith.constant 64 : index
    %c73_177 = arith.constant 73 : index
    %175 = vector.load %arg10[%c64_176, %c73_177] : memref<480x128xf32, #tpu.memory_space<vmem>>, vector<8x16xf32>
    tpu.vector_store %arg10[%c64_176, %c73_177], %174 {strides = array<i32>} : memref<480x128xf32, #tpu.memory_space<vmem>>, vector<8x16xf32>,
    %c0_178 = arith.constant 0 : index
    %c414 = arith.constant 414 : index
    %176 = vector.load %arg8[%c0_178, %c414] : memref<8x768xf32, #tpu.memory_space<vmem>>, vector<8x16xf32>
    %c72_179 = arith.constant 72 : index
    %c73_180 = arith.constant 73 : index
    %177 = vector.load %arg10[%c72_179, %c73_180] : memref<480x128xf32, #tpu.memory_space<vmem>>, vector<8x16xf32>
    tpu.vector_store %arg10[%c72_179, %c73_180], %176 {strides = array<i32>} : memref<480x128xf32, #tpu.memory_space<vmem>>, vector<8x16xf32>,
    %c0_181 = arith.constant 0 : index
    %c415 = arith.constant 415 : index
    %178 = vector.load %arg8[%c0_181, %c415] : memref<8x768xf32, #tpu.memory_space<vmem>>, vector<8x16xf32>
    %c80_182 = arith.constant 80 : index
    %c73_183 = arith.constant 73 : index
    %179 = vector.load %arg10[%c80_182, %c73_183] : memref<480x128xf32, #tpu.memory_space<vmem>>, vector<8x16xf32>
    tpu.vector_store %arg10[%c80_182, %c73_183], %178 {strides = array<i32>} : memref<480x128xf32, #tpu.memory_space<vmem>>, vector<8x16xf32>,
    %c0_184 = arith.constant 0 : index
    %c416_185 = arith.constant 416 : index
    %180 = vector.load %arg8[%c0_184, %c416_185] : memref<8x768xf32, #tpu.memory_space<vmem>>, vector<8x16xf32>
    %c88_186 = arith.constant 88 : index
    %c73_187 = arith.constant 73 : index
    %181 = vector.load %arg10[%c88_186, %c73_187] : memref<480x128xf32, #tpu.memory_space<vmem>>, vector<8x16xf32>
    tpu.vector_store %arg10[%c88_186, %c73_187], %180 {strides = array<i32>} : memref<480x128xf32, #tpu.memory_space<vmem>>, vector<8x16xf32>,
    %c0_188 = arith.constant 0 : index
    %c432_189 = arith.constant 432 : index
    %182 = vector.load %arg8[%c0_188, %c432_189] : memref<8x768xf32, #tpu.memory_space<vmem>>, vector<8x16xf32>
    %c96_190 = arith.constant 96 : index
    %c73_191 = arith.constant 73 : index
    %183 = vector.load %arg10[%c96_190, %c73_191] : memref<480x128xf32, #tpu.memory_space<vmem>>, vector<8x16xf32>
    tpu.vector_store %arg10[%c96_190, %c73_191], %182 {strides = array<i32>} : memref<480x128xf32, #tpu.memory_space<vmem>>, vector<8x16xf32>,
    %c0_192 = arith.constant 0 : index
    %c433 = arith.constant 433 : index
    %184 = vector.load %arg8[%c0_192, %c433] : memref<8x768xf32, #tpu.memory_space<vmem>>, vector<8x16xf32>
    %c104_193 = arith.constant 104 : index
    %c73_194 = arith.constant 73 : index
    %185 = vector.load %arg10[%c104_193, %c73_194] : memref<480x128xf32, #tpu.memory_space<vmem>>, vector<8x16xf32>
    tpu.vector_store %arg10[%c104_193, %c73_194], %184 {strides = array<i32>} : memref<480x128xf32, #tpu.memory_space<vmem>>, vector<8x16xf32>,
    %c0_195 = arith.constant 0 : index
    %c434 = arith.constant 434 : index
    %186 = vector.load %arg8[%c0_195, %c434] : memref<8x768xf32, #tpu.memory_space<vmem>>, vector<8x16xf32>
    %c112_196 = arith.constant 112 : index
    %c73_197 = arith.constant 73 : index
    %187 = vector.load %arg10[%c112_196, %c73_197] : memref<480x128xf32, #tpu.memory_space<vmem>>, vector<8x16xf32>
    tpu.vector_store %arg10[%c112_196, %c73_197], %186 {strides = array<i32>} : memref<480x128xf32, #tpu.memory_space<vmem>>, vector<8x16xf32>,
    %c0_198 = arith.constant 0 : index
    %c450 = arith.constant 450 : index
    %188 = vector.load %arg8[%c0_198, %c450] : memref<8x768xf32, #tpu.memory_space<vmem>>, vector<8x16xf32>
    %c120_199 = arith.constant 120 : index
    %c73_200 = arith.constant 73 : index
    %189 = vector.load %arg10[%c120_199, %c73_200] : memref<480x128xf32, #tpu.memory_space<vmem>>, vector<8x16xf32>
    tpu.vector_store %arg10[%c120_199, %c73_200], %188 {strides = array<i32>} : memref<480x128xf32, #tpu.memory_space<vmem>>, vector<8x16xf32>,
    %c0_201 = arith.constant 0 : index
    %c451 = arith.constant 451 : index
    %190 = vector.load %arg8[%c0_201, %c451] : memref<8x768xf32, #tpu.memory_space<vmem>>, vector<8x16xf32>
    %c128_202 = arith.constant 128 : index
    %c73_203 = arith.constant 73 : index
    %191 = vector.load %arg10[%c128_202, %c73_203] : memref<480x128xf32, #tpu.memory_space<vmem>>, vector<8x16xf32>
    tpu.vector_store %arg10[%c128_202, %c73_203], %190 {strides = array<i32>} : memref<480x128xf32, #tpu.memory_space<vmem>>, vector<8x16xf32>,
    %c0_204 = arith.constant 0 : index
    %c452 = arith.constant 452 : index
    %192 = vector.load %arg8[%c0_204, %c452] : memref<8x768xf32, #tpu.memory_space<vmem>>, vector<8x16xf32>
    %c136_205 = arith.constant 136 : index
    %c73_206 = arith.constant 73 : index
    %193 = vector.load %arg10[%c136_205, %c73_206] : memref<480x128xf32, #tpu.memory_space<vmem>>, vector<8x16xf32>
    tpu.vector_store %arg10[%c136_205, %c73_206], %192 {strides = array<i32>} : memref<480x128xf32, #tpu.memory_space<vmem>>, vector<8x16xf32>,
    %c0_207 = arith.constant 0 : index
    %c468 = arith.constant 468 : index
    %194 = vector.load %arg8[%c0_207, %c468] : memref<8x768xf32, #tpu.memory_space<vmem>>, vector<8x16xf32>
    %c144_208 = arith.constant 144 : index
    %c73_209 = arith.constant 73 : index
    %195 = vector.load %arg10[%c144_208, %c73_209] : memref<480x128xf32, #tpu.memory_space<vmem>>, vector<8x16xf32>
    tpu.vector_store %arg10[%c144_208, %c73_209], %194 {strides = array<i32>} : memref<480x128xf32, #tpu.memory_space<vmem>>, vector<8x16xf32>,
    %c0_210 = arith.constant 0 : index
    %c469 = arith.constant 469 : index
    %196 = vector.load %arg8[%c0_210, %c469] : memref<8x768xf32, #tpu.memory_space<vmem>>, vector<8x16xf32>
    %c152_211 = arith.constant 152 : index
    %c73_212 = arith.constant 73 : index
    %197 = vector.load %arg10[%c152_211, %c73_212] : memref<480x128xf32, #tpu.memory_space<vmem>>, vector<8x16xf32>
    tpu.vector_store %arg10[%c152_211, %c73_212], %196 {strides = array<i32>} : memref<480x128xf32, #tpu.memory_space<vmem>>, vector<8x16xf32>,
    %c0_213 = arith.constant 0 : index
    %c470 = arith.constant 470 : index
    %198 = vector.load %arg8[%c0_213, %c470] : memref<8x768xf32, #tpu.memory_space<vmem>>, vector<8x16xf32>
    %c160_214 = arith.constant 160 : index
    %c73_215 = arith.constant 73 : index
    %199 = vector.load %arg10[%c160_214, %c73_215] : memref<480x128xf32, #tpu.memory_space<vmem>>, vector<8x16xf32>
    tpu.vector_store %arg10[%c160_214, %c73_215], %198 {strides = array<i32>} : memref<480x128xf32, #tpu.memory_space<vmem>>, vector<8x16xf32>,
    %c0_216 = arith.constant 0 : index
    %c486 = arith.constant 486 : index
    %200 = vector.load %arg8[%c0_216, %c486] : memref<8x768xf32, #tpu.memory_space<vmem>>, vector<8x16xf32>
    %c168_217 = arith.constant 168 : index
    %c73_218 = arith.constant 73 : index
    %201 = vector.load %arg10[%c168_217, %c73_218] : memref<480x128xf32, #tpu.memory_space<vmem>>, vector<8x16xf32>
    tpu.vector_store %arg10[%c168_217, %c73_218], %200 {strides = array<i32>} : memref<480x128xf32, #tpu.memory_space<vmem>>, vector<8x16xf32>,
    %c0_219 = arith.constant 0 : index
    %c487 = arith.constant 487 : index
    %202 = vector.load %arg8[%c0_219, %c487] : memref<8x768xf32, #tpu.memory_space<vmem>>, vector<8x16xf32>
    %c176_220 = arith.constant 176 : index
    %c73_221 = arith.constant 73 : index
    %203 = vector.load %arg10[%c176_220, %c73_221] : memref<480x128xf32, #tpu.memory_space<vmem>>, vector<8x16xf32>
    tpu.vector_store %arg10[%c176_220, %c73_221], %202 {strides = array<i32>} : memref<480x128xf32, #tpu.memory_space<vmem>>, vector<8x16xf32>,
    %c0_222 = arith.constant 0 : index
    %c488 = arith.constant 488 : index
    %204 = vector.load %arg8[%c0_222, %c488] : memref<8x768xf32, #tpu.memory_space<vmem>>, vector<8x16xf32>
    %c184_223 = arith.constant 184 : index
    %c73_224 = arith.constant 73 : index
    %205 = vector.load %arg10[%c184_223, %c73_224] : memref<480x128xf32, #tpu.memory_space<vmem>>, vector<8x16xf32>
    tpu.vector_store %arg10[%c184_223, %c73_224], %204 {strides = array<i32>} : memref<480x128xf32, #tpu.memory_space<vmem>>, vector<8x16xf32>,
    %c0_225 = arith.constant 0 : index
    %c504 = arith.constant 504 : index
    %206 = vector.load %arg8[%c0_225, %c504] : memref<8x768xf32, #tpu.memory_space<vmem>>, vector<8x16xf32>
    %c192_226 = arith.constant 192 : index
    %c73_227 = arith.constant 73 : index
    %207 = vector.load %arg10[%c192_226, %c73_227] : memref<480x128xf32, #tpu.memory_space<vmem>>, vector<8x16xf32>
    tpu.vector_store %arg10[%c192_226, %c73_227], %206 {strides = array<i32>} : memref<480x128xf32, #tpu.memory_space<vmem>>, vector<8x16xf32>,
    %c0_228 = arith.constant 0 : index
    %c505 = arith.constant 505 : index
    %208 = vector.load %arg8[%c0_228, %c505] : memref<8x768xf32, #tpu.memory_space<vmem>>, vector<8x16xf32>
    %c200_229 = arith.constant 200 : index
    %c73_230 = arith.constant 73 : index
    %209 = vector.load %arg10[%c200_229, %c73_230] : memref<480x128xf32, #tpu.memory_space<vmem>>, vector<8x16xf32>
    tpu.vector_store %arg10[%c200_229, %c73_230], %208 {strides = array<i32>} : memref<480x128xf32, #tpu.memory_space<vmem>>, vector<8x16xf32>,
    %c0_231 = arith.constant 0 : index
    %c506 = arith.constant 506 : index
    %210 = vector.load %arg8[%c0_231, %c506] : memref<8x768xf32, #tpu.memory_space<vmem>>, vector<8x16xf32>
    %c208_232 = arith.constant 208 : index
    %c73_233 = arith.constant 73 : index
    %211 = vector.load %arg10[%c208_232, %c73_233] : memref<480x128xf32, #tpu.memory_space<vmem>>, vector<8x16xf32>
    tpu.vector_store %arg10[%c208_232, %c73_233], %210 {strides = array<i32>} : memref<480x128xf32, #tpu.memory_space<vmem>>, vector<8x16xf32>,
    %c0_234 = arith.constant 0 : index
    %c522 = arith.constant 522 : index
    %212 = vector.load %arg8[%c0_234, %c522] : memref<8x768xf32, #tpu.memory_space<vmem>>, vector<8x16xf32>
    %c216_235 = arith.constant 216 : index
    %c73_236 = arith.constant 73 : index
    %213 = vector.load %arg10[%c216_235, %c73_236] : memref<480x128xf32, #tpu.memory_space<vmem>>, vector<8x16xf32>
    tpu.vector_store %arg10[%c216_235, %c73_236], %212 {strides = array<i32>} : memref<480x128xf32, #tpu.memory_space<vmem>>, vector<8x16xf32>,
    %c0_237 = arith.constant 0 : index
    %c523 = arith.constant 523 : index
    %214 = vector.load %arg8[%c0_237, %c523] : memref<8x768xf32, #tpu.memory_space<vmem>>, vector<8x16xf32>
    %c224_238 = arith.constant 224 : index
    %c73_239 = arith.constant 73 : index
    %215 = vector.load %arg10[%c224_238, %c73_239] : memref<480x128xf32, #tpu.memory_space<vmem>>, vector<8x16xf32>
    tpu.vector_store %arg10[%c224_238, %c73_239], %214 {strides = array<i32>} : memref<480x128xf32, #tpu.memory_space<vmem>>, vector<8x16xf32>,
    %c0_240 = arith.constant 0 : index
    %c524 = arith.constant 524 : index
    %216 = vector.load %arg8[%c0_240, %c524] : memref<8x768xf32, #tpu.memory_space<vmem>>, vector<8x16xf32>
    %c232_241 = arith.constant 232 : index
    %c73_242 = arith.constant 73 : index
    %217 = vector.load %arg10[%c232_241, %c73_242] : memref<480x128xf32, #tpu.memory_space<vmem>>, vector<8x16xf32>
    tpu.vector_store %arg10[%c232_241, %c73_242], %216 {strides = array<i32>} : memref<480x128xf32, #tpu.memory_space<vmem>>, vector<8x16xf32>,
    %c0_243 = arith.constant 0 : index
    %c540 = arith.constant 540 : index
    %218 = vector.load %arg8[%c0_243, %c540] : memref<8x768xf32, #tpu.memory_space<vmem>>, vector<8x16xf32>
    %c240_244 = arith.constant 240 : index
    %c73_245 = arith.constant 73 : index
    %219 = vector.load %arg10[%c240_244, %c73_245] : memref<480x128xf32, #tpu.memory_space<vmem>>, vector<8x16xf32>
    tpu.vector_store %arg10[%c240_244, %c73_245], %218 {strides = array<i32>} : memref<480x128xf32, #tpu.memory_space<vmem>>, vector<8x16xf32>,
    %c0_246 = arith.constant 0 : index
    %c541 = arith.constant 541 : index
    %220 = vector.load %arg8[%c0_246, %c541] : memref<8x768xf32, #tpu.memory_space<vmem>>, vector<8x16xf32>
    %c248_247 = arith.constant 248 : index
    %c73_248 = arith.constant 73 : index
    %221 = vector.load %arg10[%c248_247, %c73_248] : memref<480x128xf32, #tpu.memory_space<vmem>>, vector<8x16xf32>
    tpu.vector_store %arg10[%c248_247, %c73_248], %220 {strides = array<i32>} : memref<480x128xf32, #tpu.memory_space<vmem>>, vector<8x16xf32>,
    %c0_249 = arith.constant 0 : index
    %c542 = arith.constant 542 : index
    %222 = vector.load %arg8[%c0_249, %c542] : memref<8x768xf32, #tpu.memory_space<vmem>>, vector<8x16xf32>
    %c256_250 = arith.constant 256 : index
    %c73_251 = arith.constant 73 : index
    %223 = vector.load %arg10[%c256_250, %c73_251] : memref<480x128xf32, #tpu.memory_space<vmem>>, vector<8x16xf32>
    tpu.vector_store %arg10[%c256_250, %c73_251], %222 {strides = array<i32>} : memref<480x128xf32, #tpu.memory_space<vmem>>, vector<8x16xf32>,
    %c0_252 = arith.constant 0 : index
    %c558 = arith.constant 558 : index
    %224 = vector.load %arg8[%c0_252, %c558] : memref<8x768xf32, #tpu.memory_space<vmem>>, vector<8x16xf32>
    %c264_253 = arith.constant 264 : index
    %c73_254 = arith.constant 73 : index
    %225 = vector.load %arg10[%c264_253, %c73_254] : memref<480x128xf32, #tpu.memory_space<vmem>>, vector<8x16xf32>
    tpu.vector_store %arg10[%c264_253, %c73_254], %224 {strides = array<i32>} : memref<480x128xf32, #tpu.memory_space<vmem>>, vector<8x16xf32>,
    %c0_255 = arith.constant 0 : index
    %c559 = arith.constant 559 : index
    %226 = vector.load %arg8[%c0_255, %c559] : memref<8x768xf32, #tpu.memory_space<vmem>>, vector<8x16xf32>
    %c272_256 = arith.constant 272 : index
    %c73_257 = arith.constant 73 : index
    %227 = vector.load %arg10[%c272_256, %c73_257] : memref<480x128xf32, #tpu.memory_space<vmem>>, vector<8x16xf32>
    tpu.vector_store %arg10[%c272_256, %c73_257], %226 {strides = array<i32>} : memref<480x128xf32, #tpu.memory_space<vmem>>, vector<8x16xf32>,
    %c0_258 = arith.constant 0 : index
    %c560 = arith.constant 560 : index
    %228 = vector.load %arg8[%c0_258, %c560] : memref<8x768xf32, #tpu.memory_space<vmem>>, vector<8x16xf32>
    %c280_259 = arith.constant 280 : index
    %c73_260 = arith.constant 73 : index
    %229 = vector.load %arg10[%c280_259, %c73_260] : memref<480x128xf32, #tpu.memory_space<vmem>>, vector<8x16xf32>
    tpu.vector_store %arg10[%c280_259, %c73_260], %228 {strides = array<i32>} : memref<480x128xf32, #tpu.memory_space<vmem>>, vector<8x16xf32>,
    %c0_261 = arith.constant 0 : index
    %c576 = arith.constant 576 : index
    %230 = vector.load %arg8[%c0_261, %c576] : memref<8x768xf32, #tpu.memory_space<vmem>>, vector<8x16xf32>
    %c288_262 = arith.constant 288 : index
    %c73_263 = arith.constant 73 : index
    %231 = vector.load %arg10[%c288_262, %c73_263] : memref<480x128xf32, #tpu.memory_space<vmem>>, vector<8x16xf32>
    tpu.vector_store %arg10[%c288_262, %c73_263], %230 {strides = array<i32>} : memref<480x128xf32, #tpu.memory_space<vmem>>, vector<8x16xf32>,
    %c0_264 = arith.constant 0 : index
    %c577 = arith.constant 577 : index
    %232 = vector.load %arg8[%c0_264, %c577] : memref<8x768xf32, #tpu.memory_space<vmem>>, vector<8x16xf32>
    %c296_265 = arith.constant 296 : index
    %c73_266 = arith.constant 73 : index
    %233 = vector.load %arg10[%c296_265, %c73_266] : memref<480x128xf32, #tpu.memory_space<vmem>>, vector<8x16xf32>
    tpu.vector_store %arg10[%c296_265, %c73_266], %232 {strides = array<i32>} : memref<480x128xf32, #tpu.memory_space<vmem>>, vector<8x16xf32>,
    %c0_267 = arith.constant 0 : index
    %c578 = arith.constant 578 : index
    %234 = vector.load %arg8[%c0_267, %c578] : memref<8x768xf32, #tpu.memory_space<vmem>>, vector<8x16xf32>
    %c304_268 = arith.constant 304 : index
    %c73_269 = arith.constant 73 : index
    %235 = vector.load %arg10[%c304_268, %c73_269] : memref<480x128xf32, #tpu.memory_space<vmem>>, vector<8x16xf32>
    tpu.vector_store %arg10[%c304_268, %c73_269], %234 {strides = array<i32>} : memref<480x128xf32, #tpu.memory_space<vmem>>, vector<8x16xf32>,
    %c0_270 = arith.constant 0 : index
    %c594 = arith.constant 594 : index
    %236 = vector.load %arg8[%c0_270, %c594] : memref<8x768xf32, #tpu.memory_space<vmem>>, vector<8x16xf32>
    %c312_271 = arith.constant 312 : index
    %c73_272 = arith.constant 73 : index
    %237 = vector.load %arg10[%c312_271, %c73_272] : memref<480x128xf32, #tpu.memory_space<vmem>>, vector<8x16xf32>
    tpu.vector_store %arg10[%c312_271, %c73_272], %236 {strides = array<i32>} : memref<480x128xf32, #tpu.memory_space<vmem>>, vector<8x16xf32>,
    %c0_273 = arith.constant 0 : index
    %c595 = arith.constant 595 : index
    %238 = vector.load %arg8[%c0_273, %c595] : memref<8x768xf32, #tpu.memory_space<vmem>>, vector<8x16xf32>
    %c320_274 = arith.constant 320 : index
    %c73_275 = arith.constant 73 : index
    %239 = vector.load %arg10[%c320_274, %c73_275] : memref<480x128xf32, #tpu.memory_space<vmem>>, vector<8x16xf32>
    tpu.vector_store %arg10[%c320_274, %c73_275], %238 {strides = array<i32>} : memref<480x128xf32, #tpu.memory_space<vmem>>, vector<8x16xf32>,
    %c0_276 = arith.constant 0 : index
    %c596 = arith.constant 596 : index
    %240 = vector.load %arg8[%c0_276, %c596] : memref<8x768xf32, #tpu.memory_space<vmem>>, vector<8x16xf32>
    %c328_277 = arith.constant 328 : index
    %c73_278 = arith.constant 73 : index
    %241 = vector.load %arg10[%c328_277, %c73_278] : memref<480x128xf32, #tpu.memory_space<vmem>>, vector<8x16xf32>
    tpu.vector_store %arg10[%c328_277, %c73_278], %240 {strides = array<i32>} : memref<480x128xf32, #tpu.memory_space<vmem>>, vector<8x16xf32>,
    %c0_279 = arith.constant 0 : index
    %c612 = arith.constant 612 : index
    %242 = vector.load %arg8[%c0_279, %c612] : memref<8x768xf32, #tpu.memory_space<vmem>>, vector<8x16xf32>
    %c336_280 = arith.constant 336 : index
    %c73_281 = arith.constant 73 : index
    %243 = vector.load %arg10[%c336_280, %c73_281] : memref<480x128xf32, #tpu.memory_space<vmem>>, vector<8x16xf32>
    tpu.vector_store %arg10[%c336_280, %c73_281], %242 {strides = array<i32>} : memref<480x128xf32, #tpu.memory_space<vmem>>, vector<8x16xf32>,
    %c0_282 = arith.constant 0 : index
    %c613 = arith.constant 613 : index
    %244 = vector.load %arg8[%c0_282, %c613] : memref<8x768xf32, #tpu.memory_space<vmem>>, vector<8x16xf32>
    %c344_283 = arith.constant 344 : index
    %c73_284 = arith.constant 73 : index
    %245 = vector.load %arg10[%c344_283, %c73_284] : memref<480x128xf32, #tpu.memory_space<vmem>>, vector<8x16xf32>
    tpu.vector_store %arg10[%c344_283, %c73_284], %244 {strides = array<i32>} : memref<480x128xf32, #tpu.memory_space<vmem>>, vector<8x16xf32>,
    %c0_285 = arith.constant 0 : index
    %c614 = arith.constant 614 : index
    %246 = vector.load %arg8[%c0_285, %c614] : memref<8x768xf32, #tpu.memory_space<vmem>>, vector<8x16xf32>
    %c352_286 = arith.constant 352 : index
    %c73_287 = arith.constant 73 : index
    %247 = vector.load %arg10[%c352_286, %c73_287] : memref<480x128xf32, #tpu.memory_space<vmem>>, vector<8x16xf32>
    tpu.vector_store %arg10[%c352_286, %c73_287], %246 {strides = array<i32>} : memref<480x128xf32, #tpu.memory_space<vmem>>, vector<8x16xf32>,
    %c0_288 = arith.constant 0 : index
    %c630 = arith.constant 630 : index
    %248 = vector.load %arg8[%c0_288, %c630] : memref<8x768xf32, #tpu.memory_space<vmem>>, vector<8x16xf32>
    %c360_289 = arith.constant 360 : index
    %c73_290 = arith.constant 73 : index
    %249 = vector.load %arg10[%c360_289, %c73_290] : memref<480x128xf32, #tpu.memory_space<vmem>>, vector<8x16xf32>
    tpu.vector_store %arg10[%c360_289, %c73_290], %248 {strides = array<i32>} : memref<480x128xf32, #tpu.memory_space<vmem>>, vector<8x16xf32>,
    %c0_291 = arith.constant 0 : index
    %c631 = arith.constant 631 : index
    %250 = vector.load %arg8[%c0_291, %c631] : memref<8x768xf32, #tpu.memory_space<vmem>>, vector<8x16xf32>
    %c368_292 = arith.constant 368 : index
    %c73_293 = arith.constant 73 : index
    %251 = vector.load %arg10[%c368_292, %c73_293] : memref<480x128xf32, #tpu.memory_space<vmem>>, vector<8x16xf32>
    tpu.vector_store %arg10[%c368_292, %c73_293], %250 {strides = array<i32>} : memref<480x128xf32, #tpu.memory_space<vmem>>, vector<8x16xf32>,
    %c0_294 = arith.constant 0 : index
    %c632 = arith.constant 632 : index
    %252 = vector.load %arg8[%c0_294, %c632] : memref<8x768xf32, #tpu.memory_space<vmem>>, vector<8x16xf32>
    %c376_295 = arith.constant 376 : index
    %c73_296 = arith.constant 73 : index
    %253 = vector.load %arg10[%c376_295, %c73_296] : memref<480x128xf32, #tpu.memory_space<vmem>>, vector<8x16xf32>
    tpu.vector_store %arg10[%c376_295, %c73_296], %252 {strides = array<i32>} : memref<480x128xf32, #tpu.memory_space<vmem>>, vector<8x16xf32>,
    %c0_297 = arith.constant 0 : index
    %c648 = arith.constant 648 : index
    %254 = vector.load %arg8[%c0_297, %c648] : memref<8x768xf32, #tpu.memory_space<vmem>>, vector<8x16xf32>
    %c384_298 = arith.constant 384 : index
    %c73_299 = arith.constant 73 : index
    %255 = vector.load %arg10[%c384_298, %c73_299] : memref<480x128xf32, #tpu.memory_space<vmem>>, vector<8x16xf32>
    tpu.vector_store %arg10[%c384_298, %c73_299], %254 {strides = array<i32>} : memref<480x128xf32, #tpu.memory_space<vmem>>, vector<8x16xf32>,
    %c0_300 = arith.constant 0 : index
    %c649 = arith.constant 649 : index
    %256 = vector.load %arg8[%c0_300, %c649] : memref<8x768xf32, #tpu.memory_space<vmem>>, vector<8x16xf32>
    %c392_301 = arith.constant 392 : index
    %c73_302 = arith.constant 73 : index
    %257 = vector.load %arg10[%c392_301, %c73_302] : memref<480x128xf32, #tpu.memory_space<vmem>>, vector<8x16xf32>
    tpu.vector_store %arg10[%c392_301, %c73_302], %256 {strides = array<i32>} : memref<480x128xf32, #tpu.memory_space<vmem>>, vector<8x16xf32>,
    %c0_303 = arith.constant 0 : index
    %c650 = arith.constant 650 : index
    %258 = vector.load %arg8[%c0_303, %c650] : memref<8x768xf32, #tpu.memory_space<vmem>>, vector<8x16xf32>
    %c400_304 = arith.constant 400 : index
    %c73_305 = arith.constant 73 : index
    %259 = vector.load %arg10[%c400_304, %c73_305] : memref<480x128xf32, #tpu.memory_space<vmem>>, vector<8x16xf32>
    tpu.vector_store %arg10[%c400_304, %c73_305], %258 {strides = array<i32>} : memref<480x128xf32, #tpu.memory_space<vmem>>, vector<8x16xf32>,
    %c0_306 = arith.constant 0 : index
    %c666 = arith.constant 666 : index
    %260 = vector.load %arg8[%c0_306, %c666] : memref<8x768xf32, #tpu.memory_space<vmem>>, vector<8x16xf32>
    %c408_307 = arith.constant 408 : index
    %c73_308 = arith.constant 73 : index
    %261 = vector.load %arg10[%c408_307, %c73_308] : memref<480x128xf32, #tpu.memory_space<vmem>>, vector<8x16xf32>
    tpu.vector_store %arg10[%c408_307, %c73_308], %260 {strides = array<i32>} : memref<480x128xf32, #tpu.memory_space<vmem>>, vector<8x16xf32>,
    %c0_309 = arith.constant 0 : index
    %c667 = arith.constant 667 : index
    %262 = vector.load %arg8[%c0_309, %c667] : memref<8x768xf32, #tpu.memory_space<vmem>>, vector<8x16xf32>
    %c416_310 = arith.constant 416 : index
    %c73_311 = arith.constant 73 : index
    %263 = vector.load %arg10[%c416_310, %c73_311] : memref<480x128xf32, #tpu.memory_space<vmem>>, vector<8x16xf32>
    tpu.vector_store %arg10[%c416_310, %c73_311], %262 {strides = array<i32>} : memref<480x128xf32, #tpu.memory_space<vmem>>, vector<8x16xf32>,
    %c0_312 = arith.constant 0 : index
    %c668 = arith.constant 668 : index
    %264 = vector.load %arg8[%c0_312, %c668] : memref<8x768xf32, #tpu.memory_space<vmem>>, vector<8x16xf32>
    %c424_313 = arith.constant 424 : index
    %c73_314 = arith.constant 73 : index
    %265 = vector.load %arg10[%c424_313, %c73_314] : memref<480x128xf32, #tpu.memory_space<vmem>>, vector<8x16xf32>
    tpu.vector_store %arg10[%c424_313, %c73_314], %264 {strides = array<i32>} : memref<480x128xf32, #tpu.memory_space<vmem>>, vector<8x16xf32>,
    %c0_315 = arith.constant 0 : index
    %c684 = arith.constant 684 : index
    %266 = vector.load %arg8[%c0_315, %c684] : memref<8x768xf32, #tpu.memory_space<vmem>>, vector<8x16xf32>
    %c432_316 = arith.constant 432 : index
    %c73_317 = arith.constant 73 : index
    %267 = vector.load %arg10[%c432_316, %c73_317] : memref<480x128xf32, #tpu.memory_space<vmem>>, vector<8x16xf32>
    tpu.vector_store %arg10[%c432_316, %c73_317], %266 {strides = array<i32>} : memref<480x128xf32, #tpu.memory_space<vmem>>, vector<8x16xf32>,
    %c0_318 = arith.constant 0 : index
    %c685 = arith.constant 685 : index
    %268 = vector.load %arg8[%c0_318, %c685] : memref<8x768xf32, #tpu.memory_space<vmem>>, vector<8x16xf32>
    %c440_319 = arith.constant 440 : index
    %c73_320 = arith.constant 73 : index
    %269 = vector.load %arg10[%c440_319, %c73_320] : memref<480x128xf32, #tpu.memory_space<vmem>>, vector<8x16xf32>
    tpu.vector_store %arg10[%c440_319, %c73_320], %268 {strides = array<i32>} : memref<480x128xf32, #tpu.memory_space<vmem>>, vector<8x16xf32>,
    %c0_321 = arith.constant 0 : index
    %c686 = arith.constant 686 : index
    %270 = vector.load %arg8[%c0_321, %c686] : memref<8x768xf32, #tpu.memory_space<vmem>>, vector<8x16xf32>
    %c448_322 = arith.constant 448 : index
    %c73_323 = arith.constant 73 : index
    %271 = vector.load %arg10[%c448_322, %c73_323] : memref<480x128xf32, #tpu.memory_space<vmem>>, vector<8x16xf32>
    tpu.vector_store %arg10[%c448_322, %c73_323], %270 {strides = array<i32>} : memref<480x128xf32, #tpu.memory_space<vmem>>, vector<8x16xf32>,
    %c0_324 = arith.constant 0 : index
    %c702 = arith.constant 702 : index
    %272 = vector.load %arg8[%c0_324, %c702] : memref<8x768xf32, #tpu.memory_space<vmem>>, vector<8x16xf32>
    %c456_325 = arith.constant 456 : index
    %c73_326 = arith.constant 73 : index
    %273 = vector.load %arg10[%c456_325, %c73_326] : memref<480x128xf32, #tpu.memory_space<vmem>>, vector<8x16xf32>
    tpu.vector_store %arg10[%c456_325, %c73_326], %272 {strides = array<i32>} : memref<480x128xf32, #tpu.memory_space<vmem>>, vector<8x16xf32>,
    %c0_327 = arith.constant 0 : index
    %c703 = arith.constant 703 : index
    %274 = vector.load %arg8[%c0_327, %c703] : memref<8x768xf32, #tpu.memory_space<vmem>>, vector<8x16xf32>
    %c464_328 = arith.constant 464 : index
    %c73_329 = arith.constant 73 : index
    %275 = vector.load %arg10[%c464_328, %c73_329] : memref<480x128xf32, #tpu.memory_space<vmem>>, vector<8x16xf32>
    tpu.vector_store %arg10[%c464_328, %c73_329], %274 {strides = array<i32>} : memref<480x128xf32, #tpu.memory_space<vmem>>, vector<8x16xf32>,
    %c0_330 = arith.constant 0 : index
    %c704 = arith.constant 704 : index
    %276 = vector.load %arg8[%c0_330, %c704] : memref<8x768xf32, #tpu.memory_space<vmem>>, vector<8x16xf32>
    %c472_331 = arith.constant 472 : index
    %c73_332 = arith.constant 73 : index
    %277 = vector.load %arg10[%c472_331, %c73_332] : memref<480x128xf32, #tpu.memory_space<vmem>>, vector<8x16xf32>
    tpu.vector_store %arg10[%c472_331, %c73_332], %276 {strides = array<i32>} : memref<480x128xf32, #tpu.memory_space<vmem>>, vector<8x16xf32>,
    %c0_333 = arith.constant 0 : index
    %c0_334 = arith.constant 0 : index
    %278 = vector.load %arg3[%c0_333, %c0_334] : memref<8x480xf32, #tpu.memory_space<vmem>>, vector<8x480xf32>
    %c0_335 = arith.constant 0 : index
    %c0_336 = arith.constant 0 : index
    %279 = vector.load %arg10[%c0_335, %c0_336] : memref<480x128xf32, #tpu.memory_space<vmem>>, vector<480x128xf32>
    %cst_337 = arith.constant dense<0.000000e+00> : vector<8x128xf32>
    %280 = tpu.matmul %278, %279, %cst_337 {dimension_numbers = #tpu.dot_dimension_numbers<[1], [0], [0], [1], [0, 0, 1, 1], [], []>} : vector<8x480xf32>, vector<480x128xf32>, vector<8x128xf32> -> vector<8x128xf32>
    %281 = vector.extract_strided_slice %0 {offsets = [0, 2], sizes = [8, 1], strides = [1, 1]} : vector<8x6xf32> to vector<8x1xf32>
    %282 = vector.extract_strided_slice %0 {offsets = [0, 3], sizes = [8, 1], strides = [1, 1]} : vector<8x6xf32> to vector<8x1xf32>
    %cst_338 = arith.constant dense<0.000000e+00> : vector<8xf32>
    %283 = vector.multi_reduction <add>, %280, %cst_338 [1] : vector<8x128xf32> to vector<8xf32>
    %284 = vector.shape_cast %283 : vector<8xf32> to vector<8x1xf32>
    %285 = arith.mulf %280, %280 : vector<8x128xf32>
    %cst_339 = arith.constant dense<0.000000e+00> : vector<8xf32>
    %286 = vector.multi_reduction <add>, %285, %cst_339 [1] : vector<8x128xf32> to vector<8xf32>
    %287 = vector.shape_cast %286 : vector<8xf32> to vector<8x1xf32>
    %cst_340 = arith.constant 3.125000e-02 : f32
    %288 = vector.broadcast %cst_340 : f32 to vector<8x1xf32>
    %289 = arith.mulf %284, %288 : vector<8x1xf32>
    %cst_341 = arith.constant 3.125000e-02 : f32
    %290 = vector.broadcast %cst_341 : f32 to vector<8x1xf32>
    %291 = arith.mulf %287, %290 : vector<8x1xf32>
    %292 = arith.mulf %289, %289 : vector<8x1xf32>
    %293 = arith.subf %291, %292 : vector<8x1xf32>
    %cst_342 = arith.constant 9.99999974E-6 : f32
    %294 = vector.broadcast %cst_342 : f32 to vector<8x1xf32>
    %295 = arith.addf %293, %294 : vector<8x1xf32>
    %296 = math.rsqrt %295 : vector<8x1xf32>
    %297 = arith.mulf %281, %296 : vector<8x1xf32>
    %298 = vector.broadcast %289 : vector<8x1xf32> to vector<8x128xf32>
    %299 = arith.subf %280, %298 : vector<8x128xf32>
    %300 = vector.broadcast %297 : vector<8x1xf32> to vector<8x128xf32>
    %301 = arith.mulf %299, %300 : vector<8x128xf32>
    %302 = vector.broadcast %282 : vector<8x1xf32> to vector<8x128xf32>
    %303 = arith.addf %301, %302 : vector<8x128xf32>
    %cst_343 = arith.constant 0.000000e+00 : f32
    %304 = vector.broadcast %cst_343 : f32 to vector<8x128xf32>
    %305 = arith.cmpf oge, %303, %304 : vector<8x128xf32>
    %cst_344 = arith.constant 0.00999999977 : f32
    %306 = vector.broadcast %cst_344 : f32 to vector<8x128xf32>
    %307 = arith.mulf %306, %303 : vector<8x128xf32>
    %308 = arith.select %305, %303, %307 : vector<8x128xi1>, vector<8x128xf32>
    %c1_345 = arith.constant 1 : index
    %c0_346 = arith.constant 0 : index
    %309 = vector.load %arg6[%c1_345, %c0_346] : memref<2x768xf32, #tpu.memory_space<vmem>>, vector<1x128xf32>
    %310 = vector.broadcast %309 : vector<1x128xf32> to vector<8x128xf32>
    %311 = arith.mulf %308, %310 : vector<8x128xf32>
    %c0_347 = arith.constant 0 : index
    %c0_348 = arith.constant 0 : index
    %312 = vector.load %arg9[%c0_347, %c0_348] : memref<8x128xf32, #tpu.memory_space<vmem>>, vector<8x128xf32>
    tpu.vector_store %arg9[%c0_347, %c0_348], %311 {strides = array<i32>} : memref<8x128xf32, #tpu.memory_space<vmem>>, vector<8x128xf32>,
    %cst_349 = arith.constant 0.000000e+00 : f32
    %313 = vector.broadcast %cst_349 : f32 to vector<72x128xf32>
    %c0_350 = arith.constant 0 : index
    %c0_351 = arith.constant 0 : index
    %314 = vector.load %arg11[%c0_350, %c0_351] : memref<72x128xf32, #tpu.memory_space<vmem>>, vector<72x128xf32>
    tpu.vector_store %arg11[%c0_350, %c0_351], %313 {strides = array<i32>} : memref<72x128xf32, #tpu.memory_space<vmem>>, vector<72x128xf32>,
    %c0_352 = arith.constant 0 : index
    %c0_353 = arith.constant 0 : index
    %315 = vector.load %arg9[%c0_352, %c0_353] : memref<8x128xf32, #tpu.memory_space<vmem>>, vector<8x16xf32>
    %c0_354 = arith.constant 0 : index
    %c0_355 = arith.constant 0 : index
    %316 = vector.load %arg11[%c0_354, %c0_355] : memref<72x128xf32, #tpu.memory_space<vmem>>, vector<8x16xf32>
    tpu.vector_store %arg11[%c0_354, %c0_355], %315 {strides = array<i32>} : memref<72x128xf32, #tpu.memory_space<vmem>>, vector<8x16xf32>,
    %c0_356 = arith.constant 0 : index
    %c1_357 = arith.constant 1 : index
    %317 = vector.load %arg9[%c0_356, %c1_357] : memref<8x128xf32, #tpu.memory_space<vmem>>, vector<8x16xf32>
    %c8_358 = arith.constant 8 : index
    %c0_359 = arith.constant 0 : index
    %318 = vector.load %arg11[%c8_358, %c0_359] : memref<72x128xf32, #tpu.memory_space<vmem>>, vector<8x16xf32>
    tpu.vector_store %arg11[%c8_358, %c0_359], %317 {strides = array<i32>} : memref<72x128xf32, #tpu.memory_space<vmem>>, vector<8x16xf32>,
    %c0_360 = arith.constant 0 : index
    %c2_361 = arith.constant 2 : index
    %319 = vector.load %arg9[%c0_360, %c2_361] : memref<8x128xf32, #tpu.memory_space<vmem>>, vector<8x16xf32>
    %c16_362 = arith.constant 16 : index
    %c0_363 = arith.constant 0 : index
    %320 = vector.load %arg11[%c16_362, %c0_363] : memref<72x128xf32, #tpu.memory_space<vmem>>, vector<8x16xf32>
    tpu.vector_store %arg11[%c16_362, %c0_363], %319 {strides = array<i32>} : memref<72x128xf32, #tpu.memory_space<vmem>>, vector<8x16xf32>,
    %c0_364 = arith.constant 0 : index
    %c18_365 = arith.constant 18 : index
    %321 = vector.load %arg9[%c0_364, %c18_365] : memref<8x128xf32, #tpu.memory_space<vmem>>, vector<8x16xf32>
    %c24_366 = arith.constant 24 : index
    %c0_367 = arith.constant 0 : index
    %322 = vector.load %arg11[%c24_366, %c0_367] : memref<72x128xf32, #tpu.memory_space<vmem>>, vector<8x16xf32>
    tpu.vector_store %arg11[%c24_366, %c0_367], %321 {strides = array<i32>} : memref<72x128xf32, #tpu.memory_space<vmem>>, vector<8x16xf32>,
    %c0_368 = arith.constant 0 : index
    %c19_369 = arith.constant 19 : index
    %323 = vector.load %arg9[%c0_368, %c19_369] : memref<8x128xf32, #tpu.memory_space<vmem>>, vector<8x16xf32>
    %c32_370 = arith.constant 32 : index
    %c0_371 = arith.constant 0 : index
    %324 = vector.load %arg11[%c32_370, %c0_371] : memref<72x128xf32, #tpu.memory_space<vmem>>, vector<8x16xf32>
    tpu.vector_store %arg11[%c32_370, %c0_371], %323 {strides = array<i32>} : memref<72x128xf32, #tpu.memory_space<vmem>>, vector<8x16xf32>,
    %c0_372 = arith.constant 0 : index
    %c20_373 = arith.constant 20 : index
    %325 = vector.load %arg9[%c0_372, %c20_373] : memref<8x128xf32, #tpu.memory_space<vmem>>, vector<8x16xf32>
    %c40_374 = arith.constant 40 : index
    %c0_375 = arith.constant 0 : index
    %326 = vector.load %arg11[%c40_374, %c0_375] : memref<72x128xf32, #tpu.memory_space<vmem>>, vector<8x16xf32>
    tpu.vector_store %arg11[%c40_374, %c0_375], %325 {strides = array<i32>} : memref<72x128xf32, #tpu.memory_space<vmem>>, vector<8x16xf32>,
    %c0_376 = arith.constant 0 : index
    %c36_377 = arith.constant 36 : index
    %327 = vector.load %arg9[%c0_376, %c36_377] : memref<8x128xf32, #tpu.memory_space<vmem>>, vector<8x16xf32>
    %c48_378 = arith.constant 48 : index
    %c0_379 = arith.constant 0 : index
    %328 = vector.load %arg11[%c48_378, %c0_379] : memref<72x128xf32, #tpu.memory_space<vmem>>, vector<8x16xf32>
    tpu.vector_store %arg11[%c48_378, %c0_379], %327 {strides = array<i32>} : memref<72x128xf32, #tpu.memory_space<vmem>>, vector<8x16xf32>,
    %c0_380 = arith.constant 0 : index
    %c37_381 = arith.constant 37 : index
    %329 = vector.load %arg9[%c0_380, %c37_381] : memref<8x128xf32, #tpu.memory_space<vmem>>, vector<8x16xf32>
    %c56_382 = arith.constant 56 : index
    %c0_383 = arith.constant 0 : index
    %330 = vector.load %arg11[%c56_382, %c0_383] : memref<72x128xf32, #tpu.memory_space<vmem>>, vector<8x16xf32>
    tpu.vector_store %arg11[%c56_382, %c0_383], %329 {strides = array<i32>} : memref<72x128xf32, #tpu.memory_space<vmem>>, vector<8x16xf32>,
    %c0_384 = arith.constant 0 : index
    %c38_385 = arith.constant 38 : index
    %331 = vector.load %arg9[%c0_384, %c38_385] : memref<8x128xf32, #tpu.memory_space<vmem>>, vector<8x16xf32>
    %c64_386 = arith.constant 64 : index
    %c0_387 = arith.constant 0 : index
    %332 = vector.load %arg11[%c64_386, %c0_387] : memref<72x128xf32, #tpu.memory_space<vmem>>, vector<8x16xf32>
    tpu.vector_store %arg11[%c64_386, %c0_387], %331 {strides = array<i32>} : memref<72x128xf32, #tpu.memory_space<vmem>>, vector<8x16xf32>,
    %c0_388 = arith.constant 0 : index
    %c54_389 = arith.constant 54 : index
    %333 = vector.load %arg9[%c0_388, %c54_389] : memref<8x128xf32, #tpu.memory_space<vmem>>, vector<8x16xf32>
    %c0_390 = arith.constant 0 : index
    %c16_391 = arith.constant 16 : index
    %334 = vector.load %arg11[%c0_390, %c16_391] : memref<72x128xf32, #tpu.memory_space<vmem>>, vector<8x16xf32>
    tpu.vector_store %arg11[%c0_390, %c16_391], %333 {strides = array<i32>} : memref<72x128xf32, #tpu.memory_space<vmem>>, vector<8x16xf32>,
    %c0_392 = arith.constant 0 : index
    %c55_393 = arith.constant 55 : index
    %335 = vector.load %arg9[%c0_392, %c55_393] : memref<8x128xf32, #tpu.memory_space<vmem>>, vector<8x16xf32>
    %c8_394 = arith.constant 8 : index
    %c16_395 = arith.constant 16 : index
    %336 = vector.load %arg11[%c8_394, %c16_395] : memref<72x128xf32, #tpu.memory_space<vmem>>, vector<8x16xf32>
    tpu.vector_store %arg11[%c8_394, %c16_395], %335 {strides = array<i32>} : memref<72x128xf32, #tpu.memory_space<vmem>>, vector<8x16xf32>,
    %c0_396 = arith.constant 0 : index
    %c56_397 = arith.constant 56 : index
    %337 = vector.load %arg9[%c0_396, %c56_397] : memref<8x128xf32, #tpu.memory_space<vmem>>, vector<8x16xf32>
    %c16_398 = arith.constant 16 : index
    %c16_399 = arith.constant 16 : index
    %338 = vector.load %arg11[%c16_398, %c16_399] : memref<72x128xf32, #tpu.memory_space<vmem>>, vector<8x16xf32>
    tpu.vector_store %arg11[%c16_398, %c16_399], %337 {strides = array<i32>} : memref<72x128xf32, #tpu.memory_space<vmem>>, vector<8x16xf32>,
    %c0_400 = arith.constant 0 : index
    %c72_401 = arith.constant 72 : index
    %339 = vector.load %arg9[%c0_400, %c72_401] : memref<8x128xf32, #tpu.memory_space<vmem>>, vector<8x16xf32>
    %c24_402 = arith.constant 24 : index
    %c16_403 = arith.constant 16 : index
    %340 = vector.load %arg11[%c24_402, %c16_403] : memref<72x128xf32, #tpu.memory_space<vmem>>, vector<8x16xf32>
    tpu.vector_store %arg11[%c24_402, %c16_403], %339 {strides = array<i32>} : memref<72x128xf32, #tpu.memory_space<vmem>>, vector<8x16xf32>,
    %c0_404 = arith.constant 0 : index
    %c73_405 = arith.constant 73 : index
    %341 = vector.load %arg9[%c0_404, %c73_405] : memref<8x128xf32, #tpu.memory_space<vmem>>, vector<8x16xf32>
    %c32_406 = arith.constant 32 : index
    %c16_407 = arith.constant 16 : index
    %342 = vector.load %arg11[%c32_406, %c16_407] : memref<72x128xf32, #tpu.memory_space<vmem>>, vector<8x16xf32>
    tpu.vector_store %arg11[%c32_406, %c16_407], %341 {strides = array<i32>} : memref<72x128xf32, #tpu.memory_space<vmem>>, vector<8x16xf32>,
    %c0_408 = arith.constant 0 : index
    %c74_409 = arith.constant 74 : index
    %343 = vector.load %arg9[%c0_408, %c74_409] : memref<8x128xf32, #tpu.memory_space<vmem>>, vector<8x16xf32>
    %c40_410 = arith.constant 40 : index
    %c16_411 = arith.constant 16 : index
    %344 = vector.load %arg11[%c40_410, %c16_411] : memref<72x128xf32, #tpu.memory_space<vmem>>, vector<8x16xf32>
    tpu.vector_store %arg11[%c40_410, %c16_411], %343 {strides = array<i32>} : memref<72x128xf32, #tpu.memory_space<vmem>>, vector<8x16xf32>,
    %c0_412 = arith.constant 0 : index
    %c90_413 = arith.constant 90 : index
    %345 = vector.load %arg9[%c0_412, %c90_413] : memref<8x128xf32, #tpu.memory_space<vmem>>, vector<8x16xf32>
    %c48_414 = arith.constant 48 : index
    %c16_415 = arith.constant 16 : index
    %346 = vector.load %arg11[%c48_414, %c16_415] : memref<72x128xf32, #tpu.memory_space<vmem>>, vector<8x16xf32>
    tpu.vector_store %arg11[%c48_414, %c16_415], %345 {strides = array<i32>} : memref<72x128xf32, #tpu.memory_space<vmem>>, vector<8x16xf32>,
    %c0_416 = arith.constant 0 : index
    %c91_417 = arith.constant 91 : index
    %347 = vector.load %arg9[%c0_416, %c91_417] : memref<8x128xf32, #tpu.memory_space<vmem>>, vector<8x16xf32>
    %c56_418 = arith.constant 56 : index
    %c16_419 = arith.constant 16 : index
    %348 = vector.load %arg11[%c56_418, %c16_419] : memref<72x128xf32, #tpu.memory_space<vmem>>, vector<8x16xf32>
    tpu.vector_store %arg11[%c56_418, %c16_419], %347 {strides = array<i32>} : memref<72x128xf32, #tpu.memory_space<vmem>>, vector<8x16xf32>,
    %c0_420 = arith.constant 0 : index
    %c92_421 = arith.constant 92 : index
    %349 = vector.load %arg9[%c0_420, %c92_421] : memref<8x128xf32, #tpu.memory_space<vmem>>, vector<8x16xf32>
    %c64_422 = arith.constant 64 : index
    %c16_423 = arith.constant 16 : index
    %350 = vector.load %arg11[%c64_422, %c16_423] : memref<72x128xf32, #tpu.memory_space<vmem>>, vector<8x16xf32>
    tpu.vector_store %arg11[%c64_422, %c16_423], %349 {strides = array<i32>} : memref<72x128xf32, #tpu.memory_space<vmem>>, vector<8x16xf32>,
    %c0_424 = arith.constant 0 : index
    %c0_425 = arith.constant 0 : index
    %351 = vector.load %arg4[%c0_424, %c0_425] : memref<4x72xf32, #tpu.memory_space<vmem>>, vector<4x72xf32>
    %c0_426 = arith.constant 0 : index
    %c0_427 = arith.constant 0 : index
    %352 = vector.load %arg11[%c0_426, %c0_427] : memref<72x128xf32, #tpu.memory_space<vmem>>, vector<72x128xf32>
    %cst_428 = arith.constant dense<0.000000e+00> : vector<4x128xf32>
    %353 = tpu.matmul %351, %352, %cst_428 {dimension_numbers = #tpu.dot_dimension_numbers<[1], [0], [0], [1], [0, 0, 1, 1], [], []>} : vector<4x72xf32>, vector<72x128xf32>, vector<4x128xf32> -> vector<4x128xf32>
    %354 = vector.extract_strided_slice %0 {offsets = [0, 4], sizes = [4, 1], strides = [1, 1]} : vector<8x6xf32> to vector<4x1xf32>
    %355 = vector.extract_strided_slice %0 {offsets = [0, 5], sizes = [4, 1], strides = [1, 1]} : vector<8x6xf32> to vector<4x1xf32>
    %cst_429 = arith.constant dense<0.000000e+00> : vector<4xf32>
    %356 = vector.multi_reduction <add>, %353, %cst_429 [1] : vector<4x128xf32> to vector<4xf32>
    %357 = vector.shape_cast %356 : vector<4xf32> to vector<4x1xf32>
    %358 = arith.mulf %353, %353 : vector<4x128xf32>
    %cst_430 = arith.constant dense<0.000000e+00> : vector<4xf32>
    %359 = vector.multi_reduction <add>, %358, %cst_430 [1] : vector<4x128xf32> to vector<4xf32>
    %360 = vector.shape_cast %359 : vector<4xf32> to vector<4x1xf32>
    %cst_431 = arith.constant 3.125000e-02 : f32
    %361 = vector.broadcast %cst_431 : f32 to vector<4x1xf32>
    %362 = arith.mulf %357, %361 : vector<4x1xf32>
    %cst_432 = arith.constant 3.125000e-02 : f32
    %363 = vector.broadcast %cst_432 : f32 to vector<4x1xf32>
    %364 = arith.mulf %360, %363 : vector<4x1xf32>
    %365 = arith.mulf %362, %362 : vector<4x1xf32>
    %366 = arith.subf %364, %365 : vector<4x1xf32>
    %cst_433 = arith.constant 9.99999974E-6 : f32
    %367 = vector.broadcast %cst_433 : f32 to vector<4x1xf32>
    %368 = arith.addf %366, %367 : vector<4x1xf32>
    %369 = math.rsqrt %368 : vector<4x1xf32>
    %370 = arith.mulf %354, %369 : vector<4x1xf32>
    %371 = vector.broadcast %362 : vector<4x1xf32> to vector<4x128xf32>
    %372 = arith.subf %353, %371 : vector<4x128xf32>
    %373 = vector.broadcast %370 : vector<4x1xf32> to vector<4x128xf32>
    %374 = arith.mulf %372, %373 : vector<4x128xf32>
    %375 = vector.broadcast %355 : vector<4x1xf32> to vector<4x128xf32>
    %376 = arith.addf %374, %375 : vector<4x128xf32>
    %cst_434 = arith.constant 0.000000e+00 : f32
    %377 = vector.broadcast %cst_434 : f32 to vector<4x128xf32>
    %378 = arith.cmpf oge, %376, %377 : vector<4x128xf32>
    %cst_435 = arith.constant 0.00999999977 : f32
    %379 = vector.broadcast %cst_435 : f32 to vector<4x128xf32>
    %380 = arith.mulf %379, %376 : vector<4x128xf32>
    %381 = arith.select %378, %376, %380 : vector<4x128xi1>, vector<4x128xf32>
    %c0_436 = arith.constant 0 : index
    %c0_437 = arith.constant 0 : index
    %382 = vector.load %arg7[%c0_436, %c0_437] : memref<4x128xf32, #tpu.memory_space<vmem>>, vector<4x128xf32>
    tpu.vector_store %arg7[%c0_436, %c0_437], %381 {strides = array<i32>} : memref<4x128xf32, #tpu.memory_space<vmem>>, vector<4x128xf32>,
    return
  }
  func.func @transform_0(%arg0: i32) -> (i32, i32) {
    %c0_i32 = arith.constant 0 : i32
    %c0_i32_0 = arith.constant 0 : i32
    %c0_i32_1 = arith.constant 0 : i32
    return %c0_i32, %c0_i32_0 : i32, i32
  }
  func.func @transform_1(%arg0: i32) -> (i32, i32) {
    %c0_i32 = arith.constant 0 : i32
    %c0_i32_0 = arith.constant 0 : i32
    %c0_i32_1 = arith.constant 0 : i32
    return %c0_i32, %c0_i32_0 : i32, i32
  }
  func.func @transform_2(%arg0: i32) -> (i32, i32) {
    %c0_i32 = arith.constant 0 : i32
    %c0_i32_0 = arith.constant 0 : i32
    %c0_i32_1 = arith.constant 0 : i32
    return %c0_i32, %c0_i32_0 : i32, i32
  }
  func.func @transform_3(%arg0: i32) -> (i32, i32) {
    %c0_i32 = arith.constant 0 : i32
    %c0_i32_0 = arith.constant 0 : i32
    %c0_i32_1 = arith.constant 0 : i32
    return %c0_i32, %c0_i32_0 : i32, i32
  }
  func.func @transform_4(%arg0: i32) -> (i32, i32) {
    %c0_i32 = arith.constant 0 : i32
    %c0_i32_0 = arith.constant 0 : i32
    %c0_i32_1 = arith.constant 0 : i32
    return %c0_i32, %c0_i32_0 : i32, i32
  }
  func.func @transform_5(%arg0: i32) -> (i32, i32) {
    %c0_i32 = arith.constant 0 : i32
    %c0_i32_0 = arith.constant 0 : i32
    %c0_i32_1 = arith.constant 0 : i32
    return %c0_i32, %c0_i32_0 : i32, i32
  }
  func.func @transform_6(%arg0: i32) -> (i32, i32) {
    %c0_i32 = arith.constant 0 : i32
    %c0_i32_0 = arith.constant 0 : i32
    %c0_i32_1 = arith.constant 0 : i32
    return %c0_i32, %c0_i32_0 : i32, i32
  }
}

</mosaic_0001>

<llo_original>
// kernel: bottom_forward.1
$region0: #{bottom_forward.1}
  #allocation0 [shape = 'u32[]', space=smem, size = 0x4, offset = 0x4, fixed_abs, tag = 'smem constant byte address 0x4 - core index']
  #allocation1 [shape = 'u32[72,128]{1,0:T(1,128)}', space=vmem, size = 0x9000, scoped, tag = 'internal scratch']
  #allocation2 [shape = 'f32[8,768]{1,0:T(8,128)}', space=vmem, size = 0x6000, scoped, tag = 'scratch operand']
  #allocation3 [shape = 'f32[8,128]{1,0:T(8,128)}', space=vmem, size = 0x1000, scoped, tag = 'scratch operand']
  #allocation4 [shape = 'f32[480,128]{1,0:T(8,128)}', space=vmem, size = 0x3c000, scoped, tag = 'scratch operand']
  #allocation5 [shape = 'f32[72,128]{1,0:T(8,128)}', space=vmem, size = 0x9000, scoped, tag = 'scratch operand']
  %s0 = inlined_call_operand.vmem [shape: f32[64,768], index: 0, kind: input, shape index: {}]
  %s1 = inlined_call_operand.vmem [shape: f32[8,64], index: 1, kind: input, shape index: {}]
  %s2 = inlined_call_operand.vmem [shape: f32[8,480], index: 2, kind: input, shape index: {}]
  %s3 = inlined_call_operand.vmem [shape: f32[4,72], index: 3, kind: input, shape index: {}]
  %s4 = inlined_call_operand.vmem [shape: f32[8,6], index: 4, kind: input, shape index: {}]
  %s5 = inlined_call_operand.vmem [shape: f32[2,768], index: 5, kind: input, shape index: {}]
  %s6 = inlined_call_operand.vmem [shape: f32[4,128], index: 6, kind: output, shape index: {}]
  %s7 = sld [smem:[#allocation0]]
  $region34: #{bottom_forward.1} parent=0
    _
  %s9 = ssub.s32 1, %s7
  %s10 = scalar_select 0, %s9, %s7
  // Predicated region
  $region2: #{bottom_forward.1} parent=0 // pred_check
    _
  $region3: #{bottom_forward.1} parent=0 // pred_check_branch
    %12 = sbr.rel (0) target = $region5
  $region4: #{bottom_forward.1} parent=0 // pred_region
    _
  $region5: #{bottom_forward.1} parent=0 // pred_fallthru
    _
  // Predicated region
  $region6: #{bottom_forward.1} parent=0 // pred_check
    _
  $region7: #{bottom_forward.1} parent=0 // pred_check_branch
    %14 = sbr.rel (0) target = $region9
  $region8: #{bottom_forward.1} parent=0 // pred_region
    _
  $region9: #{bottom_forward.1} parent=0 // pred_fallthru
    _
  // Predicated region
  $region10: #{bottom_forward.1} parent=0 // pred_check
    _
  $region11: #{bottom_forward.1} parent=0 // pred_check_branch
    %16 = sbr.rel (0) target = $region13
  $region12: #{bottom_forward.1} parent=0 // pred_region
    _
  $region13: #{bottom_forward.1} parent=0 // pred_fallthru
    _
  // Predicated region
  $region14: #{bottom_forward.1} parent=0 // pred_check
    _
  $region15: #{bottom_forward.1} parent=0 // pred_check_branch
    %18 = sbr.rel (0) target = $region17
  $region16: #{bottom_forward.1} parent=0 // pred_region
    _
  $region17: #{bottom_forward.1} parent=0 // pred_fallthru
    _
  // Predicated region
  $region18: #{bottom_forward.1} parent=0 // pred_check
    _
  $region19: #{bottom_forward.1} parent=0 // pred_check_branch
    %20 = sbr.rel (0) target = $region21
  $region20: #{bottom_forward.1} parent=0 // pred_region
    _
  $region21: #{bottom_forward.1} parent=0 // pred_fallthru
    _
  // Predicated region
  $region22: #{bottom_forward.1} parent=0 // pred_check
    _
  $region23: #{bottom_forward.1} parent=0 // pred_check_branch
    %22 = sbr.rel (0) target = $region25
  $region24: #{bottom_forward.1} parent=0 // pred_region
    _
  $region25: #{bottom_forward.1} parent=0 // pred_fallthru
    _
  %v23 = vld [vmem:[%s4] sm:$0xff]
  %v24 = vld [vmem:[%s1] sm:$0xff]
  %v25 = vld [vmem:[%s0] sm:$0xff]
  %v26 = vld [vmem:[%s0 + $0x8] sm:$0xff]
  %v27 = vld [vmem:[%s0 + $0x10] sm:$0xff]
  %v28 = vld [vmem:[%s0 + $0x18] sm:$0xff]
  %v29 = vld [vmem:[%s0 + $0x20] sm:$0xff]
  %v30 = vld [vmem:[%s0 + $0x28] sm:$0xff]
  %v31 = vld [vmem:[%s0 + $0x30] sm:$0xff]
  %v32 = vld [vmem:[%s0 + $0x38] sm:$0xff]
  %v33 = vld [vmem:[%s0 + $0x40] sm:$0xff]
  %v34 = vld [vmem:[%s0 + $0x48] sm:$0xff]
  %v35 = vld [vmem:[%s0 + $0x50] sm:$0xff]
  %v36 = vld [vmem:[%s0 + $0x58] sm:$0xff]
  %v37 = vld [vmem:[%s0 + $0x60] sm:$0xff]
  %v38 = vld [vmem:[%s0 + $0x68] sm:$0xff]
  %v39 = vld [vmem:[%s0 + $0x70] sm:$0xff]
  %v40 = vld [vmem:[%s0 + $0x78] sm:$0xff]
  %v41 = vld [vmem:[%s0 + $0x80] sm:$0xff]
  %v42 = vld [vmem:[%s0 + $0x88] sm:$0xff]
  %v43 = vld [vmem:[%s0 + $0x90] sm:$0xff]
  %v44 = vld [vmem:[%s0 + $0x98] sm:$0xff]
  %v45 = vld [vmem:[%s0 + $0xa0] sm:$0xff]
  %v46 = vld [vmem:[%s0 + $0xa8] sm:$0xff]
  %v47 = vld [vmem:[%s0 + $0xb0] sm:$0xff]
  %v48 = vld [vmem:[%s0 + $0xb8] sm:$0xff]
  %v49 = vld [vmem:[%s0 + $0xc0] sm:$0xff]
  %v50 = vld [vmem:[%s0 + $0xc8] sm:$0xff]
  %v51 = vld [vmem:[%s0 + $0xd0] sm:$0xff]
  %v52 = vld [vmem:[%s0 + $0xd8] sm:$0xff]
  %v53 = vld [vmem:[%s0 + $0xe0] sm:$0xff]
  %v54 = vld [vmem:[%s0 + $0xe8] sm:$0xff]
  %v55 = vld [vmem:[%s0 + $0xf0] sm:$0xff]
  %v56 = vld [vmem:[%s0 + $0xf8] sm:$0xff]
  %v57 = vld [vmem:[%s0 + $0x100] sm:$0xff]
  %v58 = vld [vmem:[%s0 + $0x108] sm:$0xff]
  %v59 = vld [vmem:[%s0 + $0x110] sm:$0xff]
  %v60 = vld [vmem:[%s0 + $0x118] sm:$0xff]
  %v61 = vld [vmem:[%s0 + $0x120] sm:$0xff]
  %v62 = vld [vmem:[%s0 + $0x128] sm:$0xff]
  %v63 = vld [vmem:[%s0 + $0x130] sm:$0xff]
  %v64 = vld [vmem:[%s0 + $0x138] sm:$0xff]
  %v65 = vld [vmem:[%s0 + $0x140] sm:$0xff]
  %v66 = vld [vmem:[%s0 + $0x148] sm:$0xff]
  %v67 = vld [vmem:[%s0 + $0x150] sm:$0xff]
  %v68 = vld [vmem:[%s0 + $0x158] sm:$0xff]
  %v69 = vld [vmem:[%s0 + $0x160] sm:$0xff]
  %v70 = vld [vmem:[%s0 + $0x168] sm:$0xff]
  %v71 = vld [vmem:[%s0 + $0x170] sm:$0xff]
  %v72 = vld [vmem:[%s0 + $0x178] sm:$0xff]
  %vm73 = vcmask 523264
  %v75 = vsel %vm73, %v24, 0
  %77 = vmatpush.msra.mxu0 0.0
  %78 = vmatpush.msra.mxu0 0.0
  %79 = vmatpush.msra.mxu0 0.0
  %80 = vmatpush.msra.mxu0 0.0
  %81 = vmatpush.msra.mxu0 0.0
  %82 = vmatpush.msra.mxu0 0.0
  %83 = vmatpush.msra.mxu0 0.0
  %84 = vmatpush.msra.mxu0 0.0
  %85 = vmatpush.msra.mxu0 %v67
  %86 = vmatpush.msra.mxu0 %v61
  %87 = vmatpush.msra.mxu0 %v55
  %88 = vmatpush.msra.mxu0 %v49
  %89 = vmatpush.msra.mxu0 %v43
  %90 = vmatpush.msra.mxu0 %v37
  %91 = vmatpush.msra.mxu0 %v31
  %92 = vmatpush.msra.mxu0 %v25
  %93 = vmatmul.f32.gmra.mxu0 %v75
  %v94 = vpop.f32.mrf.mxu0
  %v95 = vadd.f32 0.0, %v94
  %96 = vdwg.mxu0
  %97 = vmatpush.msra.mxu0 0.0
  %98 = vmatpush.msra.mxu0 0.0
  %99 = vmatpush.msra.mxu0 0.0
  %100 = vmatpush.msra.mxu0 0.0
  %101 = vmatpush.msra.mxu0 0.0
  %102 = vmatpush.msra.mxu0 0.0
  %103 = vmatpush.msra.mxu0 0.0
  %104 = vmatpush.msra.mxu0 0.0
  %105 = vmatpush.msra.mxu0 %v68
  %106 = vmatpush.msra.mxu0 %v62
  %107 = vmatpush.msra.mxu0 %v56
  %108 = vmatpush.msra.mxu0 %v50
  %109 = vmatpush.msra.mxu0 %v44
  %110 = vmatpush.msra.mxu0 %v38
  %111 = vmatpush.msra.mxu0 %v32
  %112 = vmatpush.msra.mxu0 %v26
  %113 = vmatmul.f32.gmra.mxu0 %v75
  %v114 = vpop.f32.mrf.mxu0
  %v115 = vadd.f32 0.0, %v114
  %116 = vdwg.mxu0
  %117 = vmatpush.msra.mxu0 0.0
  %118 = vmatpush.msra.mxu0 0.0
  %119 = vmatpush.msra.mxu0 0.0
  %120 = vmatpush.msra.mxu0 0.0
  %121 = vmatpush.msra.mxu0 0.0
  %122 = vmatpush.msra.mxu0 0.0
  %123 = vmatpush.msra.mxu0 0.0
  %124 = vmatpush.msra.mxu0 0.0
  %125 = vmatpush.msra.mxu0 %v69
  %126 = vmatpush.msra.mxu0 %v63
  %127 = vmatpush.msra.mxu0 %v57
  %128 = vmatpush.msra.mxu0 %v51
  %129 = vmatpush.msra.mxu0 %v45
  %130 = vmatpush.msra.mxu0 %v39
  %131 = vmatpush.msra.mxu0 %v33
  %132 = vmatpush.msra.mxu0 %v27
  %133 = vmatmul.f32.gmra.mxu0 %v75
  %v134 = vpop.f32.mrf.mxu0
  %v135 = vadd.f32 0.0, %v134
  %136 = vdwg.mxu0
  %137 = vmatpush.msra.mxu0 0.0
  %138 = vmatpush.msra.mxu0 0.0
  %139 = vmatpush.msra.mxu0 0.0
  %140 = vmatpush.msra.mxu0 0.0
  %141 = vmatpush.msra.mxu0 0.0
  %142 = vmatpush.msra.mxu0 0.0
  %143 = vmatpush.msra.mxu0 0.0
  %144 = vmatpush.msra.mxu0 0.0
  %145 = vmatpush.msra.mxu0 %v70
  %146 = vmatpush.msra.mxu0 %v64
  %147 = vmatpush.msra.mxu0 %v58
  %148 = vmatpush.msra.mxu0 %v52
  %149 = vmatpush.msra.mxu0 %v46
  %150 = vmatpush.msra.mxu0 %v40
  %151 = vmatpush.msra.mxu0 %v34
  %152 = vmatpush.msra.mxu0 %v28
  %153 = vmatmul.f32.gmra.mxu0 %v75
  %v154 = vpop.f32.mrf.mxu0
  %v155 = vadd.f32 0.0, %v154
  %156 = vdwg.mxu0
  %157 = vmatpush.msra.mxu0 0.0
  %158 = vmatpush.msra.mxu0 0.0
  %159 = vmatpush.msra.mxu0 0.0
  %160 = vmatpush.msra.mxu0 0.0
  %161 = vmatpush.msra.mxu0 0.0
  %162 = vmatpush.msra.mxu0 0.0
  %163 = vmatpush.msra.mxu0 0.0
  %164 = vmatpush.msra.mxu0 0.0
  %165 = vmatpush.msra.mxu0 %v71
  %166 = vmatpush.msra.mxu0 %v65
  %167 = vmatpush.msra.mxu0 %v59
  %168 = vmatpush.msra.mxu0 %v53
  %169 = vmatpush.msra.mxu0 %v47
  %170 = vmatpush.msra.mxu0 %v41
  %171 = vmatpush.msra.mxu0 %v35
  %172 = vmatpush.msra.mxu0 %v29
  %173 = vmatmul.f32.gmra.mxu0 %v75
  %v174 = vpop.f32.mrf.mxu0
  %v175 = vadd.f32 0.0, %v174
  %176 = vdwg.mxu0
  %177 = vmatpush.msra.mxu0 0.0
  %178 = vmatpush.msra.mxu0 0.0
  %179 = vmatpush.msra.mxu0 0.0
  %180 = vmatpush.msra.mxu0 0.0
  %181 = vmatpush.msra.mxu0 0.0
  %182 = vmatpush.msra.mxu0 0.0
  %183 = vmatpush.msra.mxu0 0.0
  %184 = vmatpush.msra.mxu0 0.0
  %185 = vmatpush.msra.mxu0 %v72
  %186 = vmatpush.msra.mxu0 %v66
  %187 = vmatpush.msra.mxu0 %v60
  %188 = vmatpush.msra.mxu0 %v54
  %189 = vmatpush.msra.mxu0 %v48
  %190 = vmatpush.msra.mxu0 %v42
  %191 = vmatpush.msra.mxu0 %v36
  %192 = vmatpush.msra.mxu0 %v30
  %193 = vmatmul.f32.gmra.mxu0 %v75
  %v194 = vpop.f32.mrf.mxu0
  %v195 = vadd.f32 0.0, %v194
  %196 = vdwg.mxu0
  %v197 = vadd.f32 %v95, %v115
  %v198 = vadd.f32 %v197, %v135
  %v199 = vadd.f32 %v198, %v155
  %v200 = vadd.f32 %v199, %v175
  %v201 = vadd.f32 %v200, %v195
  %202 = vadd.xlane.f32.xlu0 %v201
  %v203 = vpop.xlane.xlu0 %202
  %v204 = vmul.f32 %v95, %v95
  %v205 = vmul.f32 %v115, %v115
  %v206 = vmul.f32 %v135, %v135
  %v207 = vmul.f32 %v155, %v155
  %v208 = vmul.f32 %v175, %v175
  %v209 = vmul.f32 %v195, %v195
  %v210 = vadd.f32 %v204, %v205
  %v211 = vadd.f32 %v210, %v206
  %v212 = vadd.f32 %v211, %v207
  %v213 = vadd.f32 %v212, %v208
  %v214 = vadd.f32 %v213, %v209
  %215 = vadd.xlane.f32.xlu0 %v214
  %v216 = vpop.xlane.xlu0 %215
  %v217 = vmul.f32 %v203, 0.002232143
  %v218 = vmul.f32 %v216, 0.002232143
  %v219 = vmul.f32 %v217, %v217
  %v220 = vsub.f32 %v218, %v219
  %v221 = vadd.f32 %v220, 1e-05
  %v222 = vrsqrt.pop %v221
  %v223 = vmul.f32 %v222, %v221
  %v224 = vmul.f32 %v223, %v222
  %v225 = vmul.f32 0.5, %v224
  %v226 = vsub.f32 1.5, %v225
  %v227 = vmul.f32 %v222, %v226
  %vm228 = vweird.f32 %v221
  %vm229 = vweird.f32 %v222
  %vm230 = vmor %vm228, %vm229
  %v231 = vsel %vm230, %v222, %v227
  %v232 = vmul.f32 %v23, %v231
  %v233 = vsub.f32 %v95, %v217
  %v234 = vsub.f32 %v115, %v217
  %v235 = vsub.f32 %v135, %v217
  %v236 = vsub.f32 %v155, %v217
  %v237 = vsub.f32 %v175, %v217
  %v238 = vsub.f32 %v195, %v217
  %240 = vset.pattern.permute.xlu0 0
  %241 = vperm.xlu0 %240, %v232
  %v242 = vpop.permute.xlu0 %241
  %v244 = vmul.f32 %v233, %v242
  %v245 = vmul.f32 %v234, %v242
  %v246 = vmul.f32 %v235, %v242
  %v247 = vmul.f32 %v236, %v242
  %v248 = vmul.f32 %v237, %v242
  %v249 = vmul.f32 %v238, %v242
  %251 = vset.pattern.permute.xlu0 1
  %252 = vperm.xlu0 %251, %v23
  %v253 = vpop.permute.xlu0 %252
  %v255 = vadd.f32 %v244, %v253
  %v256 = vadd.f32 %v245, %v253
  %v257 = vadd.f32 %v246, %v253
  %v258 = vadd.f32 %v247, %v253
  %v259 = vadd.f32 %v248, %v253
  %v260 = vadd.f32 %v249, %v253
  %vm261 = vcmp.ge.f32.partialorder %v255, 0.0
  %vm262 = vcmp.ge.f32.partialorder %v256, 0.0
  %vm263 = vcmp.ge.f32.partialorder %v257, 0.0
  %vm264 = vcmp.ge.f32.partialorder %v258, 0.0
  %vm265 = vcmp.ge.f32.partialorder %v259, 0.0
  %vm266 = vcmp.ge.f32.partialorder %v260, 0.0
  %v267 = vmul.f32 %v255, 0.01
  %v268 = vmul.f32 %v256, 0.01
  %v269 = vmul.f32 %v257, 0.01
  %v270 = vmul.f32 %v258, 0.01
  %v271 = vmul.f32 %v259, 0.01
  %v272 = vmul.f32 %v260, 0.01
  %v273 = vsel %vm261, %v255, %v267
  %v274 = vsel %vm262, %v256, %v268
  %v275 = vsel %vm263, %v257, %v269
  %v276 = vsel %vm264, %v258, %v270
  %v277 = vsel %vm265, %v259, %v271
  %v278 = vsel %vm266, %v260, %v272
  %v279 = vld [vmem:[%s5] ss:$2 sm:$0x3f]
  %v281 = vperm.slane %v279, 0
  %v282 = vperm.slane %v279, 1
  %v283 = vperm.slane %v279, 2
  %v284 = vperm.slane %v279, 3
  %v285 = vperm.slane %v279, 4
  %v286 = vperm.slane %v279, 5
  %v293 = vmul.f32 %v273, %v281
  %v294 = vmul.f32 %v274, %v282
  %v295 = vmul.f32 %v275, %v283
  %v296 = vmul.f32 %v276, %v284
  %v297 = vmul.f32 %v277, %v285
  %v298 = vmul.f32 %v278, %v286
  %299 = vst [vmem:[#allocation2] sm:$0xff] %v293
  %300 = vst [vmem:[#allocation2 + $0x8] sm:$0xff] %v294
  %301 = vst [vmem:[#allocation2 + $0x10] sm:$0xff] %v295
  %302 = vst [vmem:[#allocation2 + $0x18] sm:$0xff] %v296
  %303 = vst [vmem:[#allocation2 + $0x20] sm:$0xff] %v297
  %304 = vst [vmem:[#allocation2 + $0x28] sm:$0xff] %v298
  %305 = vst [vmem:[#allocation4] sm:$0xff] 0.0
  %306 = vst [vmem:[#allocation4 + $0x8] sm:$0xff] 0.0
  %307 = vst [vmem:[#allocation4 + $0x10] sm:$0xff] 0.0
  %308 = vst [vmem:[#allocation4 + $0x18] sm:$0xff] 0.0
  %309 = vst [vmem:[#allocation4 + $0x20] sm:$0xff] 0.0
  %310 = vst [vmem:[#allocation4 + $0x28] sm:$0xff] 0.0
  %311 = vst [vmem:[#allocation4 + $0x30] sm:$0xff] 0.0
  %312 = vst [vmem:[#allocation4 + $0x38] sm:$0xff] 0.0
  %313 = vst [vmem:[#allocation4 + $0x40] sm:$0xff] 0.0
  %314 = vst [vmem:[#allocation4 + $0x48] sm:$0xff] 0.0
  %315 = vst [vmem:[#allocation4 + $0x50] sm:$0xff] 0.0
  %316 = vst [vmem:[#allocation4 + $0x58] sm:$0xff] 0.0
  %317 = vst [vmem:[#allocation4 + $0x60] sm:$0xff] 0.0
  %318 = vst [vmem:[#allocation4 + $0x68] sm:$0xff] 0.0
  %319 = vst [vmem:[#allocation4 + $0x70] sm:$0xff] 0.0
  %320 = vst [vmem:[#allocation4 + $0x78] sm:$0xff] 0.0
  %321 = vst [vmem:[#allocation4 + $0x80] sm:$0xff] 0.0
  %322 = vst [vmem:[#allocation4 + $0x88] sm:$0xff] 0.0
  %323 = vst [vmem:[#allocation4 + $0x90] sm:$0xff] 0.0
  %324 = vst [vmem:[#allocation4 + $0x98] sm:$0xff] 0.0
  %325 = vst [vmem:[#allocation4 + $0xa0] sm:$0xff] 0.0
  %326 = vst [vmem:[#allocation4 + $0xa8] sm:$0xff] 0.0
  %327 = vst [vmem:[#allocation4 + $0xb0] sm:$0xff] 0.0
  %328 = vst [vmem:[#allocation4 + $0xb8] sm:$0xff] 0.0
  %329 = vst [vmem:[#allocation4 + $0xc0] sm:$0xff] 0.0
  %330 = vst [vmem:[#allocation4 + $0xc8] sm:$0xff] 0.0
  %331 = vst [vmem:[#allocation4 + $0xd0] sm:$0xff] 0.0
  %332 = vst [vmem:[#allocation4 + $0xd8] sm:$0xff] 0.0
  %333 = vst [vmem:[#allocation4 + $0xe0] sm:$0xff] 0.0
  %334 = vst [vmem:[#allocation4 + $0xe8] sm:$0xff] 0.0
  %335 = vst [vmem:[#allocation4 + $0xf0] sm:$0xff] 0.0
  %336 = vst [vmem:[#allocation4 + $0xf8] sm:$0xff] 0.0
  %337 = vst [vmem:[#allocation4 + $0x100] sm:$0xff] 0.0
  %338 = vst [vmem:[#allocation4 + $0x108] sm:$0xff] 0.0
  %339 = vst [vmem:[#allocation4 + $0x110] sm:$0xff] 0.0
  %340 = vst [vmem:[#allocation4 + $0x118] sm:$0xff] 0.0
  %341 = vst [vmem:[#allocation4 + $0x120] sm:$0xff] 0.0
  %342 = vst [vmem:[#allocation4 + $0x128] sm:$0xff] 0.0
  %343 = vst [vmem:[#allocation4 + $0x130] sm:$0xff] 0.0
  %344 = vst [vmem:[#allocation4 + $0x138] sm:$0xff] 0.0
  %345 = vst [vmem:[#allocation4 + $0x140] sm:$0xff] 0.0
  %346 = vst [vmem:[#allocation4 + $0x148] sm:$0xff] 0.0
  %347 = vst [vmem:[#allocation4 + $0x150] sm:$0xff] 0.0
  %348 = vst [vmem:[#allocation4 + $0x158] sm:$0xff] 0.0
  %349 = vst [vmem:[#allocation4 + $0x160] sm:$0xff] 0.0
  %350 = vst [vmem:[#allocation4 + $0x168] sm:$0xff] 0.0
  %351 = vst [vmem:[#allocation4 + $0x170] sm:$0xff] 0.0
  %352 = vst [vmem:[#allocation4 + $0x178] sm:$0xff] 0.0
  %353 = vst [vmem:[#allocation4 + $0x180] sm:$0xff] 0.0
  %354 = vst [vmem:[#allocation4 + $0x188] sm:$0xff] 0.0
  %355 = vst [vmem:[#allocation4 + $0x190] sm:$0xff] 0.0
  %356 = vst [vmem:[#allocation4 + $0x198] sm:$0xff] 0.0
  %357 = vst [vmem:[#allocation4 + $0x1a0] sm:$0xff] 0.0
  %358 = vst [vmem:[#allocation4 + $0x1a8] sm:$0xff] 0.0
  %359 = vst [vmem:[#allocation4 + $0x1b0] sm:$0xff] 0.0
  %360 = vst [vmem:[#allocation4 + $0x1b8] sm:$0xff] 0.0
  %361 = vst [vmem:[#allocation4 + $0x1c0] sm:$0xff] 0.0
  %362 = vst [vmem:[#allocation4 + $0x1c8] sm:$0xff] 0.0
  %363 = vst [vmem:[#allocation4 + $0x1d0] sm:$0xff] 0.0
  %364 = vst [vmem:[#allocation4 + $0x1d8] sm:$0xff] 0.0
  %v365 = vld [vmem:[#allocation2] sm:$0xff]
  %367 = vrot.lane.b32.xlu0 %v365, 19
  %v368 = vpop.permute.xlu0 %367
  %vm370 = vcmask 285848
  %371 = vst.msk [vmem:[#allocation4] sm:$0xff] %vm370, %v368
  %v372 = vld [vmem:[#allocation2] sm:$0xff]
  %374 = vrot.lane.b32.xlu0 %v372, 18
  %v375 = vpop.permute.xlu0 %374
  %377 = vst.msk [vmem:[#allocation4 + $0x8] sm:$0xff] %vm370, %v375
  %v378 = vld [vmem:[#allocation2] sm:$0xff]
  %380 = vrot.lane.b32.xlu0 %v378, 17
  %v381 = vpop.permute.xlu0 %380
  %383 = vst.msk [vmem:[#allocation4 + $0x10] sm:$0xff] %vm370, %v381
  %v384 = vld [vmem:[#allocation2] sm:$0xff]
  %386 = vrot.lane.b32.xlu0 %v384, 1
  %v387 = vpop.permute.xlu0 %386
  %389 = vst.msk [vmem:[#allocation4 + $0x18] sm:$0xff] %vm370, %v387
  %v390 = vld [vmem:[#allocation2] sm:$0xff]
  %391 = vst.msk [vmem:[#allocation4 + $0x20] sm:$0xff] %vm370, %v390
  %v392 = vld [vmem:[#allocation2] sm:$0xff]
  %394 = vrot.lane.b32.xlu0 %v392, 127
  %v395 = vpop.permute.xlu0 %394
  %397 = vst.msk [vmem:[#allocation4 + $0x28] sm:$0xff] %vm370, %v395
  %v398 = vld [vmem:[#allocation2] sm:$0xff]
  %400 = vrot.lane.b32.xlu0 %v398, 111
  %v401 = vpop.permute.xlu0 %400
  %403 = vst.msk [vmem:[#allocation4 + $0x30] sm:$0xff] %vm370, %v401
  %v404 = vld [vmem:[#allocation2] sm:$0xff]
  %406 = vrot.lane.b32.xlu0 %v404, 110
  %v407 = vpop.permute.xlu0 %406
  %409 = vst.msk [vmem:[#allocation4 + $0x38] sm:$0xff] %vm370, %v407
  %v410 = vld [vmem:[#allocation2] sm:$0xff]
  %412 = vrot.lane.b32.xlu0 %v410, 109
  %v413 = vpop.permute.xlu0 %412
  %415 = vst.msk [vmem:[#allocation4 + $0x40] sm:$0xff] %vm370, %v413
  %v416 = vld [vmem:[#allocation2] sm:$0xff]
  %418 = vrot.lane.b32.xlu0 %v416, 93
  %v419 = vpop.permute.xlu0 %418
  %421 = vst.msk [vmem:[#allocation4 + $0x48] sm:$0xff] %vm370, %v419
  %v422 = vld [vmem:[#allocation2] sm:$0xff]
  %424 = vrot.lane.b32.xlu0 %v422, 92
  %v425 = vpop.permute.xlu0 %424
  %427 = vst.msk [vmem:[#allocation4 + $0x50] sm:$0xff] %vm370, %v425
  %v428 = vld [vmem:[#allocation2] sm:$0xff]
  %430 = vrot.lane.b32.xlu0 %v428, 91
  %v431 = vpop.permute.xlu0 %430
  %433 = vst.msk [vmem:[#allocation4 + $0x58] sm:$0xff] %vm370, %v431
  %v434 = vld [vmem:[#allocation2] sm:$0xff]
  %436 = vrot.lane.b32.xlu0 %v434, 75
  %v437 = vpop.permute.xlu0 %436
  %439 = vst.msk [vmem:[#allocation4 + $0x60] sm:$0xff] %vm370, %v437
  %v440 = vld [vmem:[#allocation2] sm:$0xff]
  %442 = vrot.lane.b32.xlu0 %v440, 74
  %v443 = vpop.permute.xlu0 %442
  %445 = vst.msk [vmem:[#allocation4 + $0x68] sm:$0xff] %vm370, %v443
  %v446 = vld [vmem:[#allocation2] sm:$0xff]
  %448 = vrot.lane.b32.xlu0 %v446, 73
  %v449 = vpop.permute.xlu0 %448
  %451 = vst.msk [vmem:[#allocation4 + $0x70] sm:$0xff] %vm370, %v449
  %v452 = vld [vmem:[#allocation2] sm:$0xff]
  %454 = vrot.lane.b32.xlu0 %v452, 57
  %v455 = vpop.permute.xlu0 %454
  %457 = vst.msk [vmem:[#allocation4 + $0x78] sm:$0xff] %vm370, %v455
  %v458 = vld [vmem:[#allocation2] sm:$0xff]
  %460 = vrot.lane.b32.xlu0 %v458, 56
  %v461 = vpop.permute.xlu0 %460
  %463 = vst.msk [vmem:[#allocation4 + $0x80] sm:$0xff] %vm370, %v461
  %v464 = vld [vmem:[#allocation2] sm:$0xff]
  %466 = vrot.lane.b32.xlu0 %v464, 55
  %v467 = vpop.permute.xlu0 %466
  %469 = vst.msk [vmem:[#allocation4 + $0x88] sm:$0xff] %vm370, %v467
  %v470 = vld [vmem:[#allocation2] sm:$0xff]
  %472 = vrot.lane.b32.xlu0 %v470, 39
  %v473 = vpop.permute.xlu0 %472
  %475 = vst.msk [vmem:[#allocation4 + $0x90] sm:$0xff] %vm370, %v473
  %v476 = vld [vmem:[#allocation2] sm:$0xff]
  %478 = vrot.lane.b32.xlu0 %v476, 38
  %v479 = vpop.permute.xlu0 %478
  %481 = vst.msk [vmem:[#allocation4 + $0x98] sm:$0xff] %vm370, %v479
  %v482 = vld [vmem:[#allocation2] sm:$0xff]
  %484 = vrot.lane.b32.xlu0 %v482, 37
  %v485 = vpop.permute.xlu0 %484
  %487 = vst.msk [vmem:[#allocation4 + $0xa0] sm:$0xff] %vm370, %v485
  %v488 = vld [vmem:[#allocation2] sm:$0xff]
  %v489 = vld [vmem:[#allocation2 + $0x8] sm:$0xff]
  %492 = vrot.lane.b32.xlu0 %v488, 21
  %v493 = vpop.permute.xlu0 %492
  %494 = vrot.lane.b32.xlu0 %v489, 21
  %v495 = vpop.permute.xlu0 %494
  %vm496 = vcmask 171008
  %v497 = vsel %vm496, %v493, %v495
  %499 = vst.msk [vmem:[#allocation4 + $0xa8] sm:$0xff] %vm370, %v497
  %v500 = vld [vmem:[#allocation2] sm:$0xff]
  %v501 = vld [vmem:[#allocation2 + $0x8] sm:$0xff]
  %504 = vrot.lane.b32.xlu0 %v500, 20
  %v505 = vpop.permute.xlu0 %504
  %506 = vrot.lane.b32.xlu0 %v501, 20
  %v507 = vpop.permute.xlu0 %506
  %vm508 = vcmask 162816
  %v509 = vsel %vm508, %v505, %v507
  %511 = vst.msk [vmem:[#allocation4 + $0xb0] sm:$0xff] %vm370, %v509
  %v512 = vld [vmem:[#allocation2 + $0x8] sm:$0xff]
  %514 = vrot.lane.b32.xlu0 %v512, 19
  %v515 = vpop.permute.xlu0 %514
  %517 = vst.msk [vmem:[#allocation4 + $0xb8] sm:$0xff] %vm370, %v515
  %v518 = vld [vmem:[#allocation2 + $0x8] sm:$0xff]
  %520 = vrot.lane.b32.xlu0 %v518, 3
  %v521 = vpop.permute.xlu0 %520
  %523 = vst.msk [vmem:[#allocation4 + $0xc0] sm:$0xff] %vm370, %v521
  %v524 = vld [vmem:[#allocation2 + $0x8] sm:$0xff]
  %526 = vrot.lane.b32.xlu0 %v524, 2
  %v527 = vpop.permute.xlu0 %526
  %529 = vst.msk [vmem:[#allocation4 + $0xc8] sm:$0xff] %vm370, %v527
  %v530 = vld [vmem:[#allocation2 + $0x8] sm:$0xff]
  %532 = vrot.lane.b32.xlu0 %v530, 1
  %v533 = vpop.permute.xlu0 %532
  %535 = vst.msk [vmem:[#allocation4 + $0xd0] sm:$0xff] %vm370, %v533
  %v536 = vld [vmem:[#allocation2 + $0x8] sm:$0xff]
  %538 = vrot.lane.b32.xlu0 %v536, 113
  %v539 = vpop.permute.xlu0 %538
  %541 = vst.msk [vmem:[#allocation4 + $0xd8] sm:$0xff] %vm370, %v539
  %v542 = vld [vmem:[#allocation2 + $0x8] sm:$0xff]
  %544 = vrot.lane.b32.xlu0 %v542, 112
  %v545 = vpop.permute.xlu0 %544
  %547 = vst.msk [vmem:[#allocation4 + $0xe0] sm:$0xff] %vm370, %v545
  %v548 = vld [vmem:[#allocation2 + $0x8] sm:$0xff]
  %550 = vrot.lane.b32.xlu0 %v548, 111
  %v551 = vpop.permute.xlu0 %550
  %553 = vst.msk [vmem:[#allocation4 + $0xe8] sm:$0xff] %vm370, %v551
  %v554 = vld [vmem:[#allocation2 + $0x8] sm:$0xff]
  %556 = vrot.lane.b32.xlu0 %v554, 95
  %v557 = vpop.permute.xlu0 %556
  %559 = vst.msk [vmem:[#allocation4 + $0xf0] sm:$0xff] %vm370, %v557
  %v560 = vld [vmem:[#allocation2 + $0x8] sm:$0xff]
  %562 = vrot.lane.b32.xlu0 %v560, 94
  %v563 = vpop.permute.xlu0 %562
  %565 = vst.msk [vmem:[#allocation4 + $0xf8] sm:$0xff] %vm370, %v563
  %v566 = vld [vmem:[#allocation2 + $0x8] sm:$0xff]
  %568 = vrot.lane.b32.xlu0 %v566, 93
  %v569 = vpop.permute.xlu0 %568
  %571 = vst.msk [vmem:[#allocation4 + $0x100] sm:$0xff] %vm370, %v569
  %v572 = vld [vmem:[#allocation2 + $0x8] sm:$0xff]
  %574 = vrot.lane.b32.xlu0 %v572, 77
  %v575 = vpop.permute.xlu0 %574
  %577 = vst.msk [vmem:[#allocation4 + $0x108] sm:$0xff] %vm370, %v575
  %v578 = vld [vmem:[#allocation2 + $0x8] sm:$0xff]
  %580 = vrot.lane.b32.xlu0 %v578, 76
  %v581 = vpop.permute.xlu0 %580
  %583 = vst.msk [vmem:[#allocation4 + $0x110] sm:$0xff] %vm370, %v581
  %v584 = vld [vmem:[#allocation2 + $0x8] sm:$0xff]
  %586 = vrot.lane.b32.xlu0 %v584, 75
  %v587 = vpop.permute.xlu0 %586
  %589 = vst.msk [vmem:[#allocation4 + $0x118] sm:$0xff] %vm370, %v587
  %v590 = vld [vmem:[#allocation2 + $0x8] sm:$0xff]
  %592 = vrot.lane.b32.xlu0 %v590, 59
  %v593 = vpop.permute.xlu0 %592
  %595 = vst.msk [vmem:[#allocation4 + $0x120] sm:$0xff] %vm370, %v593
  %v596 = vld [vmem:[#allocation2 + $0x8] sm:$0xff]
  %598 = vrot.lane.b32.xlu0 %v596, 58
  %v599 = vpop.permute.xlu0 %598
  %601 = vst.msk [vmem:[#allocation4 + $0x128] sm:$0xff] %vm370, %v599
  %v602 = vld [vmem:[#allocation2 + $0x8] sm:$0xff]
  %604 = vrot.lane.b32.xlu0 %v602, 57
  %v605 = vpop.permute.xlu0 %604
  %607 = vst.msk [vmem:[#allocation4 + $0x130] sm:$0xff] %vm370, %v605
  %v608 = vld [vmem:[#allocation2 + $0x8] sm:$0xff]
  %610 = vrot.lane.b32.xlu0 %v608, 41
  %v611 = vpop.permute.xlu0 %610
  %613 = vst.msk [vmem:[#allocation4 + $0x138] sm:$0xff] %vm370, %v611
  %v614 = vld [vmem:[#allocation2 + $0x8] sm:$0xff]
  %616 = vrot.lane.b32.xlu0 %v614, 40
  %v617 = vpop.permute.xlu0 %616
  %619 = vst.msk [vmem:[#allocation4 + $0x140] sm:$0xff] %vm370, %v617
  %v620 = vld [vmem:[#allocation2 + $0x8] sm:$0xff]
  %622 = vrot.lane.b32.xlu0 %v620, 39
  %v623 = vpop.permute.xlu0 %622
  %625 = vst.msk [vmem:[#allocation4 + $0x148] sm:$0xff] %vm370, %v623
  %v626 = vld [vmem:[#allocation2 + $0x8] sm:$0xff]
  %v627 = vld [vmem:[#allocation2 + $0x10] sm:$0xff]
  %630 = vrot.lane.b32.xlu0 %v626, 23
  %v631 = vpop.permute.xlu0 %630
  %632 = vrot.lane.b32.xlu0 %v627, 23
  %v633 = vpop.permute.xlu0 %632
  %vm634 = vcmask 187392
  %v635 = vsel %vm634, %v631, %v633
  %637 = vst.msk [vmem:[#allocation4 + $0x150] sm:$0xff] %vm370, %v635
  %v638 = vld [vmem:[#allocation2 + $0x8] sm:$0xff]
  %v639 = vld [vmem:[#allocation2 + $0x10] sm:$0xff]
  %642 = vrot.lane.b32.xlu0 %v638, 22
  %v643 = vpop.permute.xlu0 %642
  %644 = vrot.lane.b32.xlu0 %v639, 22
  %v645 = vpop.permute.xlu0 %644
  %vm646 = vcmask 179200
  %v647 = vsel %vm646, %v643, %v645
  %649 = vst.msk [vmem:[#allocation4 + $0x158] sm:$0xff] %vm370, %v647
  %v650 = vld [vmem:[#allocation2 + $0x8] sm:$0xff]
  %v651 = vld [vmem:[#allocation2 + $0x10] sm:$0xff]
  %654 = vrot.lane.b32.xlu0 %v650, 21
  %v655 = vpop.permute.xlu0 %654
  %656 = vrot.lane.b32.xlu0 %v651, 21
  %v657 = vpop.permute.xlu0 %656
  %v658 = vsel %vm496, %v655, %v657
  %660 = vst.msk [vmem:[#allocation4 + $0x160] sm:$0xff] %vm370, %v658
  %v661 = vld [vmem:[#allocation2 + $0x10] sm:$0xff]
  %663 = vrot.lane.b32.xlu0 %v661, 5
  %v664 = vpop.permute.xlu0 %663
  %666 = vst.msk [vmem:[#allocation4 + $0x168] sm:$0xff] %vm370, %v664
  %v667 = vld [vmem:[#allocation2 + $0x10] sm:$0xff]
  %669 = vrot.lane.b32.xlu0 %v667, 4
  %v670 = vpop.permute.xlu0 %669
  %672 = vst.msk [vmem:[#allocation4 + $0x170] sm:$0xff] %vm370, %v670
  %v673 = vld [vmem:[#allocation2 + $0x10] sm:$0xff]
  %675 = vrot.lane.b32.xlu0 %v673, 3
  %v676 = vpop.permute.xlu0 %675
  %678 = vst.msk [vmem:[#allocation4 + $0x178] sm:$0xff] %vm370, %v676
  %v679 = vld [vmem:[#allocation2 + $0x10] sm:$0xff]
  %681 = vrot.lane.b32.xlu0 %v679, 115
  %v682 = vpop.permute.xlu0 %681
  %684 = vst.msk [vmem:[#allocation4 + $0x180] sm:$0xff] %vm370, %v682
  %v685 = vld [vmem:[#allocation2 + $0x10] sm:$0xff]
  %687 = vrot.lane.b32.xlu0 %v685, 114
  %v688 = vpop.permute.xlu0 %687
  %690 = vst.msk [vmem:[#allocation4 + $0x188] sm:$0xff] %vm370, %v688
  %v691 = vld [vmem:[#allocation2 + $0x10] sm:$0xff]
  %693 = vrot.lane.b32.xlu0 %v691, 113
  %v694 = vpop.permute.xlu0 %693
  %696 = vst.msk [vmem:[#allocation4 + $0x190] sm:$0xff] %vm370, %v694
  %v697 = vld [vmem:[#allocation2 + $0x10] sm:$0xff]
  %699 = vrot.lane.b32.xlu0 %v697, 97
  %v700 = vpop.permute.xlu0 %699
  %702 = vst.msk [vmem:[#allocation4 + $0x198] sm:$0xff] %vm370, %v700
  %v703 = vld [vmem:[#allocation2 + $0x10] sm:$0xff]
  %705 = vrot.lane.b32.xlu0 %v703, 96
  %v706 = vpop.permute.xlu0 %705
  %708 = vst.msk [vmem:[#allocation4 + $0x1a0] sm:$0xff] %vm370, %v706
  %v709 = vld [vmem:[#allocation2 + $0x10] sm:$0xff]
  %711 = vrot.lane.b32.xlu0 %v709, 95
  %v712 = vpop.permute.xlu0 %711
  %714 = vst.msk [vmem:[#allocation4 + $0x1a8] sm:$0xff] %vm370, %v712
  %v715 = vld [vmem:[#allocation2 + $0x10] sm:$0xff]
  %717 = vrot.lane.b32.xlu0 %v715, 79
  %v718 = vpop.permute.xlu0 %717
  %720 = vst.msk [vmem:[#allocation4 + $0x1b0] sm:$0xff] %vm370, %v718
  %v721 = vld [vmem:[#allocation2 + $0x10] sm:$0xff]
  %723 = vrot.lane.b32.xlu0 %v721, 78
  %v724 = vpop.permute.xlu0 %723
  %726 = vst.msk [vmem:[#allocation4 + $0x1b8] sm:$0xff] %vm370, %v724
  %v727 = vld [vmem:[#allocation2 + $0x10] sm:$0xff]
  %729 = vrot.lane.b32.xlu0 %v727, 77
  %v730 = vpop.permute.xlu0 %729
  %732 = vst.msk [vmem:[#allocation4 + $0x1c0] sm:$0xff] %vm370, %v730
  %v733 = vld [vmem:[#allocation2 + $0x10] sm:$0xff]
  %735 = vrot.lane.b32.xlu0 %v733, 61
  %v736 = vpop.permute.xlu0 %735
  %738 = vst.msk [vmem:[#allocation4 + $0x1c8] sm:$0xff] %vm370, %v736
  %v739 = vld [vmem:[#allocation2 + $0x10] sm:$0xff]
  %741 = vrot.lane.b32.xlu0 %v739, 60
  %v742 = vpop.permute.xlu0 %741
  %744 = vst.msk [vmem:[#allocation4 + $0x1d0] sm:$0xff] %vm370, %v742
  %v745 = vld [vmem:[#allocation2 + $0x10] sm:$0xff]
  %747 = vrot.lane.b32.xlu0 %v745, 59
  %v748 = vpop.permute.xlu0 %747
  %750 = vst.msk [vmem:[#allocation4 + $0x1d8] sm:$0xff] %vm370, %v748
  %v751 = vld [vmem:[#allocation2 + $0x10] sm:$0xff]
  %753 = vrot.lane.b32.xlu0 %v751, 97
  %v754 = vpop.permute.xlu0 %753
  %vm756 = vcmask 728648
  %757 = vst.msk [vmem:[#allocation4] sm:$0xff] %vm756, %v754
  %v758 = vld [vmem:[#allocation2 + $0x10] sm:$0xff]
  %760 = vrot.lane.b32.xlu0 %v758, 96
  %v761 = vpop.permute.xlu0 %760
  %763 = vst.msk [vmem:[#allocation4 + $0x8] sm:$0xff] %vm756, %v761
  %v764 = vld [vmem:[#allocation2 + $0x10] sm:$0xff]
  %766 = vrot.lane.b32.xlu0 %v764, 95
  %v767 = vpop.permute.xlu0 %766
  %769 = vst.msk [vmem:[#allocation4 + $0x10] sm:$0xff] %vm756, %v767
  %v770 = vld [vmem:[#allocation2 + $0x10] sm:$0xff]
  %v771 = vld [vmem:[#allocation2 + $0x18] sm:$0xff]
  %774 = vrot.lane.b32.xlu0 %v770, 79
  %v775 = vpop.permute.xlu0 %774
  %776 = vrot.lane.b32.xlu0 %v771, 79
  %v777 = vpop.permute.xlu0 %776
  %vm778 = vcmask 646144
  %v779 = vsel %vm778, %v775, %v777
  %781 = vst.msk [vmem:[#allocation4 + $0x18] sm:$0xff] %vm756, %v779
  %v782 = vld [vmem:[#allocation2 + $0x10] sm:$0xff]
  %v783 = vld [vmem:[#allocation2 + $0x18] sm:$0xff]
  %786 = vrot.lane.b32.xlu0 %v782, 78
  %v787 = vpop.permute.xlu0 %786
  %788 = vrot.lane.b32.xlu0 %v783, 78
  %v789 = vpop.permute.xlu0 %788
  %vm790 = vcmask 637952
  %v791 = vsel %vm790, %v787, %v789
  %793 = vst.msk [vmem:[#allocation4 + $0x20] sm:$0xff] %vm756, %v791
  %v794 = vld [vmem:[#allocation2 + $0x10] sm:$0xff]
  %v795 = vld [vmem:[#allocation2 + $0x18] sm:$0xff]
  %798 = vrot.lane.b32.xlu0 %v794, 77
  %v799 = vpop.permute.xlu0 %798
  %800 = vrot.lane.b32.xlu0 %v795, 77
  %v801 = vpop.permute.xlu0 %800
  %vm802 = vcmask 629760
  %v803 = vsel %vm802, %v799, %v801
  %805 = vst.msk [vmem:[#allocation4 + $0x28] sm:$0xff] %vm756, %v803
  %v806 = vld [vmem:[#allocation2 + $0x18] sm:$0xff]
  %808 = vrot.lane.b32.xlu0 %v806, 61
  %v809 = vpop.permute.xlu0 %808
  %811 = vst.msk [vmem:[#allocation4 + $0x30] sm:$0xff] %vm756, %v809
  %v812 = vld [vmem:[#allocation2 + $0x18] sm:$0xff]
  %814 = vrot.lane.b32.xlu0 %v812, 60
  %v815 = vpop.permute.xlu0 %814
  %817 = vst.msk [vmem:[#allocation4 + $0x38] sm:$0xff] %vm756, %v815
  %v818 = vld [vmem:[#allocation2 + $0x18] sm:$0xff]
  %820 = vrot.lane.b32.xlu0 %v818, 59
  %v821 = vpop.permute.xlu0 %820
  %823 = vst.msk [vmem:[#allocation4 + $0x40] sm:$0xff] %vm756, %v821
  %v824 = vld [vmem:[#allocation2 + $0x18] sm:$0xff]
  %826 = vrot.lane.b32.xlu0 %v824, 43
  %v827 = vpop.permute.xlu0 %826
  %829 = vst.msk [vmem:[#allocation4 + $0x48] sm:$0xff] %vm756, %v827
  %v830 = vld [vmem:[#allocation2 + $0x18] sm:$0xff]
  %832 = vrot.lane.b32.xlu0 %v830, 42
  %v833 = vpop.permute.xlu0 %832
  %835 = vst.msk [vmem:[#allocation4 + $0x50] sm:$0xff] %vm756, %v833
  %v836 = vld [vmem:[#allocation2 + $0x18] sm:$0xff]
  %838 = vrot.lane.b32.xlu0 %v836, 41
  %v839 = vpop.permute.xlu0 %838
  %841 = vst.msk [vmem:[#allocation4 + $0x58] sm:$0xff] %vm756, %v839
  %v842 = vld [vmem:[#allocation2 + $0x18] sm:$0xff]
  %844 = vrot.lane.b32.xlu0 %v842, 25
  %v845 = vpop.permute.xlu0 %844
  %847 = vst.msk [vmem:[#allocation4 + $0x60] sm:$0xff] %vm756, %v845
  %v848 = vld [vmem:[#allocation2 + $0x18] sm:$0xff]
  %850 = vrot.lane.b32.xlu0 %v848, 24
  %v851 = vpop.permute.xlu0 %850
  %853 = vst.msk [vmem:[#allocation4 + $0x68] sm:$0xff] %vm756, %v851
  %v854 = vld [vmem:[#allocation2 + $0x18] sm:$0xff]
  %856 = vrot.lane.b32.xlu0 %v854, 23
  %v857 = vpop.permute.xlu0 %856
  %859 = vst.msk [vmem:[#allocation4 + $0x70] sm:$0xff] %vm756, %v857
  %v860 = vld [vmem:[#allocation2 + $0x18] sm:$0xff]
  %862 = vrot.lane.b32.xlu0 %v860, 7
  %v863 = vpop.permute.xlu0 %862
  %865 = vst.msk [vmem:[#allocation4 + $0x78] sm:$0xff] %vm756, %v863
  %v866 = vld [vmem:[#allocation2 + $0x18] sm:$0xff]
  %868 = vrot.lane.b32.xlu0 %v866, 6
  %v869 = vpop.permute.xlu0 %868
  %871 = vst.msk [vmem:[#allocation4 + $0x80] sm:$0xff] %vm756, %v869
  %v872 = vld [vmem:[#allocation2 + $0x18] sm:$0xff]
  %874 = vrot.lane.b32.xlu0 %v872, 5
  %v875 = vpop.permute.xlu0 %874
  %877 = vst.msk [vmem:[#allocation4 + $0x88] sm:$0xff] %vm756, %v875
  %v878 = vld [vmem:[#allocation2 + $0x18] sm:$0xff]
  %880 = vrot.lane.b32.xlu0 %v878, 117
  %v881 = vpop.permute.xlu0 %880
  %883 = vst.msk [vmem:[#allocation4 + $0x90] sm:$0xff] %vm756, %v881
  %v884 = vld [vmem:[#allocation2 + $0x18] sm:$0xff]
  %886 = vrot.lane.b32.xlu0 %v884, 116
  %v887 = vpop.permute.xlu0 %886
  %889 = vst.msk [vmem:[#allocation4 + $0x98] sm:$0xff] %vm756, %v887
  %v890 = vld [vmem:[#allocation2 + $0x18] sm:$0xff]
  %892 = vrot.lane.b32.xlu0 %v890, 115
  %v893 = vpop.permute.xlu0 %892
  %895 = vst.msk [vmem:[#allocation4 + $0xa0] sm:$0xff] %vm756, %v893
  %v896 = vld [vmem:[#allocation2 + $0x18] sm:$0xff]
  %898 = vrot.lane.b32.xlu0 %v896, 99
  %v899 = vpop.permute.xlu0 %898
  %901 = vst.msk [vmem:[#allocation4 + $0xa8] sm:$0xff] %vm756, %v899
  %v902 = vld [vmem:[#allocation2 + $0x18] sm:$0xff]
  %904 = vrot.lane.b32.xlu0 %v902, 98
  %v905 = vpop.permute.xlu0 %904
  %907 = vst.msk [vmem:[#allocation4 + $0xb0] sm:$0xff] %vm756, %v905
  %v908 = vld [vmem:[#allocation2 + $0x18] sm:$0xff]
  %910 = vrot.lane.b32.xlu0 %v908, 97
  %v911 = vpop.permute.xlu0 %910
  %913 = vst.msk [vmem:[#allocation4 + $0xb8] sm:$0xff] %vm756, %v911
  %v914 = vld [vmem:[#allocation2 + $0x18] sm:$0xff]
  %v915 = vld [vmem:[#allocation2 + $0x20] sm:$0xff]
  %918 = vrot.lane.b32.xlu0 %v914, 81
  %v919 = vpop.permute.xlu0 %918
  %920 = vrot.lane.b32.xlu0 %v915, 81
  %v921 = vpop.permute.xlu0 %920
  %vm922 = vcmask 662528
  %v923 = vsel %vm922, %v919, %v921
  %925 = vst.msk [vmem:[#allocation4 + $0xc0] sm:$0xff] %vm756, %v923
  %v926 = vld [vmem:[#allocation2 + $0x18] sm:$0xff]
  %v927 = vld [vmem:[#allocation2 + $0x20] sm:$0xff]
  %930 = vrot.lane.b32.xlu0 %v926, 80
  %v931 = vpop.permute.xlu0 %930
  %932 = vrot.lane.b32.xlu0 %v927, 80
  %v933 = vpop.permute.xlu0 %932
  %vm934 = vcmask 654336
  %v935 = vsel %vm934, %v931, %v933
  %937 = vst.msk [vmem:[#allocation4 + $0xc8] sm:$0xff] %vm756, %v935
  %v938 = vld [vmem:[#allocation2 + $0x18] sm:$0xff]
  %v939 = vld [vmem:[#allocation2 + $0x20] sm:$0xff]
  %942 = vrot.lane.b32.xlu0 %v938, 79
  %v943 = vpop.permute.xlu0 %942
  %944 = vrot.lane.b32.xlu0 %v939, 79
  %v945 = vpop.permute.xlu0 %944
  %v946 = vsel %vm778, %v943, %v945
  %948 = vst.msk [vmem:[#allocation4 + $0xd0] sm:$0xff] %vm756, %v946
  %v949 = vld [vmem:[#allocation2 + $0x20] sm:$0xff]
  %951 = vrot.lane.b32.xlu0 %v949, 63
  %v952 = vpop.permute.xlu0 %951
  %954 = vst.msk [vmem:[#allocation4 + $0xd8] sm:$0xff] %vm756, %v952
  %v955 = vld [vmem:[#allocation2 + $0x20] sm:$0xff]
  %957 = vrot.lane.b32.xlu0 %v955, 62
  %v958 = vpop.permute.xlu0 %957
  %960 = vst.msk [vmem:[#allocation4 + $0xe0] sm:$0xff] %vm756, %v958
  %v961 = vld [vmem:[#allocation2 + $0x20] sm:$0xff]
  %963 = vrot.lane.b32.xlu0 %v961, 61
  %v964 = vpop.permute.xlu0 %963
  %966 = vst.msk [vmem:[#allocation4 + $0xe8] sm:$0xff] %vm756, %v964
  %v967 = vld [vmem:[#allocation2 + $0x20] sm:$0xff]
  %969 = vrot.lane.b32.xlu0 %v967, 45
  %v970 = vpop.permute.xlu0 %969
  %972 = vst.msk [vmem:[#allocation4 + $0xf0] sm:$0xff] %vm756, %v970
  %v973 = vld [vmem:[#allocation2 + $0x20] sm:$0xff]
  %975 = vrot.lane.b32.xlu0 %v973, 44
  %v976 = vpop.permute.xlu0 %975
  %978 = vst.msk [vmem:[#allocation4 + $0xf8] sm:$0xff] %vm756, %v976
  %v979 = vld [vmem:[#allocation2 + $0x20] sm:$0xff]
  %981 = vrot.lane.b32.xlu0 %v979, 43
  %v982 = vpop.permute.xlu0 %981
  %984 = vst.msk [vmem:[#allocation4 + $0x100] sm:$0xff] %vm756, %v982
  %v985 = vld [vmem:[#allocation2 + $0x20] sm:$0xff]
  %987 = vrot.lane.b32.xlu0 %v985, 27
  %v988 = vpop.permute.xlu0 %987
  %990 = vst.msk [vmem:[#allocation4 + $0x108] sm:$0xff] %vm756, %v988
  %v991 = vld [vmem:[#allocation2 + $0x20] sm:$0xff]
  %993 = vrot.lane.b32.xlu0 %v991, 26
  %v994 = vpop.permute.xlu0 %993
  %996 = vst.msk [vmem:[#allocation4 + $0x110] sm:$0xff] %vm756, %v994
  %v997 = vld [vmem:[#allocation2 + $0x20] sm:$0xff]
  %999 = vrot.lane.b32.xlu0 %v997, 25
  %v1000 = vpop.permute.xlu0 %999
  %1002 = vst.msk [vmem:[#allocation4 + $0x118] sm:$0xff] %vm756, %v1000
  %v1003 = vld [vmem:[#allocation2 + $0x20] sm:$0xff]
  %1005 = vrot.lane.b32.xlu0 %v1003, 9
  %v1006 = vpop.permute.xlu0 %1005
  %1008 = vst.msk [vmem:[#allocation4 + $0x120] sm:$0xff] %vm756, %v1006
  %v1009 = vld [vmem:[#allocation2 + $0x20] sm:$0xff]
  %1011 = vrot.lane.b32.xlu0 %v1009, 8
  %v1012 = vpop.permute.xlu0 %1011
  %1014 = vst.msk [vmem:[#allocation4 + $0x128] sm:$0xff] %vm756, %v1012
  %v1015 = vld [vmem:[#allocation2 + $0x20] sm:$0xff]
  %1017 = vrot.lane.b32.xlu0 %v1015, 7
  %v1018 = vpop.permute.xlu0 %1017
  %1020 = vst.msk [vmem:[#allocation4 + $0x130] sm:$0xff] %vm756, %v1018
  %v1021 = vld [vmem:[#allocation2 + $0x20] sm:$0xff]
  %1023 = vrot.lane.b32.xlu0 %v1021, 119
  %v1024 = vpop.permute.xlu0 %1023
  %1026 = vst.msk [vmem:[#allocation4 + $0x138] sm:$0xff] %vm756, %v1024
  %v1027 = vld [vmem:[#allocation2 + $0x20] sm:$0xff]
  %1029 = vrot.lane.b32.xlu0 %v1027, 118
  %v1030 = vpop.permute.xlu0 %1029
  %1032 = vst.msk [vmem:[#allocation4 + $0x140] sm:$0xff] %vm756, %v1030
  %v1033 = vld [vmem:[#allocation2 + $0x20] sm:$0xff]
  %1035 = vrot.lane.b32.xlu0 %v1033, 117
  %v1036 = vpop.permute.xlu0 %1035
  %1038 = vst.msk [vmem:[#allocation4 + $0x148] sm:$0xff] %vm756, %v1036
  %v1039 = vld [vmem:[#allocation2 + $0x20] sm:$0xff]
  %1041 = vrot.lane.b32.xlu0 %v1039, 101
  %v1042 = vpop.permute.xlu0 %1041
  %1044 = vst.msk [vmem:[#allocation4 + $0x150] sm:$0xff] %vm756, %v1042
  %v1045 = vld [vmem:[#allocation2 + $0x20] sm:$0xff]
  %1047 = vrot.lane.b32.xlu0 %v1045, 100
  %v1048 = vpop.permute.xlu0 %1047
  %1050 = vst.msk [vmem:[#allocation4 + $0x158] sm:$0xff] %vm756, %v1048
  %v1051 = vld [vmem:[#allocation2 + $0x20] sm:$0xff]
  %1053 = vrot.lane.b32.xlu0 %v1051, 99
  %v1054 = vpop.permute.xlu0 %1053
  %1056 = vst.msk [vmem:[#allocation4 + $0x160] sm:$0xff] %vm756, %v1054
  %v1057 = vld [vmem:[#allocation2 + $0x20] sm:$0xff]
  %v1058 = vld [vmem:[#allocation2 + $0x28] sm:$0xff]
  %1061 = vrot.lane.b32.xlu0 %v1057, 83
  %v1062 = vpop.permute.xlu0 %1061
  %1063 = vrot.lane.b32.xlu0 %v1058, 83
  %v1064 = vpop.permute.xlu0 %1063
  %vm1065 = vcmask 678912
  %v1066 = vsel %vm1065, %v1062, %v1064
  %1068 = vst.msk [vmem:[#allocation4 + $0x168] sm:$0xff] %vm756, %v1066
  %v1069 = vld [vmem:[#allocation2 + $0x20] sm:$0xff]
  %v1070 = vld [vmem:[#allocation2 + $0x28] sm:$0xff]
  %1073 = vrot.lane.b32.xlu0 %v1069, 82
  %v1074 = vpop.permute.xlu0 %1073
  %1075 = vrot.lane.b32.xlu0 %v1070, 82
  %v1076 = vpop.permute.xlu0 %1075
  %vm1077 = vcmask 670720
  %v1078 = vsel %vm1077, %v1074, %v1076
  %1080 = vst.msk [vmem:[#allocation4 + $0x170] sm:$0xff] %vm756, %v1078
  %v1081 = vld [vmem:[#allocation2 + $0x20] sm:$0xff]
  %v1082 = vld [vmem:[#allocation2 + $0x28] sm:$0xff]
  %1085 = vrot.lane.b32.xlu0 %v1081, 81
  %v1086 = vpop.permute.xlu0 %1085
  %1087 = vrot.lane.b32.xlu0 %v1082, 81
  %v1088 = vpop.permute.xlu0 %1087
  %v1089 = vsel %vm922, %v1086, %v1088
  %1091 = vst.msk [vmem:[#allocation4 + $0x178] sm:$0xff] %vm756, %v1089
  %v1092 = vld [vmem:[#allocation2 + $0x28] sm:$0xff]
  %1094 = vrot.lane.b32.xlu0 %v1092, 65
  %v1095 = vpop.permute.xlu0 %1094
  %1097 = vst.msk [vmem:[#allocation4 + $0x180] sm:$0xff] %vm756, %v1095
  %v1098 = vld [vmem:[#allocation2 + $0x28] sm:$0xff]
  %1100 = vrot.lane.b32.xlu0 %v1098, 64
  %v1101 = vpop.permute.xlu0 %1100
  %1103 = vst.msk [vmem:[#allocation4 + $0x188] sm:$0xff] %vm756, %v1101
  %v1104 = vld [vmem:[#allocation2 + $0x28] sm:$0xff]
  %1106 = vrot.lane.b32.xlu0 %v1104, 63
  %v1107 = vpop.permute.xlu0 %1106
  %1109 = vst.msk [vmem:[#allocation4 + $0x190] sm:$0xff] %vm756, %v1107
  %v1110 = vld [vmem:[#allocation2 + $0x28] sm:$0xff]
  %1112 = vrot.lane.b32.xlu0 %v1110, 47
  %v1113 = vpop.permute.xlu0 %1112
  %1115 = vst.msk [vmem:[#allocation4 + $0x198] sm:$0xff] %vm756, %v1113
  %v1116 = vld [vmem:[#allocation2 + $0x28] sm:$0xff]
  %1118 = vrot.lane.b32.xlu0 %v1116, 46
  %v1119 = vpop.permute.xlu0 %1118
  %1121 = vst.msk [vmem:[#allocation4 + $0x1a0] sm:$0xff] %vm756, %v1119
  %v1122 = vld [vmem:[#allocation2 + $0x28] sm:$0xff]
  %1124 = vrot.lane.b32.xlu0 %v1122, 45
  %v1125 = vpop.permute.xlu0 %1124
  %1127 = vst.msk [vmem:[#allocation4 + $0x1a8] sm:$0xff] %vm756, %v1125
  %v1128 = vld [vmem:[#allocation2 + $0x28] sm:$0xff]
  %1130 = vrot.lane.b32.xlu0 %v1128, 29
  %v1131 = vpop.permute.xlu0 %1130
  %1133 = vst.msk [vmem:[#allocation4 + $0x1b0] sm:$0xff] %vm756, %v1131
  %v1134 = vld [vmem:[#allocation2 + $0x28] sm:$0xff]
  %1136 = vrot.lane.b32.xlu0 %v1134, 28
  %v1137 = vpop.permute.xlu0 %1136
  %1139 = vst.msk [vmem:[#allocation4 + $0x1b8] sm:$0xff] %vm756, %v1137
  %v1140 = vld [vmem:[#allocation2 + $0x28] sm:$0xff]
  %1142 = vrot.lane.b32.xlu0 %v1140, 27
  %v1143 = vpop.permute.xlu0 %1142
  %1145 = vst.msk [vmem:[#allocation4 + $0x1c0] sm:$0xff] %vm756, %v1143
  %v1146 = vld [vmem:[#allocation2 + $0x28] sm:$0xff]
  %1148 = vrot.lane.b32.xlu0 %v1146, 11
  %v1149 = vpop.permute.xlu0 %1148
  %1151 = vst.msk [vmem:[#allocation4 + $0x1c8] sm:$0xff] %vm756, %v1149
  %v1152 = vld [vmem:[#allocation2 + $0x28] sm:$0xff]
  %1154 = vrot.lane.b32.xlu0 %v1152, 10
  %v1155 = vpop.permute.xlu0 %1154
  %1157 = vst.msk [vmem:[#allocation4 + $0x1d0] sm:$0xff] %vm756, %v1155
  %v1158 = vld [vmem:[#allocation2 + $0x28] sm:$0xff]
  %1160 = vrot.lane.b32.xlu0 %v1158, 9
  %v1161 = vpop.permute.xlu0 %1160
  %1163 = vst.msk [vmem:[#allocation4 + $0x1d8] sm:$0xff] %vm756, %v1161
  %v1164 = vld [vmem:[%s2] sm:$0xff]
  %v1165 = vld [vmem:[%s2 + $0x8] sm:$0xff]
  %v1166 = vld [vmem:[%s2 + $0x10] sm:$0xff]
  %v1167 = vld [vmem:[%s2 + $0x18] sm:$0xff]
  %v1168 = vld [vmem:[#allocation4] sm:$0xff]
  %v1169 = vld [vmem:[#allocation4 + $0x8] sm:$0xff]
  %v1170 = vld [vmem:[#allocation4 + $0x10] sm:$0xff]
  %v1171 = vld [vmem:[#allocation4 + $0x18] sm:$0xff]
  %v1172 = vld [vmem:[#allocation4 + $0x20] sm:$0xff]
  %v1173 = vld [vmem:[#allocation4 + $0x28] sm:$0xff]
  %v1174 = vld [vmem:[#allocation4 + $0x30] sm:$0xff]
  %v1175 = vld [vmem:[#allocation4 + $0x38] sm:$0xff]
  %v1176 = vld [vmem:[#allocation4 + $0x40] sm:$0xff]
  %v1177 = vld [vmem:[#allocation4 + $0x48] sm:$0xff]
  %v1178 = vld [vmem:[#allocation4 + $0x50] sm:$0xff]
  %v1179 = vld [vmem:[#allocation4 + $0x58] sm:$0xff]
  %v1180 = vld [vmem:[#allocation4 + $0x60] sm:$0xff]
  %v1181 = vld [vmem:[#allocation4 + $0x68] sm:$0xff]
  %v1182 = vld [vmem:[#allocation4 + $0x70] sm:$0xff]
  %v1183 = vld [vmem:[#allocation4 + $0x78] sm:$0xff]
  %v1184 = vld [vmem:[#allocation4 + $0x80] sm:$0xff]
  %v1185 = vld [vmem:[#allocation4 + $0x88] sm:$0xff]
  %v1186 = vld [vmem:[#allocation4 + $0x90] sm:$0xff]
  %v1187 = vld [vmem:[#allocation4 + $0x98] sm:$0xff]
  %v1188 = vld [vmem:[#allocation4 + $0xa0] sm:$0xff]
  %v1189 = vld [vmem:[#allocation4 + $0xa8] sm:$0xff]
  %v1190 = vld [vmem:[#allocation4 + $0xb0] sm:$0xff]
  %v1191 = vld [vmem:[#allocation4 + $0xb8] sm:$0xff]
  %v1192 = vld [vmem:[#allocation4 + $0xc0] sm:$0xff]
  %v1193 = vld [vmem:[#allocation4 + $0xc8] sm:$0xff]
  %v1194 = vld [vmem:[#allocation4 + $0xd0] sm:$0xff]
  %v1195 = vld [vmem:[#allocation4 + $0xd8] sm:$0xff]
  %v1196 = vld [vmem:[#allocation4 + $0xe0] sm:$0xff]
  %v1197 = vld [vmem:[#allocation4 + $0xe8] sm:$0xff]
  %v1198 = vld [vmem:[#allocation4 + $0xf0] sm:$0xff]
  %v1199 = vld [vmem:[#allocation4 + $0xf8] sm:$0xff]
  %v1200 = vld [vmem:[#allocation4 + $0x100] sm:$0xff]
  %v1201 = vld [vmem:[#allocation4 + $0x108] sm:$0xff]
  %v1202 = vld [vmem:[#allocation4 + $0x110] sm:$0xff]
  %v1203 = vld [vmem:[#allocation4 + $0x118] sm:$0xff]
  %v1204 = vld [vmem:[#allocation4 + $0x120] sm:$0xff]
  %v1205 = vld [vmem:[#allocation4 + $0x128] sm:$0xff]
  %v1206 = vld [vmem:[#allocation4 + $0x130] sm:$0xff]
  %v1207 = vld [vmem:[#allocation4 + $0x138] sm:$0xff]
  %v1208 = vld [vmem:[#allocation4 + $0x140] sm:$0xff]
  %v1209 = vld [vmem:[#allocation4 + $0x148] sm:$0xff]
  %v1210 = vld [vmem:[#allocation4 + $0x150] sm:$0xff]
  %v1211 = vld [vmem:[#allocation4 + $0x158] sm:$0xff]
  %v1212 = vld [vmem:[#allocation4 + $0x160] sm:$0xff]
  %v1213 = vld [vmem:[#allocation4 + $0x168] sm:$0xff]
  %v1214 = vld [vmem:[#allocation4 + $0x170] sm:$0xff]
  %v1215 = vld [vmem:[#allocation4 + $0x178] sm:$0xff]
  %v1216 = vld [vmem:[#allocation4 + $0x180] sm:$0xff]
  %v1217 = vld [vmem:[#allocation4 + $0x188] sm:$0xff]
  %v1218 = vld [vmem:[#allocation4 + $0x190] sm:$0xff]
  %v1219 = vld [vmem:[#allocation4 + $0x198] sm:$0xff]
  %v1220 = vld [vmem:[#allocation4 + $0x1a0] sm:$0xff]
  %v1221 = vld [vmem:[#allocation4 + $0x1a8] sm:$0xff]
  %v1222 = vld [vmem:[#allocation4 + $0x1b0] sm:$0xff]
  %v1223 = vld [vmem:[#allocation4 + $0x1b8] sm:$0xff]
  %v1224 = vld [vmem:[#allocation4 + $0x1c0] sm:$0xff]
  %v1225 = vld [vmem:[#allocation4 + $0x1c8] sm:$0xff]
  %v1226 = vld [vmem:[#allocation4 + $0x1d0] sm:$0xff]
  %v1227 = vld [vmem:[#allocation4 + $0x1d8] sm:$0xff]
  %vm1228 = vcmask 785408
  %v1230 = vsel %vm1228, %v1167, 0
  %1232 = vmatpush.msra.mxu0 %v1183
  %1233 = vmatpush.msra.mxu0 %v1182
  %1234 = vmatpush.msra.mxu0 %v1181
  %1235 = vmatpush.msra.mxu0 %v1180
  %1236 = vmatpush.msra.mxu0 %v1179
  %1237 = vmatpush.msra.mxu0 %v1178
  %1238 = vmatpush.msra.mxu0 %v1177
  %1239 = vmatpush.msra.mxu0 %v1176
  %1240 = vmatpush.msra.mxu0 %v1175
  %1241 = vmatpush.msra.mxu0 %v1174
  %1242 = vmatpush.msra.mxu0 %v1173
  %1243 = vmatpush.msra.mxu0 %v1172
  %1244 = vmatpush.msra.mxu0 %v1171
  %1245 = vmatpush.msra.mxu0 %v1170
  %1246 = vmatpush.msra.mxu0 %v1169
  %1247 = vmatpush.msra.mxu0 %v1168
  %1248 = vmatmul.f32.gmra.mxu0 %v1164
  %v1249 = vpop.f32.mrf.mxu0
  %v1250 = vadd.f32 0.0, %v1249
  %1251 = vdwg.mxu0
  %1252 = vmatpush.msra.mxu0 %v1199
  %1253 = vmatpush.msra.mxu0 %v1198
  %1254 = vmatpush.msra.mxu0 %v1197
  %1255 = vmatpush.msra.mxu0 %v1196
  %1256 = vmatpush.msra.mxu0 %v1195
  %1257 = vmatpush.msra.mxu0 %v1194
  %1258 = vmatpush.msra.mxu0 %v1193
  %1259 = vmatpush.msra.mxu0 %v1192
  %1260 = vmatpush.msra.mxu0 %v1191
  %1261 = vmatpush.msra.mxu0 %v1190
  %1262 = vmatpush.msra.mxu0 %v1189
  %1263 = vmatpush.msra.mxu0 %v1188
  %1264 = vmatpush.msra.mxu0 %v1187
  %1265 = vmatpush.msra.mxu0 %v1186
  %1266 = vmatpush.msra.mxu0 %v1185
  %1267 = vmatpush.msra.mxu0 %v1184
  %1268 = vmatmul.f32.gmra.mxu0 %v1165
  %v1269 = vpop.f32.mrf.mxu0
  %v1270 = vadd.f32 %v1250, %v1269
  %1271 = vdwg.mxu0
  %1272 = vmatpush.msra.mxu0 %v1215
  %1273 = vmatpush.msra.mxu0 %v1214
  %1274 = vmatpush.msra.mxu0 %v1213
  %1275 = vmatpush.msra.mxu0 %v1212
  %1276 = vmatpush.msra.mxu0 %v1211
  %1277 = vmatpush.msra.mxu0 %v1210
  %1278 = vmatpush.msra.mxu0 %v1209
  %1279 = vmatpush.msra.mxu0 %v1208
  %1280 = vmatpush.msra.mxu0 %v1207
  %1281 = vmatpush.msra.mxu0 %v1206
  %1282 = vmatpush.msra.mxu0 %v1205
  %1283 = vmatpush.msra.mxu0 %v1204
  %1284 = vmatpush.msra.mxu0 %v1203
  %1285 = vmatpush.msra.mxu0 %v1202
  %1286 = vmatpush.msra.mxu0 %v1201
  %1287 = vmatpush.msra.mxu0 %v1200
  %1288 = vmatmul.f32.gmra.mxu0 %v1166
  %v1289 = vpop.f32.mrf.mxu0
  %v1290 = vadd.f32 %v1270, %v1289
  %1291 = vdwg.mxu0
  %1292 = vmatpush.msra.mxu0 0.0
  %1293 = vmatpush.msra.mxu0 0.0
  %1294 = vmatpush.msra.mxu0 0.0
  %1295 = vmatpush.msra.mxu0 0.0
  %1296 = vmatpush.msra.mxu0 %v1227
  %1297 = vmatpush.msra.mxu0 %v1226
  %1298 = vmatpush.msra.mxu0 %v1225
  %1299 = vmatpush.msra.mxu0 %v1224
  %1300 = vmatpush.msra.mxu0 %v1223
  %1301 = vmatpush.msra.mxu0 %v1222
  %1302 = vmatpush.msra.mxu0 %v1221
  %1303 = vmatpush.msra.mxu0 %v1220
  %1304 = vmatpush.msra.mxu0 %v1219
  %1305 = vmatpush.msra.mxu0 %v1218
  %1306 = vmatpush.msra.mxu0 %v1217
  %1307 = vmatpush.msra.mxu0 %v1216
  %1308 = vmatmul.f32.gmra.mxu0 %v1230
  %v1309 = vpop.f32.mrf.mxu0
  %v1310 = vadd.f32 %v1290, %v1309
  %1311 = vdwg.mxu0
  %1312 = vadd.xlane.f32.xlu0 %v1310
  %v1313 = vpop.xlane.xlu0 %1312
  %v1314 = vmul.f32 %v1310, %v1310
  %1315 = vadd.xlane.f32.xlu0 %v1314
  %v1316 = vpop.xlane.xlu0 %1315
  %v1317 = vmul.f32 %v1313, 0.03125
  %v1318 = vmul.f32 %v1316, 0.03125
  %v1319 = vmul.f32 %v1317, %v1317
  %v1320 = vsub.f32 %v1318, %v1319
  %v1321 = vadd.f32 %v1320, 1e-05
  %v1322 = vrsqrt.pop %v1321
  %v1323 = vmul.f32 %v1322, %v1321
  %v1324 = vmul.f32 %v1323, %v1322
  %v1325 = vmul.f32 0.5, %v1324
  %v1326 = vsub.f32 1.5, %v1325
  %v1327 = vmul.f32 %v1322, %v1326
  %vm1328 = vweird.f32 %v1321
  %vm1329 = vweird.f32 %v1322
  %vm1330 = vmor %vm1328, %vm1329
  %v1331 = vsel %vm1330, %v1322, %v1327
  %v1332 = vmul.f32 %v23, %v1331
  %v1333 = vsub.f32 %v1310, %v1317
  %1335 = vset.pattern.permute.xlu0 2
  %1336 = vperm.xlu0 %1335, %v1332
  %v1337 = vpop.permute.xlu0 %1336
  %v1339 = vmul.f32 %v1333, %v1337
  %1340 = vset.pattern.permute.xlu0 3
  %1341 = vperm.xlu0 %1340, %v23
  %v1342 = vpop.permute.xlu0 %1341
  %v1344 = vadd.f32 %v1339, %v1342
  %vm1345 = vcmp.ge.f32.partialorder %v1344, 0.0
  %v1346 = vmul.f32 %v1344, 0.01
  %v1347 = vsel %vm1345, %v1344, %v1346
  %v1348 = vld [vmem:[%s5 + $0x1] sm:$0x1]
  %v1349 = vperm.slane %v1348, 0
  %v1350 = vmul.f32 %v1347, %v1349
  %1351 = vst [vmem:[#allocation3] sm:$0xff] %v1350
  %1352 = vst [vmem:[#allocation5] sm:$0xff] 0.0
  %1353 = vst [vmem:[#allocation5 + $0x8] sm:$0xff] 0.0
  %1354 = vst [vmem:[#allocation5 + $0x10] sm:$0xff] 0.0
  %1355 = vst [vmem:[#allocation5 + $0x18] sm:$0xff] 0.0
  %1356 = vst [vmem:[#allocation5 + $0x20] sm:$0xff] 0.0
  %1357 = vst [vmem:[#allocation5 + $0x28] sm:$0xff] 0.0
  %1358 = vst [vmem:[#allocation5 + $0x30] sm:$0xff] 0.0
  %1359 = vst [vmem:[#allocation5 + $0x38] sm:$0xff] 0.0
  %1360 = vst [vmem:[#allocation5 + $0x40] sm:$0xff] 0.0
  %v1361 = vld [vmem:[#allocation3] sm:$0xff]
  %vm1362 = vcmask 130048
  %1363 = vst.msk [vmem:[#allocation5] sm:$0xff] %vm1362, %v1361
  %v1364 = vld [vmem:[#allocation3] sm:$0xff]
  %1366 = vrot.lane.b32.xlu0 %v1364, 127
  %v1367 = vpop.permute.xlu0 %1366
  %1369 = vst.msk [vmem:[#allocation5 + $0x8] sm:$0xff] %vm1362, %v1367
  %v1370 = vld [vmem:[#allocation3] sm:$0xff]
  %1372 = vrot.lane.b32.xlu0 %v1370, 126
  %v1373 = vpop.permute.xlu0 %1372
  %1375 = vst.msk [vmem:[#allocation5 + $0x10] sm:$0xff] %vm1362, %v1373
  %v1376 = vld [vmem:[#allocation3] sm:$0xff]
  %1378 = vrot.lane.b32.xlu0 %v1376, 110
  %v1379 = vpop.permute.xlu0 %1378
  %1381 = vst.msk [vmem:[#allocation5 + $0x18] sm:$0xff] %vm1362, %v1379
  %v1382 = vld [vmem:[#allocation3] sm:$0xff]
  %1384 = vrot.lane.b32.xlu0 %v1382, 109
  %v1385 = vpop.permute.xlu0 %1384
  %1387 = vst.msk [vmem:[#allocation5 + $0x20] sm:$0xff] %vm1362, %v1385
  %v1388 = vld [vmem:[#allocation3] sm:$0xff]
  %1390 = vrot.lane.b32.xlu0 %v1388, 108
  %v1391 = vpop.permute.xlu0 %1390
  %1393 = vst.msk [vmem:[#allocation5 + $0x28] sm:$0xff] %vm1362, %v1391
  %v1394 = vld [vmem:[#allocation3] sm:$0xff]
  %1396 = vrot.lane.b32.xlu0 %v1394, 92
  %v1397 = vpop.permute.xlu0 %1396
  %1399 = vst.msk [vmem:[#allocation5 + $0x30] sm:$0xff] %vm1362, %v1397
  %v1400 = vld [vmem:[#allocation3] sm:$0xff]
  %1402 = vrot.lane.b32.xlu0 %v1400, 91
  %v1403 = vpop.permute.xlu0 %1402
  %1405 = vst.msk [vmem:[#allocation5 + $0x38] sm:$0xff] %vm1362, %v1403
  %v1406 = vld [vmem:[#allocation3] sm:$0xff]
  %1408 = vrot.lane.b32.xlu0 %v1406, 90
  %v1409 = vpop.permute.xlu0 %1408
  %1411 = vst.msk [vmem:[#allocation5 + $0x40] sm:$0xff] %vm1362, %v1409
  %v1412 = vld [vmem:[#allocation3] sm:$0xff]
  %1414 = vrot.lane.b32.xlu0 %v1412, 90
  %v1415 = vpop.permute.xlu0 %1414
  %vm1417 = vcmask 261248
  %1418 = vst.msk [vmem:[#allocation5] sm:$0xff] %vm1417, %v1415
  %v1419 = vld [vmem:[#allocation3] sm:$0xff]
  %1421 = vrot.lane.b32.xlu0 %v1419, 89
  %v1422 = vpop.permute.xlu0 %1421
  %1424 = vst.msk [vmem:[#allocation5 + $0x8] sm:$0xff] %vm1417, %v1422
  %v1425 = vld [vmem:[#allocation3] sm:$0xff]
  %1427 = vrot.lane.b32.xlu0 %v1425, 88
  %v1428 = vpop.permute.xlu0 %1427
  %1430 = vst.msk [vmem:[#allocation5 + $0x10] sm:$0xff] %vm1417, %v1428
  %v1431 = vld [vmem:[#allocation3] sm:$0xff]
  %1433 = vrot.lane.b32.xlu0 %v1431, 72
  %v1434 = vpop.permute.xlu0 %1433
  %1436 = vst.msk [vmem:[#allocation5 + $0x18] sm:$0xff] %vm1417, %v1434
  %v1437 = vld [vmem:[#allocation3] sm:$0xff]
  %1439 = vrot.lane.b32.xlu0 %v1437, 71
  %v1440 = vpop.permute.xlu0 %1439
  %1442 = vst.msk [vmem:[#allocation5 + $0x20] sm:$0xff] %vm1417, %v1440
  %v1443 = vld [vmem:[#allocation3] sm:$0xff]
  %1445 = vrot.lane.b32.xlu0 %v1443, 70
  %v1446 = vpop.permute.xlu0 %1445
  %1448 = vst.msk [vmem:[#allocation5 + $0x28] sm:$0xff] %vm1417, %v1446
  %v1449 = vld [vmem:[#allocation3] sm:$0xff]
  %1451 = vrot.lane.b32.xlu0 %v1449, 54
  %v1452 = vpop.permute.xlu0 %1451
  %1454 = vst.msk [vmem:[#allocation5 + $0x30] sm:$0xff] %vm1417, %v1452
  %v1455 = vld [vmem:[#allocation3] sm:$0xff]
  %1457 = vrot.lane.b32.xlu0 %v1455, 53
  %v1458 = vpop.permute.xlu0 %1457
  %1460 = vst.msk [vmem:[#allocation5 + $0x38] sm:$0xff] %vm1417, %v1458
  %v1461 = vld [vmem:[#allocation3] sm:$0xff]
  %1463 = vrot.lane.b32.xlu0 %v1461, 52
  %v1464 = vpop.permute.xlu0 %1463
  %1466 = vst.msk [vmem:[#allocation5 + $0x40] sm:$0xff] %vm1417, %v1464
  %v1467 = vld [vmem:[%s3] sm:$0xf]
  %v1468 = vld [vmem:[#allocation5] sm:$0xff]
  %v1469 = vld [vmem:[#allocation5 + $0x8] sm:$0xff]
  %v1470 = vld [vmem:[#allocation5 + $0x10] sm:$0xff]
  %v1471 = vld [vmem:[#allocation5 + $0x18] sm:$0xff]
  %v1472 = vld [vmem:[#allocation5 + $0x20] sm:$0xff]
  %v1473 = vld [vmem:[#allocation5 + $0x28] sm:$0xff]
  %v1474 = vld [vmem:[#allocation5 + $0x30] sm:$0xff]
  %v1475 = vld [vmem:[#allocation5 + $0x38] sm:$0xff]
  %v1476 = vld [vmem:[#allocation5 + $0x40] sm:$0xff]
  %vm1477 = vcmask 588800
  %v1479 = vsel %vm1477, %v1467, 0
  %1481 = vmatpush.msra.mxu0 0.0
  %1482 = vmatpush.msra.mxu0 0.0
  %1483 = vmatpush.msra.mxu0 0.0
  %1484 = vmatpush.msra.mxu0 0.0
  %1485 = vmatpush.msra.mxu0 0.0
  %1486 = vmatpush.msra.mxu0 0.0
  %1487 = vmatpush.msra.mxu0 0.0
  %1488 = vmatpush.msra.mxu0 %v1476
  %1489 = vmatpush.msra.mxu0 %v1475
  %1490 = vmatpush.msra.mxu0 %v1474
  %1491 = vmatpush.msra.mxu0 %v1473
  %1492 = vmatpush.msra.mxu0 %v1472
  %1493 = vmatpush.msra.mxu0 %v1471
  %1494 = vmatpush.msra.mxu0 %v1470
  %1495 = vmatpush.msra.mxu0 %v1469
  %1496 = vmatpush.msra.mxu0 %v1468
  %1497 = vmatmul.f32.gmra.mxu0 %v1479
  %v1498 = vpop.f32.mrf.mxu0
  %v1499 = vadd.f32 0.0, %v1498
  %1500 = vdwg.mxu0
  %vm1501 = vcmask 1043456
  %v1502 = vsel %vm1501, %v1499, 0.0
  %1503 = vadd.xlane.f32.xlu0 %v1502
  %v1504 = vpop.xlane.xlu0 %1503
  %v1505 = vmul.f32 %v1499, %v1499
  %v1506 = vsel %vm1501, %v1505, 0.0
  %1507 = vadd.xlane.f32.xlu0 %v1506
  %v1508 = vpop.xlane.xlu0 %1507
  %v1509 = vmul.f32 %v1504, 0.03125
  %v1510 = vmul.f32 %v1508, 0.03125
  %v1511 = vmul.f32 %v1509, %v1509
  %v1512 = vsub.f32 %v1510, %v1511
  %v1513 = vadd.f32 %v1512, 1e-05
  %v1514 = vrsqrt.pop %v1513
  %v1515 = vmul.f32 %v1514, %v1513
  %v1516 = vmul.f32 %v1515, %v1514
  %v1517 = vmul.f32 0.5, %v1516
  %v1518 = vsub.f32 1.5, %v1517
  %v1519 = vmul.f32 %v1514, %v1518
  %vm1520 = vweird.f32 %v1513
  %vm1521 = vweird.f32 %v1514
  %vm1522 = vmor %vm1520, %vm1521
  %v1523 = vsel %vm1522, %v1514, %v1519
  %v1524 = vmul.f32 %v23, %v1523
  %v1525 = vsub.f32 %v1499, %v1509
  %1527 = vset.pattern.permute.xlu0 4
  %1528 = vperm.xlu0 %1527, %v1524
  %v1529 = vpop.permute.xlu0 %1528
  %v1531 = vmul.f32 %v1525, %v1529
  %1532 = vset.pattern.permute.xlu0 5
  %1533 = vperm.xlu0 %1532, %v23
  %v1534 = vpop.permute.xlu0 %1533
  %v1536 = vadd.f32 %v1531, %v1534
  %vm1537 = vcmp.ge.f32.partialorder %v1536, 0.0
  %v1538 = vmul.f32 %v1536, 0.01
  %v1539 = vsel %vm1537, %v1536, %v1538
  %1540 = vst [vmem:[%s6] sm:$0xf] %v1539
  // Predicated region
  $region26: #{bottom_forward.1} parent=0 // pred_check
    _
  $region27: #{bottom_forward.1} parent=0 // pred_check_branch
    %1542 = sbr.rel (0) target = $region29
  $region28: #{bottom_forward.1} parent=0 // pred_region
    _
  $region29: #{bottom_forward.1} parent=0 // pred_fallthru
    _
  // Predicated region
  $region30: #{bottom_forward.1} parent=0 // pred_check
    _
  $region31: #{bottom_forward.1} parent=0 // pred_check_branch
    %1544 = sbr.rel (0) target = $region33
  $region32: #{bottom_forward.1} parent=0 // pred_region
    _
  $region33: #{bottom_forward.1} parent=0 // pred_fallthru
    _

</llo_original>
